<compile_context>
chip_gen: v5e
topology: v5e:2x2
jax: 0.10.0
libtpu: 0.0.40
codegen_flags: <defaults>
</compile_context>

<pallas_src>
import functools

import jax
import jax.numpy as jnp
import numpy as np
from jax import lax
from jax.experimental import pallas as pl
from jax.experimental.pallas import tpu as pltpu

BN_EPS = 1e-5
MXU_DTYPE = jnp.bfloat16          # MXU operand / inter-stage dtype; accumulation is f32.


def _round_up(v, m):
    return ((v + m - 1) // m) * m


@functools.lru_cache(maxsize=1)
def _vmem_limit():
    """Scoped-VMEM limit derived from the chip (v5e/v6e: 128 MiB, v7x: 64 MiB physical)."""
    try:
        cap = int(pltpu.get_tpu_info().vmem_capacity_bytes)
        return max(32 << 20, min((cap * 3) // 4, 100 << 20))
    except Exception:
        return 48 << 20           # conservative fallback, fits every current generation


def _tile_budget():
    return max(6 << 20, _vmem_limit() // 6)


# ----------------------------- Pallas kernels -------------------------------

def _conv3x3_kernel(x_ref, w_ref, b_ref, *rest, TH, W, WP, emit_full, emit_pool):
    """3x3 conv (pad=1) + folded BN + ReLU (+ optional fused 2x2 maxpool) on one H-tile.

    x_ref : ((TH+2)*WP, Cin)  flattened zero-padded tile (1-row halo, WP >= W+2, WP%8==0)
    w_ref : (9*Cin, Cout)     (ky, kx, cin)-major weight matrix, BN scale pre-folded
    b_ref : (1, Cout)         folded conv-bias + BN shift (f32)
    outputs: out_full (TH*W, Cout) and/or out_pool ((TH//2)*(W//2), Cout)
    band_scr: VMEM f32 ((TH-1)*WP + W, Cout), written exactly once.

    For tap (ky, kx) the contiguous band starting at ky*WP+kx places output pixel (h, w)
    at local row h*WP+w for EVERY tap (rows with w >= W are junk and never read), so the
    accumulation is 3 matmuls (kx folded into K=3*Cin) with no im2col tensor in HBM.
    """
    rest = list(rest)
    out_full = rest.pop(0) if emit_full else None
    out_pool = rest.pop(0) if emit_pool else None
    band_scr = rest.pop(0)

    cin = x_ref.shape[-1]
    lb = (TH - 1) * WP + W

    # Per ky, fold the three kx taps into one K=3*Cin MXU matmul over shifted VMEM bands;
    # accumulate as a value so the band scratch is written exactly once (no 9x RMW).
    acc = None
    for ky in range(3):
        base = ky * WP
        xk = jnp.concatenate(
            [x_ref[base + kx:base + kx + lb, :] for kx in range(3)], axis=-1)
        contrib = jnp.dot(xk, w_ref[ky * 3 * cin:(ky + 1) * 3 * cin, :],
                          preferred_element_type=jnp.float32)
        acc = contrib if acc is None else acc + contrib

    # Folded BN shift + ReLU epilogue; single scratch write.
    band_scr[...] = jnp.maximum(acc + b_ref[...], 0.0)

    if emit_full:
        for h in range(TH):
            out_full[h * W:(h + 1) * W, :] = (
                band_scr[h * WP:h * WP + W, :].astype(out_full.dtype))

    if emit_pool:
        wh = W // 2
        for m in range(TH // 2):
            top = (2 * m) * WP
            bot = (2 * m + 1) * WP
            # Contiguous row-pair max first, then only two stride-2 column selects.
            rowmax = jnp.maximum(band_scr[top:top + W, :], band_scr[bot:bot + W, :])
            band_scr[bot:bot + W, :] = rowmax
            ev = band_scr[pl.ds(bot, wh, 2), :]
            od = band_scr[pl.ds(bot + 1, wh, 2), :]
            out_pool[m * wh:(m + 1) * wh, :] = jnp.maximum(ev, od).astype(out_pool.dtype)


def _attn_chain_kernel(x_ref, g_ref, w1_ref, b1_ref, w2_ref, b2_ref, o_ref, *,
                       num_tasks):
    """Fused attention 1x1 chain for all tasks (task-concat / block-diag weights):

        h    = relu(x @ W1_all + b1_all)
        attn = sigmoid(h @ W2_blockdiag + b2_all)
        out  = tile(gate, T) * attn          (single lane-dense store)
    """
    h = jnp.dot(x_ref[...], w1_ref[...], preferred_element_type=jnp.float32)
    h = jnp.maximum(h + b1_ref[...], 0.0).astype(w2_ref.dtype)
    a = jnp.dot(h, w2_ref[...], preferred_element_type=jnp.float32)
    attn = jax.nn.sigmoid(a + b2_ref[...])
    g = g_ref[...].astype(jnp.float32)
    if num_tasks > 1:
        g = jnp.concatenate([g] * num_tasks, axis=-1)
    o_ref[...] = (g * attn).astype(o_ref.dtype)


# ----------------------------- kernel wrappers -------------------------------

def _pick_th(n, h, w, cin, cout, *, min_steps=4):
    """Largest even divisor of h whose per-step VMEM fits the budget while keeping
    n*(h//TH) >= min_steps grid steps (so both v7x TensorCores pipeline)."""
    budget = _tile_budget()
    wp = _round_up(w + 2, 8)

    def vmem_bytes(th):
        lb = (th - 1) * wp + w
        return (2 * (th + 2) * wp * cin * 2          # double-buffered input tile (bf16)
                + 2 * th * w * cout * 4              # out_full (f32 worst case), dbl-buf
                + 2 * (th // 2) * (w // 2) * cout * 4
                + lb * cout * 4                      # band scratch
                + lb * 3 * cin * 2 + lb * cout * 4)  # widened operand + accumulator

    cands = [d for d in range(2, h + 1, 2) if h % d == 0 and vmem_bytes(d) <= budget]
    if not cands:
        return 2 if h % 2 == 0 else h
    good = [d for d in cands if n * (h // d) >= min_steps]
    return max(good) if good else min(cands)


def _pick_tm(m, row_bytes, *, min_steps=4):
    """Largest row tile (multiple of 8, divisor of m) within the VMEM budget while
    keeping >= min_steps grid steps."""
    budget = _tile_budget()
    cap_rows = max(8, budget // max(1, 2 * row_bytes))
    cands = [c for c in range(8, m + 1, 8) if m % c == 0 and c <= cap_rows]
    if not cands:
        # TODO(synk): pad m to a multiple of 8 instead of a single full-size step.
        return m
    good = [c for c in cands if m // c >= min_steps]
    return max(good) if good else max(cands)


def conv3x3_bn_relu_pool(x_nhwc, w_mat, shift, *, emit_full, emit_pool,
                         full_dtype=MXU_DTYPE, pool_dtype=jnp.float32):
    """3x3 conv (pad=1) + folded BN + ReLU, H-tiled with a 1-row halo; optionally with a
    fused 2x2 maxpool epilogue."""
    n, h, w, cin = x_nhwc.shape
    cout = w_mat.shape[-1]
    assert emit_full or emit_pool
    assert (not emit_pool) or (h % 2 == 0 and w % 2 == 0)

    wp = _round_up(w + 2, 8)                     # aligned padded width (junk cols unread)
    th = _pick_th(n, h, w, cin, cout)
    nt = h // th
    lb = (th - 1) * wp + w

    # Cast to bf16 BEFORE padding / halo-tiling so the wrapper passes move half the bytes.
    x_b = x_nhwc.astype(MXU_DTYPE)
    x_pad = jnp.pad(x_b, ((0, 0), (1, 1), (1, wp - w - 1), (0, 0)))       # (n, h+2, wp, cin)
    rows = jnp.arange(nt)[:, None] * th + jnp.arange(th + 2)[None, :]     # halo'd row gather
    x_tiles = x_pad[:, rows].reshape(n, nt, (th + 2) * wp, cin)

    wmat = w_mat.astype(MXU_DTYPE)
    bias = shift.reshape(1, cout).astype(jnp.float32)

    out_shapes, out_specs = [], []
    if emit_full:
        out_shapes.append(jax.ShapeDtypeStruct((n, h * w, cout), full_dtype))
        out_specs.append(pl.BlockSpec((None, th * w, cout), lambda b, t: (b, t, 0)))
    if emit_pool:
        out_shapes.append(
            jax.ShapeDtypeStruct((n, (h // 2) * (w // 2), cout), pool_dtype))
        out_specs.append(
            pl.BlockSpec((None, (th // 2) * (w // 2), cout), lambda b, t: (b, t, 0)))

    kernel = functools.partial(_conv3x3_kernel, TH=th, W=w, WP=wp,
                               emit_full=emit_full, emit_pool=emit_pool)
    outs = pl.pallas_call(
        kernel,
        out_shape=tuple(out_shapes),
        grid=(n, nt),
        in_specs=[
            pl.BlockSpec((None, None, (th + 2) * wp, cin), lambda b, t: (b, t, 0, 0)),
            pl.BlockSpec((9 * cin, cout), lambda b, t: (0, 0)),
            pl.BlockSpec((1, cout), lambda b, t: (0, 0)),
        ],
        out_specs=tuple(out_specs),
        scratch_shapes=[pltpu.VMEM((lb, cout), jnp.float32)],
        compiler_params=pltpu.CompilerParams(
            dimension_semantics=("parallel", "parallel"),
            vmem_limit_bytes=_vmem_limit()),
    )(x_tiles, wmat, bias)
    outs = list(outs) if isinstance(outs, (tuple, list)) else [outs]

    res = []
    if emit_full:
        res.append(outs.pop(0).reshape(n, h, w, cout))
    if emit_pool:
        res.append(outs.pop(0).reshape(n, h // 2, w // 2, cout))
    return res


def attn_chain(x2d, gate2d, w1_all, b1_all, w2_all, b2_all, *, num_tasks,
               out_dtype=MXU_DTYPE):
    m, k = x2d.shape
    c2 = gate2d.shape[-1]
    cout = w2_all.shape[-1]
    hid = w1_all.shape[-1]
    row_bytes = 2 * k + 2 * c2 + 2 * cout + 4 * hid + 4 * cout
    tm = _pick_tm(m, row_bytes)

    return pl.pallas_call(
        functools.partial(_attn_chain_kernel, num_tasks=num_tasks),
        out_shape=jax.ShapeDtypeStruct((m, cout), out_dtype),
        grid=(m // tm,),
        in_specs=[
            pl.BlockSpec((tm, k), lambda i: (i, 0)),
            pl.BlockSpec((tm, c2), lambda i: (i, 0)),
            pl.BlockSpec((k, hid), lambda i: (0, 0)),
            pl.BlockSpec((1, hid), lambda i: (0, 0)),
            pl.BlockSpec((hid, cout), lambda i: (0, 0)),
            pl.BlockSpec((1, cout), lambda i: (0, 0)),
        ],
        out_specs=pl.BlockSpec((tm, cout), lambda i: (i, 0)),
        compiler_params=pltpu.CompilerParams(
            dimension_semantics=("parallel",),
            vmem_limit_bytes=_vmem_limit()),
    )(x2d.astype(MXU_DTYPE), gate2d.astype(MXU_DTYPE),
      w1_all.astype(MXU_DTYPE), b1_all.astype(jnp.float32),
      w2_all.astype(MXU_DTYPE), b2_all.astype(jnp.float32))


# ------------------- weight folding / batching (host-side, hoisted) -------------------

def fold_bn(bn, conv_bias):
    """Fold conv bias + inference BN into per-channel (scale, shift)."""
    gamma, beta, mean, var = bn
    scale = gamma / jnp.sqrt(var + BN_EPS)
    shift = beta + (conv_bias - mean) * scale
    return scale.reshape(1, -1), shift.reshape(1, -1)


def conv1x1_matrix(w_oihw, scale):
    # (Cout, Cin, 1, 1) -> (Cin, Cout) with BN scale folded into the columns.
    return w_oihw[:, :, 0, 0].T * scale


def conv3x3_matrix(w_oihw, scale):
    # (Cout, Cin, 3, 3) -> (9*Cin, Cout), rows (ky, kx, cin)-major, scale folded.
    cout, cin = w_oihw.shape[:2]
    w = jnp.transpose(w_oihw, (2, 3, 1, 0)).reshape(9 * cin, cout)
    return w * scale


def prepare_mtan_down_params(params):
    """Fold BN and assemble batched / block-diagonal weights ONCE (outside the jitted
    forward): per-task attention weights are concatenated / block-diagonalised on the
    output-channel axis so all tasks run in one lane-dense matmul chain + one conv call.
    TODO(synk): block-diag W2/W3 make MXU work scale with num_tasks^2 -- fine for T<=2,
    switch to a per-task grid axis at larger task counts / production channel widths."""
    dp = params["dconv"]
    s1, sh1 = fold_bn(dp["bn1"], dp["conv1_b"])
    s2, sh2 = fold_bn(dp["bn2"], dp["conv2_b"])

    attn_params = params["attn"]
    T = len(attn_params)
    cin_x = dp["conv1_w"].shape[1]                     # shared-input channels (x)
    cin_total = attn_params[0]["conv1_w"].shape[1]
    prev_c = cin_total - cin_x                          # >0 only for non-first blocks
    hidden = attn_params[0]["conv1_w"].shape[0]
    c2 = attn_params[0]["conv2_w"].shape[0]
    ao = attn_params[0]["conv3_w"].shape[0]

    w1x, w1p, b1s, w2s, b2s, w3s, b3s = [], [], [], [], [], [], []
    for p in attn_params:
        a1, ash1 = fold_bn(p["bn1"], p["conv1_b"])
        a2, ash2 = fold_bn(p["bn2"], p["conv2_b"])
        a3, ash3 = fold_bn(p["bn3"], p["conv3_b"])
        w1 = conv1x1_matrix(p["conv1_w"], a1)           # (cin_total, hidden)
        w1x.append(w1[:cin_x]); w1p.append(w1[cin_x:]); b1s.append(ash1)
        w2s.append(conv1x1_matrix(p["conv2_w"], a2)); b2s.append(ash2)
        w3s.append(conv3x3_matrix(p["conv3_w"], a3)); b3s.append(ash3)

    # W1: x-part shared across tasks (concat), prev-part per-task (block-diag) so x is
    # streamed from HBM exactly once even in the prev_layer_outs path.
    w1_all = jnp.concatenate(w1x, axis=1)               # (cin_x, T*hidden)
    if prev_c > 0:
        w1p_bd = jnp.zeros((T * prev_c, T * hidden), jnp.float32)
        for t in range(T):
            w1p_bd = w1p_bd.at[t * prev_c:(t + 1) * prev_c,
                               t * hidden:(t + 1) * hidden].set(w1p[t])
        w1_all = jnp.concatenate([w1_all, w1p_bd], axis=0)
    b1_all = jnp.concatenate(b1s, axis=1)

    w2_all = jnp.zeros((T * hidden, T * c2), jnp.float32)
    for t in range(T):
        w2_all = w2_all.at[t * hidden:(t + 1) * hidden, t * c2:(t + 1) * c2].set(w2s[t])
    b2_all = jnp.concatenate(b2s, axis=1)

    w3_all = jnp.zeros((9 * T * c2, T * ao), jnp.float32)
    for t in range(T):
        for tap in range(9):
            w3_all = w3_all.at[tap * T * c2 + t * c2:tap * T * c2 + (t + 1) * c2,
                               t * ao:(t + 1) * ao].set(w3s[t][tap * c2:(tap + 1) * c2])
    b3_all = jnp.concatenate(b3s, axis=1)

    return {
        "dconv1_w": conv3x3_matrix(dp["conv1_w"], s1).astype(MXU_DTYPE),
        "dconv1_b": sh1.astype(jnp.float32),
        "dconv2_w": conv3x3_matrix(dp["conv2_w"], s2).astype(MXU_DTYPE),
        "dconv2_b": sh2.astype(jnp.float32),
        "attn_w1": w1_all.astype(MXU_DTYPE), "attn_b1": b1_all.astype(jnp.float32),
        "attn_w2": w2_all.astype(MXU_DTYPE), "attn_b2": b2_all.astype(jnp.float32),
        "attn_w3": w3_all.astype(MXU_DTYPE), "attn_b3": b3_all.astype(jnp.float32),
    }


# ------------------------- MTANDown forward (Pallas) -------------------------

def mtan_down_pallas(prepared, x_nchw, prev_layer_outs=None, *, num_tasks):
    x = jnp.transpose(x_nchw, (0, 2, 3, 1)).astype(MXU_DTYPE)   # NCHW -> NHWC, cast once
    n, h, w, cin = x.shape
    c2 = prepared["dconv2_w"].shape[1]
    ao = prepared["attn_w3"].shape[1] // num_tasks

    # DoubleConv: (conv3x3 -> BN -> ReLU) x 2; second conv also emits the pooled output.
    dconv_h = conv3x3_bn_relu_pool(x, prepared["dconv1_w"], prepared["dconv1_b"],
                                   emit_full=True, emit_pool=False)[0]           # bf16
    dconv_out, pool_out = conv3x3_bn_relu_pool(
        dconv_h, prepared["dconv2_w"], prepared["dconv2_b"],
        emit_full=True, emit_pool=True,
        full_dtype=MXU_DTYPE, pool_dtype=jnp.float32)

    # Task attention modules: all tasks batched along the channel/lane axis, one call.
    m = n * h * w
    gate2d = dconv_out.reshape(m, c2)
    x2d = x.reshape(m, cin)
    if prev_layer_outs is not None:
        prevs = [jnp.transpose(p, (0, 2, 3, 1)).astype(MXU_DTYPE).reshape(m, -1)
                 for p in prev_layer_outs]
        x2d = jnp.concatenate([x2d] + prevs, axis=-1)
    gated = attn_chain(x2d, gate2d, prepared["attn_w1"], prepared["attn_b1"],
                       prepared["attn_w2"], prepared["attn_b2"],
                       num_tasks=num_tasks)                                       # bf16

    gated_nhwc = gated.reshape(n, h, w, num_tasks * c2)
    pooled_all = conv3x3_bn_relu_pool(gated_nhwc, prepared["attn_w3"], prepared["attn_b3"],
                                      emit_full=False, emit_pool=True,
                                      pool_dtype=jnp.float32)[0]

    to_nchw = lambda a: jnp.transpose(a, (0, 3, 1, 2))
    task_outs = [to_nchw(pooled_all[..., t * ao:(t + 1) * ao]) for t in range(num_tasks)]
    return to_nchw(pool_out), task_outs


# ------------------------- pure-JAX reference (NHWC) -------------------------

def _ref_conv(x_nhwc, w_oihw, bias, pad):
    w_hwio = jnp.transpose(w_oihw, (2, 3, 1, 0))
    y = lax.conv_general_dilated(
        x_nhwc, w_hwio, window_strides=(1, 1), padding=pad,
        dimension_numbers=("NHWC", "HWIO", "NHWC"))
    return y + bias[None, None, None, :]


def _ref_bn(x, bn):
    gamma, beta, mean, var = bn
    return (x - mean) / jnp.sqrt(var + BN_EPS) * gamma + beta


def _ref_maxpool(x):
    return lax.reduce_window(x, -jnp.inf, lax.max, (1, 2, 2, 1), (1, 2, 2, 1), "VALID")


def mtan_down_reference(params, x_nchw, prev_layer_outs=None):
    x = jnp.transpose(x_nchw, (0, 2, 3, 1))
    dp = params["dconv"]
    h = jax.nn.relu(_ref_bn(_ref_conv(x, dp["conv1_w"], dp["conv1_b"], [(1, 1), (1, 1)]), dp["bn1"]))
    dconv_out = jax.nn.relu(_ref_bn(_ref_conv(h, dp["conv2_w"], dp["conv2_b"], [(1, 1), (1, 1)]), dp["bn2"]))
    task_outs = []
    for i, ap in enumerate(params["attn"]):
        c1in = x
        if prev_layer_outs is not None:
            c1in = jnp.concatenate([x, jnp.transpose(prev_layer_outs[i], (0, 2, 3, 1))], axis=-1)
        a = jax.nn.relu(_ref_bn(_ref_conv(c1in, ap["conv1_w"], ap["conv1_b"], [(0, 0), (0, 0)]), ap["bn1"]))
        a = jax.nn.sigmoid(_ref_bn(_ref_conv(a, ap["conv2_w"], ap["conv2_b"], [(0, 0), (0, 0)]), ap["bn2"]))
        g = dconv_out * a
        g = jax.nn.relu(_ref_bn(_ref_conv(g, ap["conv3_w"], ap["conv3_b"], [(1, 1), (1, 1)]), ap["bn3"]))
        task_outs.append(_ref_maxpool(g))
    pool_out = _ref_maxpool(dconv_out)
    to_nchw = lambda t: jnp.transpose(t, (0, 3, 1, 2))
    return to_nchw(pool_out), [to_nchw(t) for t in task_outs]


# ------------------------------- parameters ----------------------------------

def _init_conv(key, cout, cin, k):
    kw, kb = jax.random.split(key)
    fan_in = cin * k * k
    w = jax.random.normal(kw, (cout, cin, k, k), jnp.float32) / jnp.sqrt(fan_in)
    b = 0.1 * jax.random.normal(kb, (cout,), jnp.float32)
    return w, b


def _init_bn(key, c):
    k1, k2, k3, k4 = jax.random.split(key, 4)
    gamma = 1.0 + 0.1 * jax.random.normal(k1, (c,), jnp.float32)
    beta = 0.1 * jax.random.normal(k2, (c,), jnp.float32)
    mean = 0.1 * jax.random.normal(k3, (c,), jnp.float32)
    var = 1.0 + 0.1 * jnp.abs(jax.random.normal(k4, (c,), jnp.float32))
    return (gamma, beta, mean, var)


def init_params(key, in_channels, out_channels, num_tasks, attn_out_channels, hidden_channels):
    keys = jax.random.split(key, 4 + num_tasks)
    dconv = {}
    dconv["conv1_w"], dconv["conv1_b"] = _init_conv(keys[0], out_channels, in_channels, 3)
    dconv["bn1"] = _init_bn(keys[1], out_channels)
    dconv["conv2_w"], dconv["conv2_b"] = _init_conv(keys[2], out_channels, out_channels, 3)
    dconv["bn2"] = _init_bn(keys[3], out_channels)
    attn = []
    for t in range(num_tasks):
        ks = jax.random.split(keys[4 + t], 6)
        p = {}
        # is_first == True (prev_layer_out_channels = 0):
        # shared_1_channels = in_channels, shared_2_channels = out_channels.
        p["conv1_w"], p["conv1_b"] = _init_conv(ks[0], hidden_channels, in_channels, 1)
        p["bn1"] = _init_bn(ks[1], hidden_channels)
        p["conv2_w"], p["conv2_b"] = _init_conv(ks[2], out_channels, hidden_channels, 1)
        p["bn2"] = _init_bn(ks[3], out_channels)
        p["conv3_w"], p["conv3_b"] = _init_conv(ks[4], attn_out_channels, out_channels, 3)
        p["bn3"] = _init_bn(ks[5], attn_out_channels)
        attn.append(p)
    return {"dconv": dconv, "attn": attn}


# ---------------------------------- main --------------------------------------

if __name__ == "__main__":
    key = jax.random.PRNGKey(0)
    kp, kx = jax.random.split(key)

    N, Cin, H, W = 2, 4, 16, 16
    Cout, hidden, attn_out, num_tasks = 8, 32, 8, 2

    params = init_params(kp, Cin, Cout, num_tasks, attn_out, hidden)
    x = jax.random.normal(kx, (N, Cin, H, W), jnp.float32)   # NCHW, like PyTorch

    # BN folding + block-diag weight assembly hoisted out of the jitted forward.
    prepared = prepare_mtan_down_params(params)
    fwd = jax.jit(functools.partial(mtan_down_pallas, num_tasks=num_tasks))

    pool_out, task_outs = fwd(prepared, x)
    pool_out = jax.block_until_ready(pool_out)
    task_outs = [jax.block_until_ready(t) for t in task_outs]

    assert pool_out.shape == (N, Cout, H // 2, W // 2)
    assert all(t.shape == (N, attn_out, H // 2, W // 2) for t in task_outs)

    ref_pool, ref_tasks = mtan_down_reference(params, x)
    # bf16 MXU operands / inter-stage tensors with f32 accumulation -> loose-ish tolerance.
    np.testing.assert_allclose(np.asarray(pool_out), np.asarray(ref_pool), rtol=2e-2, atol=2e-2)
    for t, r in zip(task_outs, ref_tasks):
        np.testing.assert_allclose(np.asarray(t), np.asarray(r), rtol=2e-2, atol=2e-2)

    print("KERNEL_OK")
</pallas_src>

<mosaic_0001>
module attributes {stable_mosaic.version = 11 : i64} {
  func.func @_conv3x3_kernel(%arg0: i32, %arg1: i32, %arg2: memref<1x1x240x4xbf16, #tpu.memory_space<vmem>>, %arg3: memref<36x8xbf16, #tpu.memory_space<vmem>>, %arg4: memref<1x8xf32, #tpu.memory_space<vmem>>, %arg5: memref<1x128x8xbf16, #tpu.memory_space<vmem>>, %arg6: memref<184x8xf32, #tpu.memory_space<vmem>>) attributes {dimension_semantics = [#tpu.dimension_semantics<parallel>, #tpu.dimension_semantics<parallel>], iteration_bounds = array<i64: 2, 2>, scalar_prefetch = 0 : i64, scratch_operands = 1 : i64, tpu.core_type = #tpu.core_type<tc>, window_params = [{transform_indices = @transform_0, window_bounds = array<i64: 1, 1, 240, 4>}, {pipeline_mode = #tpu.pipeline_mode<synchronous>, transform_indices = @transform_1, window_bounds = array<i64: 36, 8>}, {pipeline_mode = #tpu.pipeline_mode<synchronous>, transform_indices = @transform_2, window_bounds = array<i64: 1, 8>}, {transform_indices = @transform_3, window_bounds = array<i64: 1, 128, 8>}]} {
    %c0 = arith.constant 0 : index
    %c0_0 = arith.constant 0 : index
    %c0_1 = arith.constant 0 : index
    %c0_2 = arith.constant 0 : index
    %0 = vector.load %arg2[%c0, %c0_0, %c0_1, %c0_2] : memref<1x1x240x4xbf16, #tpu.memory_space<vmem>>, vector<1x1x184x4xbf16>
    %1 = vector.shape_cast %0 : vector<1x1x184x4xbf16> to vector<184x4xbf16>
    %c0_3 = arith.constant 0 : index
    %c0_4 = arith.constant 0 : index
    %c1 = arith.constant 1 : index
    %c0_5 = arith.constant 0 : index
    %2 = vector.load %arg2[%c0_3, %c0_4, %c1, %c0_5] : memref<1x1x240x4xbf16, #tpu.memory_space<vmem>>, vector<1x1x184x4xbf16>
    %3 = vector.shape_cast %2 : vector<1x1x184x4xbf16> to vector<184x4xbf16>
    %c0_6 = arith.constant 0 : index
    %c0_7 = arith.constant 0 : index
    %c2 = arith.constant 2 : index
    %c0_8 = arith.constant 0 : index
    %4 = vector.load %arg2[%c0_6, %c0_7, %c2, %c0_8] : memref<1x1x240x4xbf16, #tpu.memory_space<vmem>>, vector<1x1x184x4xbf16>
    %5 = vector.shape_cast %4 : vector<1x1x184x4xbf16> to vector<184x4xbf16>
    %6 = tpu.concatenate %1, %3, %5 in 1 : vector<184x4xbf16>, vector<184x4xbf16>, vector<184x4xbf16> -> vector<184x12xbf16>
    %c0_9 = arith.constant 0 : index
    %c0_10 = arith.constant 0 : index
    %7 = vector.load %arg3[%c0_9, %c0_10] : memref<36x8xbf16, #tpu.memory_space<vmem>>, vector<12x8xbf16>
    %cst = arith.constant dense<0.000000e+00> : vector<184x8xf32>
    %8 = tpu.matmul %6, %7, %cst {dimension_numbers = #tpu.dot_dimension_numbers<[1], [0], [0], [1], [0, 0, 1, 1], [], []>} : vector<184x12xbf16>, vector<12x8xbf16>, vector<184x8xf32> -> vector<184x8xf32>
    %c0_11 = arith.constant 0 : index
    %c0_12 = arith.constant 0 : index
    %c24 = arith.constant 24 : index
    %c0_13 = arith.constant 0 : index
    %9 = vector.load %arg2[%c0_11, %c0_12, %c24, %c0_13] : memref<1x1x240x4xbf16, #tpu.memory_space<vmem>>, vector<1x1x184x4xbf16>
    %10 = vector.shape_cast %9 : vector<1x1x184x4xbf16> to vector<184x4xbf16>
    %c0_14 = arith.constant 0 : index
    %c0_15 = arith.constant 0 : index
    %c25 = arith.constant 25 : index
    %c0_16 = arith.constant 0 : index
    %11 = vector.load %arg2[%c0_14, %c0_15, %c25, %c0_16] : memref<1x1x240x4xbf16, #tpu.memory_space<vmem>>, vector<1x1x184x4xbf16>
    %12 = vector.shape_cast %11 : vector<1x1x184x4xbf16> to vector<184x4xbf16>
    %c0_17 = arith.constant 0 : index
    %c0_18 = arith.constant 0 : index
    %c26 = arith.constant 26 : index
    %c0_19 = arith.constant 0 : index
    %13 = vector.load %arg2[%c0_17, %c0_18, %c26, %c0_19] : memref<1x1x240x4xbf16, #tpu.memory_space<vmem>>, vector<1x1x184x4xbf16>
    %14 = vector.shape_cast %13 : vector<1x1x184x4xbf16> to vector<184x4xbf16>
    %15 = tpu.concatenate %10, %12, %14 in 1 : vector<184x4xbf16>, vector<184x4xbf16>, vector<184x4xbf16> -> vector<184x12xbf16>
    %c12 = arith.constant 12 : index
    %c0_20 = arith.constant 0 : index
    %16 = vector.load %arg3[%c12, %c0_20] : memref<36x8xbf16, #tpu.memory_space<vmem>>, vector<12x8xbf16>
    %cst_21 = arith.constant dense<0.000000e+00> : vector<184x8xf32>
    %17 = tpu.matmul %15, %16, %cst_21 {dimension_numbers = #tpu.dot_dimension_numbers<[1], [0], [0], [1], [0, 0, 1, 1], [], []>} : vector<184x12xbf16>, vector<12x8xbf16>, vector<184x8xf32> -> vector<184x8xf32>
    %18 = arith.addf %8, %17 : vector<184x8xf32>
    %c0_22 = arith.constant 0 : index
    %c0_23 = arith.constant 0 : index
    %c48 = arith.constant 48 : index
    %c0_24 = arith.constant 0 : index
    %19 = vector.load %arg2[%c0_22, %c0_23, %c48, %c0_24] : memref<1x1x240x4xbf16, #tpu.memory_space<vmem>>, vector<1x1x184x4xbf16>
    %20 = vector.shape_cast %19 : vector<1x1x184x4xbf16> to vector<184x4xbf16>
    %c0_25 = arith.constant 0 : index
    %c0_26 = arith.constant 0 : index
    %c49 = arith.constant 49 : index
    %c0_27 = arith.constant 0 : index
    %21 = vector.load %arg2[%c0_25, %c0_26, %c49, %c0_27] : memref<1x1x240x4xbf16, #tpu.memory_space<vmem>>, vector<1x1x184x4xbf16>
    %22 = vector.shape_cast %21 : vector<1x1x184x4xbf16> to vector<184x4xbf16>
    %c0_28 = arith.constant 0 : index
    %c0_29 = arith.constant 0 : index
    %c50 = arith.constant 50 : index
    %c0_30 = arith.constant 0 : index
    %23 = vector.load %arg2[%c0_28, %c0_29, %c50, %c0_30] : memref<1x1x240x4xbf16, #tpu.memory_space<vmem>>, vector<1x1x184x4xbf16>
    %24 = vector.shape_cast %23 : vector<1x1x184x4xbf16> to vector<184x4xbf16>
    %25 = tpu.concatenate %20, %22, %24 in 1 : vector<184x4xbf16>, vector<184x4xbf16>, vector<184x4xbf16> -> vector<184x12xbf16>
    %c24_31 = arith.constant 24 : index
    %c0_32 = arith.constant 0 : index
    %26 = vector.load %arg3[%c24_31, %c0_32] : memref<36x8xbf16, #tpu.memory_space<vmem>>, vector<12x8xbf16>
    %cst_33 = arith.constant dense<0.000000e+00> : vector<184x8xf32>
    %27 = tpu.matmul %25, %26, %cst_33 {dimension_numbers = #tpu.dot_dimension_numbers<[1], [0], [0], [1], [0, 0, 1, 1], [], []>} : vector<184x12xbf16>, vector<12x8xbf16>, vector<184x8xf32> -> vector<184x8xf32>
    %28 = arith.addf %18, %27 : vector<184x8xf32>
    %c0_34 = arith.constant 0 : index
    %c0_35 = arith.constant 0 : index
    %29 = vector.load %arg4[%c0_34, %c0_35] : memref<1x8xf32, #tpu.memory_space<vmem>>, vector<1x8xf32>
    %30 = vector.broadcast %29 : vector<1x8xf32> to vector<184x8xf32>
    %31 = arith.addf %28, %30 : vector<184x8xf32>
    %cst_36 = arith.constant 0.000000e+00 : f32
    %32 = vector.broadcast %cst_36 : f32 to vector<184x8xf32>
    %33 = arith.maximumf %31, %32 : vector<184x8xf32>
    %c0_37 = arith.constant 0 : index
    %c0_38 = arith.constant 0 : index
    %34 = vector.load %arg6[%c0_37, %c0_38] : memref<184x8xf32, #tpu.memory_space<vmem>>, vector<184x8xf32>
    tpu.vector_store %arg6[%c0_37, %c0_38], %33 {strides = array<i32>} : memref<184x8xf32, #tpu.memory_space<vmem>>, vector<184x8xf32>,
    %c0_39 = arith.constant 0 : index
    %c0_40 = arith.constant 0 : index
    %35 = vector.load %arg6[%c0_39, %c0_40] : memref<184x8xf32, #tpu.memory_space<vmem>>, vector<16x8xf32>
    %36 = arith.truncf %35 : vector<16x8xf32> to vector<16x8xbf16>
    %c0_41 = arith.constant 0 : index
    %c0_42 = arith.constant 0 : index
    %c0_43 = arith.constant 0 : index
    %37 = vector.load %arg5[%c0_41, %c0_42, %c0_43] : memref<1x128x8xbf16, #tpu.memory_space<vmem>>, vector<1x16x8xbf16>
    %38 = vector.shape_cast %37 : vector<1x16x8xbf16> to vector<16x8xbf16>
    %39 = vector.shape_cast %36 : vector<16x8xbf16> to vector<1x16x8xbf16>
    tpu.vector_store %arg5[%c0_41, %c0_42, %c0_43], %39 {strides = array<i32>} : memref<1x128x8xbf16, #tpu.memory_space<vmem>>, vector<1x16x8xbf16>,
    %c24_44 = arith.constant 24 : index
    %c0_45 = arith.constant 0 : index
    %40 = vector.load %arg6[%c24_44, %c0_45] : memref<184x8xf32, #tpu.memory_space<vmem>>, vector<16x8xf32>
    %41 = arith.truncf %40 : vector<16x8xf32> to vector<16x8xbf16>
    %c0_46 = arith.constant 0 : index
    %c16 = arith.constant 16 : index
    %c0_47 = arith.constant 0 : index
    %42 = vector.load %arg5[%c0_46, %c16, %c0_47] : memref<1x128x8xbf16, #tpu.memory_space<vmem>>, vector<1x16x8xbf16>
    %43 = vector.shape_cast %42 : vector<1x16x8xbf16> to vector<16x8xbf16>
    %44 = vector.shape_cast %41 : vector<16x8xbf16> to vector<1x16x8xbf16>
    tpu.vector_store %arg5[%c0_46, %c16, %c0_47], %44 {strides = array<i32>} : memref<1x128x8xbf16, #tpu.memory_space<vmem>>, vector<1x16x8xbf16>,
    %c48_48 = arith.constant 48 : index
    %c0_49 = arith.constant 0 : index
    %45 = vector.load %arg6[%c48_48, %c0_49] : memref<184x8xf32, #tpu.memory_space<vmem>>, vector<16x8xf32>
    %46 = arith.truncf %45 : vector<16x8xf32> to vector<16x8xbf16>
    %c0_50 = arith.constant 0 : index
    %c32 = arith.constant 32 : index
    %c0_51 = arith.constant 0 : index
    %47 = vector.load %arg5[%c0_50, %c32, %c0_51] : memref<1x128x8xbf16, #tpu.memory_space<vmem>>, vector<1x16x8xbf16>
    %48 = vector.shape_cast %47 : vector<1x16x8xbf16> to vector<16x8xbf16>
    %49 = vector.shape_cast %46 : vector<16x8xbf16> to vector<1x16x8xbf16>
    tpu.vector_store %arg5[%c0_50, %c32, %c0_51], %49 {strides = array<i32>} : memref<1x128x8xbf16, #tpu.memory_space<vmem>>, vector<1x16x8xbf16>,
    %c72 = arith.constant 72 : index
    %c0_52 = arith.constant 0 : index
    %50 = vector.load %arg6[%c72, %c0_52] : memref<184x8xf32, #tpu.memory_space<vmem>>, vector<16x8xf32>
    %51 = arith.truncf %50 : vector<16x8xf32> to vector<16x8xbf16>
    %c0_53 = arith.constant 0 : index
    %c48_54 = arith.constant 48 : index
    %c0_55 = arith.constant 0 : index
    %52 = vector.load %arg5[%c0_53, %c48_54, %c0_55] : memref<1x128x8xbf16, #tpu.memory_space<vmem>>, vector<1x16x8xbf16>
    %53 = vector.shape_cast %52 : vector<1x16x8xbf16> to vector<16x8xbf16>
    %54 = vector.shape_cast %51 : vector<16x8xbf16> to vector<1x16x8xbf16>
    tpu.vector_store %arg5[%c0_53, %c48_54, %c0_55], %54 {strides = array<i32>} : memref<1x128x8xbf16, #tpu.memory_space<vmem>>, vector<1x16x8xbf16>,
    %c96 = arith.constant 96 : index
    %c0_56 = arith.constant 0 : index
    %55 = vector.load %arg6[%c96, %c0_56] : memref<184x8xf32, #tpu.memory_space<vmem>>, vector<16x8xf32>
    %56 = arith.truncf %55 : vector<16x8xf32> to vector<16x8xbf16>
    %c0_57 = arith.constant 0 : index
    %c64 = arith.constant 64 : index
    %c0_58 = arith.constant 0 : index
    %57 = vector.load %arg5[%c0_57, %c64, %c0_58] : memref<1x128x8xbf16, #tpu.memory_space<vmem>>, vector<1x16x8xbf16>
    %58 = vector.shape_cast %57 : vector<1x16x8xbf16> to vector<16x8xbf16>
    %59 = vector.shape_cast %56 : vector<16x8xbf16> to vector<1x16x8xbf16>
    tpu.vector_store %arg5[%c0_57, %c64, %c0_58], %59 {strides = array<i32>} : memref<1x128x8xbf16, #tpu.memory_space<vmem>>, vector<1x16x8xbf16>,
    %c120 = arith.constant 120 : index
    %c0_59 = arith.constant 0 : index
    %60 = vector.load %arg6[%c120, %c0_59] : memref<184x8xf32, #tpu.memory_space<vmem>>, vector<16x8xf32>
    %61 = arith.truncf %60 : vector<16x8xf32> to vector<16x8xbf16>
    %c0_60 = arith.constant 0 : index
    %c80 = arith.constant 80 : index
    %c0_61 = arith.constant 0 : index
    %62 = vector.load %arg5[%c0_60, %c80, %c0_61] : memref<1x128x8xbf16, #tpu.memory_space<vmem>>, vector<1x16x8xbf16>
    %63 = vector.shape_cast %62 : vector<1x16x8xbf16> to vector<16x8xbf16>
    %64 = vector.shape_cast %61 : vector<16x8xbf16> to vector<1x16x8xbf16>
    tpu.vector_store %arg5[%c0_60, %c80, %c0_61], %64 {strides = array<i32>} : memref<1x128x8xbf16, #tpu.memory_space<vmem>>, vector<1x16x8xbf16>,
    %c144 = arith.constant 144 : index
    %c0_62 = arith.constant 0 : index
    %65 = vector.load %arg6[%c144, %c0_62] : memref<184x8xf32, #tpu.memory_space<vmem>>, vector<16x8xf32>
    %66 = arith.truncf %65 : vector<16x8xf32> to vector<16x8xbf16>
    %c0_63 = arith.constant 0 : index
    %c96_64 = arith.constant 96 : index
    %c0_65 = arith.constant 0 : index
    %67 = vector.load %arg5[%c0_63, %c96_64, %c0_65] : memref<1x128x8xbf16, #tpu.memory_space<vmem>>, vector<1x16x8xbf16>
    %68 = vector.shape_cast %67 : vector<1x16x8xbf16> to vector<16x8xbf16>
    %69 = vector.shape_cast %66 : vector<16x8xbf16> to vector<1x16x8xbf16>
    tpu.vector_store %arg5[%c0_63, %c96_64, %c0_65], %69 {strides = array<i32>} : memref<1x128x8xbf16, #tpu.memory_space<vmem>>, vector<1x16x8xbf16>,
    %c168 = arith.constant 168 : index
    %c0_66 = arith.constant 0 : index
    %70 = vector.load %arg6[%c168, %c0_66] : memref<184x8xf32, #tpu.memory_space<vmem>>, vector<16x8xf32>
    %71 = arith.truncf %70 : vector<16x8xf32> to vector<16x8xbf16>
    %c0_67 = arith.constant 0 : index
    %c112 = arith.constant 112 : index
    %c0_68 = arith.constant 0 : index
    %72 = vector.load %arg5[%c0_67, %c112, %c0_68] : memref<1x128x8xbf16, #tpu.memory_space<vmem>>, vector<1x16x8xbf16>
    %73 = vector.shape_cast %72 : vector<1x16x8xbf16> to vector<16x8xbf16>
    %74 = vector.shape_cast %71 : vector<16x8xbf16> to vector<1x16x8xbf16>
    tpu.vector_store %arg5[%c0_67, %c112, %c0_68], %74 {strides = array<i32>} : memref<1x128x8xbf16, #tpu.memory_space<vmem>>, vector<1x16x8xbf16>,
    return
  }
  func.func @transform_0(%arg0: i32, %arg1: i32) -> (i32, i32, i32, i32) {
    %c0_i32 = arith.constant 0 : i32
    %c0_i32_0 = arith.constant 0 : i32
    %c0_i32_1 = arith.constant 0 : i32
    return %arg0, %arg1, %c0_i32, %c0_i32_0 : i32, i32, i32, i32
  }
  func.func @transform_1(%arg0: i32, %arg1: i32) -> (i32, i32) {
    %c0_i32 = arith.constant 0 : i32
    %c0_i32_0 = arith.constant 0 : i32
    %c0_i32_1 = arith.constant 0 : i32
    return %c0_i32, %c0_i32_0 : i32, i32
  }
  func.func @transform_2(%arg0: i32, %arg1: i32) -> (i32, i32) {
    %c0_i32 = arith.constant 0 : i32
    %c0_i32_0 = arith.constant 0 : i32
    %c0_i32_1 = arith.constant 0 : i32
    return %c0_i32, %c0_i32_0 : i32, i32
  }
  func.func @transform_3(%arg0: i32, %arg1: i32) -> (i32, i32, i32) {
    %c0_i32 = arith.constant 0 : i32
    %c0_i32_0 = arith.constant 0 : i32
    return %arg0, %arg1, %c0_i32 : i32, i32, i32
  }
}

module attributes {stable_mosaic.version = 11 : i64} {
  func.func @_conv3x3_kernel(%arg0: i32, %arg1: i32, %arg2: memref<1x1x240x8xbf16, #tpu.memory_space<vmem>>, %arg3: memref<72x8xbf16, #tpu.memory_space<vmem>>, %arg4: memref<1x8xf32, #tpu.memory_space<vmem>>, %arg5: memref<1x128x8xbf16, #tpu.memory_space<vmem>>, %arg6: memref<1x32x8xf32, #tpu.memory_space<vmem>>, %arg7: memref<184x8xf32, #tpu.memory_space<vmem>>) attributes {dimension_semantics = [#tpu.dimension_semantics<parallel>, #tpu.dimension_semantics<parallel>], iteration_bounds = array<i64: 2, 2>, scalar_prefetch = 0 : i64, scratch_operands = 1 : i64, tpu.core_type = #tpu.core_type<tc>, window_params = [{transform_indices = @transform_0, window_bounds = array<i64: 1, 1, 240, 8>}, {pipeline_mode = #tpu.pipeline_mode<synchronous>, transform_indices = @transform_1, window_bounds = array<i64: 72, 8>}, {pipeline_mode = #tpu.pipeline_mode<synchronous>, transform_indices = @transform_2, window_bounds = array<i64: 1, 8>}, {transform_indices = @transform_3, window_bounds = array<i64: 1, 128, 8>}, {transform_indices = @transform_4, window_bounds = array<i64: 1, 32, 8>}]} {
    %c0 = arith.constant 0 : index
    %c0_0 = arith.constant 0 : index
    %c0_1 = arith.constant 0 : index
    %c0_2 = arith.constant 0 : index
    %0 = vector.load %arg2[%c0, %c0_0, %c0_1, %c0_2] : memref<1x1x240x8xbf16, #tpu.memory_space<vmem>>, vector<1x1x184x8xbf16>
    %1 = vector.shape_cast %0 : vector<1x1x184x8xbf16> to vector<184x8xbf16>
    %c0_3 = arith.constant 0 : index
    %c0_4 = arith.constant 0 : index
    %c1 = arith.constant 1 : index
    %c0_5 = arith.constant 0 : index
    %2 = vector.load %arg2[%c0_3, %c0_4, %c1, %c0_5] : memref<1x1x240x8xbf16, #tpu.memory_space<vmem>>, vector<1x1x184x8xbf16>
    %3 = vector.shape_cast %2 : vector<1x1x184x8xbf16> to vector<184x8xbf16>
    %c0_6 = arith.constant 0 : index
    %c0_7 = arith.constant 0 : index
    %c2 = arith.constant 2 : index
    %c0_8 = arith.constant 0 : index
    %4 = vector.load %arg2[%c0_6, %c0_7, %c2, %c0_8] : memref<1x1x240x8xbf16, #tpu.memory_space<vmem>>, vector<1x1x184x8xbf16>
    %5 = vector.shape_cast %4 : vector<1x1x184x8xbf16> to vector<184x8xbf16>
    %6 = tpu.concatenate %1, %3, %5 in 1 : vector<184x8xbf16>, vector<184x8xbf16>, vector<184x8xbf16> -> vector<184x24xbf16>
    %c0_9 = arith.constant 0 : index
    %c0_10 = arith.constant 0 : index
    %7 = vector.load %arg3[%c0_9, %c0_10] : memref<72x8xbf16, #tpu.memory_space<vmem>>, vector<24x8xbf16>
    %cst = arith.constant dense<0.000000e+00> : vector<184x8xf32>
    %8 = tpu.matmul %6, %7, %cst {dimension_numbers = #tpu.dot_dimension_numbers<[1], [0], [0], [1], [0, 0, 1, 1], [], []>} : vector<184x24xbf16>, vector<24x8xbf16>, vector<184x8xf32> -> vector<184x8xf32>
    %c0_11 = arith.constant 0 : index
    %c0_12 = arith.constant 0 : index
    %c24 = arith.constant 24 : index
    %c0_13 = arith.constant 0 : index
    %9 = vector.load %arg2[%c0_11, %c0_12, %c24, %c0_13] : memref<1x1x240x8xbf16, #tpu.memory_space<vmem>>, vector<1x1x184x8xbf16>
    %10 = vector.shape_cast %9 : vector<1x1x184x8xbf16> to vector<184x8xbf16>
    %c0_14 = arith.constant 0 : index
    %c0_15 = arith.constant 0 : index
    %c25 = arith.constant 25 : index
    %c0_16 = arith.constant 0 : index
    %11 = vector.load %arg2[%c0_14, %c0_15, %c25, %c0_16] : memref<1x1x240x8xbf16, #tpu.memory_space<vmem>>, vector<1x1x184x8xbf16>
    %12 = vector.shape_cast %11 : vector<1x1x184x8xbf16> to vector<184x8xbf16>
    %c0_17 = arith.constant 0 : index
    %c0_18 = arith.constant 0 : index
    %c26 = arith.constant 26 : index
    %c0_19 = arith.constant 0 : index
    %13 = vector.load %arg2[%c0_17, %c0_18, %c26, %c0_19] : memref<1x1x240x8xbf16, #tpu.memory_space<vmem>>, vector<1x1x184x8xbf16>
    %14 = vector.shape_cast %13 : vector<1x1x184x8xbf16> to vector<184x8xbf16>
    %15 = tpu.concatenate %10, %12, %14 in 1 : vector<184x8xbf16>, vector<184x8xbf16>, vector<184x8xbf16> -> vector<184x24xbf16>
    %c24_20 = arith.constant 24 : index
    %c0_21 = arith.constant 0 : index
    %16 = vector.load %arg3[%c24_20, %c0_21] : memref<72x8xbf16, #tpu.memory_space<vmem>>, vector<24x8xbf16>
    %cst_22 = arith.constant dense<0.000000e+00> : vector<184x8xf32>
    %17 = tpu.matmul %15, %16, %cst_22 {dimension_numbers = #tpu.dot_dimension_numbers<[1], [0], [0], [1], [0, 0, 1, 1], [], []>} : vector<184x24xbf16>, vector<24x8xbf16>, vector<184x8xf32> -> vector<184x8xf32>
    %18 = arith.addf %8, %17 : vector<184x8xf32>
    %c0_23 = arith.constant 0 : index
    %c0_24 = arith.constant 0 : index
    %c48 = arith.constant 48 : index
    %c0_25 = arith.constant 0 : index
    %19 = vector.load %arg2[%c0_23, %c0_24, %c48, %c0_25] : memref<1x1x240x8xbf16, #tpu.memory_space<vmem>>, vector<1x1x184x8xbf16>
    %20 = vector.shape_cast %19 : vector<1x1x184x8xbf16> to vector<184x8xbf16>
    %c0_26 = arith.constant 0 : index
    %c0_27 = arith.constant 0 : index
    %c49 = arith.constant 49 : index
    %c0_28 = arith.constant 0 : index
    %21 = vector.load %arg2[%c0_26, %c0_27, %c49, %c0_28] : memref<1x1x240x8xbf16, #tpu.memory_space<vmem>>, vector<1x1x184x8xbf16>
    %22 = vector.shape_cast %21 : vector<1x1x184x8xbf16> to vector<184x8xbf16>
    %c0_29 = arith.constant 0 : index
    %c0_30 = arith.constant 0 : index
    %c50 = arith.constant 50 : index
    %c0_31 = arith.constant 0 : index
    %23 = vector.load %arg2[%c0_29, %c0_30, %c50, %c0_31] : memref<1x1x240x8xbf16, #tpu.memory_space<vmem>>, vector<1x1x184x8xbf16>
    %24 = vector.shape_cast %23 : vector<1x1x184x8xbf16> to vector<184x8xbf16>
    %25 = tpu.concatenate %20, %22, %24 in 1 : vector<184x8xbf16>, vector<184x8xbf16>, vector<184x8xbf16> -> vector<184x24xbf16>
    %c48_32 = arith.constant 48 : index
    %c0_33 = arith.constant 0 : index
    %26 = vector.load %arg3[%c48_32, %c0_33] : memref<72x8xbf16, #tpu.memory_space<vmem>>, vector<24x8xbf16>
    %cst_34 = arith.constant dense<0.000000e+00> : vector<184x8xf32>
    %27 = tpu.matmul %25, %26, %cst_34 {dimension_numbers = #tpu.dot_dimension_numbers<[1], [0], [0], [1], [0, 0, 1, 1], [], []>} : vector<184x24xbf16>, vector<24x8xbf16>, vector<184x8xf32> -> vector<184x8xf32>
    %28 = arith.addf %18, %27 : vector<184x8xf32>
    %c0_35 = arith.constant 0 : index
    %c0_36 = arith.constant 0 : index
    %29 = vector.load %arg4[%c0_35, %c0_36] : memref<1x8xf32, #tpu.memory_space<vmem>>, vector<1x8xf32>
    %30 = vector.broadcast %29 : vector<1x8xf32> to vector<184x8xf32>
    %31 = arith.addf %28, %30 : vector<184x8xf32>
    %cst_37 = arith.constant 0.000000e+00 : f32
    %32 = vector.broadcast %cst_37 : f32 to vector<184x8xf32>
    %33 = arith.maximumf %31, %32 : vector<184x8xf32>
    %c0_38 = arith.constant 0 : index
    %c0_39 = arith.constant 0 : index
    %34 = vector.load %arg7[%c0_38, %c0_39] : memref<184x8xf32, #tpu.memory_space<vmem>>, vector<184x8xf32>
    tpu.vector_store %arg7[%c0_38, %c0_39], %33 {strides = array<i32>} : memref<184x8xf32, #tpu.memory_space<vmem>>, vector<184x8xf32>,
    %c0_40 = arith.constant 0 : index
    %c0_41 = arith.constant 0 : index
    %35 = vector.load %arg7[%c0_40, %c0_41] : memref<184x8xf32, #tpu.memory_space<vmem>>, vector<16x8xf32>
    %36 = arith.truncf %35 : vector<16x8xf32> to vector<16x8xbf16>
    %c0_42 = arith.constant 0 : index
    %c0_43 = arith.constant 0 : index
    %c0_44 = arith.constant 0 : index
    %37 = vector.load %arg5[%c0_42, %c0_43, %c0_44] : memref<1x128x8xbf16, #tpu.memory_space<vmem>>, vector<1x16x8xbf16>
    %38 = vector.shape_cast %37 : vector<1x16x8xbf16> to vector<16x8xbf16>
    %39 = vector.shape_cast %36 : vector<16x8xbf16> to vector<1x16x8xbf16>
    tpu.vector_store %arg5[%c0_42, %c0_43, %c0_44], %39 {strides = array<i32>} : memref<1x128x8xbf16, #tpu.memory_space<vmem>>, vector<1x16x8xbf16>,
    %c24_45 = arith.constant 24 : index
    %c0_46 = arith.constant 0 : index
    %40 = vector.load %arg7[%c24_45, %c0_46] : memref<184x8xf32, #tpu.memory_space<vmem>>, vector<16x8xf32>
    %41 = arith.truncf %40 : vector<16x8xf32> to vector<16x8xbf16>
    %c0_47 = arith.constant 0 : index
    %c16 = arith.constant 16 : index
    %c0_48 = arith.constant 0 : index
    %42 = vector.load %arg5[%c0_47, %c16, %c0_48] : memref<1x128x8xbf16, #tpu.memory_space<vmem>>, vector<1x16x8xbf16>
    %43 = vector.shape_cast %42 : vector<1x16x8xbf16> to vector<16x8xbf16>
    %44 = vector.shape_cast %41 : vector<16x8xbf16> to vector<1x16x8xbf16>
    tpu.vector_store %arg5[%c0_47, %c16, %c0_48], %44 {strides = array<i32>} : memref<1x128x8xbf16, #tpu.memory_space<vmem>>, vector<1x16x8xbf16>,
    %c48_49 = arith.constant 48 : index
    %c0_50 = arith.constant 0 : index
    %45 = vector.load %arg7[%c48_49, %c0_50] : memref<184x8xf32, #tpu.memory_space<vmem>>, vector<16x8xf32>
    %46 = arith.truncf %45 : vector<16x8xf32> to vector<16x8xbf16>
    %c0_51 = arith.constant 0 : index
    %c32 = arith.constant 32 : index
    %c0_52 = arith.constant 0 : index
    %47 = vector.load %arg5[%c0_51, %c32, %c0_52] : memref<1x128x8xbf16, #tpu.memory_space<vmem>>, vector<1x16x8xbf16>
    %48 = vector.shape_cast %47 : vector<1x16x8xbf16> to vector<16x8xbf16>
    %49 = vector.shape_cast %46 : vector<16x8xbf16> to vector<1x16x8xbf16>
    tpu.vector_store %arg5[%c0_51, %c32, %c0_52], %49 {strides = array<i32>} : memref<1x128x8xbf16, #tpu.memory_space<vmem>>, vector<1x16x8xbf16>,
    %c72 = arith.constant 72 : index
    %c0_53 = arith.constant 0 : index
    %50 = vector.load %arg7[%c72, %c0_53] : memref<184x8xf32, #tpu.memory_space<vmem>>, vector<16x8xf32>
    %51 = arith.truncf %50 : vector<16x8xf32> to vector<16x8xbf16>
    %c0_54 = arith.constant 0 : index
    %c48_55 = arith.constant 48 : index
    %c0_56 = arith.constant 0 : index
    %52 = vector.load %arg5[%c0_54, %c48_55, %c0_56] : memref<1x128x8xbf16, #tpu.memory_space<vmem>>, vector<1x16x8xbf16>
    %53 = vector.shape_cast %52 : vector<1x16x8xbf16> to vector<16x8xbf16>
    %54 = vector.shape_cast %51 : vector<16x8xbf16> to vector<1x16x8xbf16>
    tpu.vector_store %arg5[%c0_54, %c48_55, %c0_56], %54 {strides = array<i32>} : memref<1x128x8xbf16, #tpu.memory_space<vmem>>, vector<1x16x8xbf16>,
    %c96 = arith.constant 96 : index
    %c0_57 = arith.constant 0 : index
    %55 = vector.load %arg7[%c96, %c0_57] : memref<184x8xf32, #tpu.memory_space<vmem>>, vector<16x8xf32>
    %56 = arith.truncf %55 : vector<16x8xf32> to vector<16x8xbf16>
    %c0_58 = arith.constant 0 : index
    %c64 = arith.constant 64 : index
    %c0_59 = arith.constant 0 : index
    %57 = vector.load %arg5[%c0_58, %c64, %c0_59] : memref<1x128x8xbf16, #tpu.memory_space<vmem>>, vector<1x16x8xbf16>
    %58 = vector.shape_cast %57 : vector<1x16x8xbf16> to vector<16x8xbf16>
    %59 = vector.shape_cast %56 : vector<16x8xbf16> to vector<1x16x8xbf16>
    tpu.vector_store %arg5[%c0_58, %c64, %c0_59], %59 {strides = array<i32>} : memref<1x128x8xbf16, #tpu.memory_space<vmem>>, vector<1x16x8xbf16>,
    %c120 = arith.constant 120 : index
    %c0_60 = arith.constant 0 : index
    %60 = vector.load %arg7[%c120, %c0_60] : memref<184x8xf32, #tpu.memory_space<vmem>>, vector<16x8xf32>
    %61 = arith.truncf %60 : vector<16x8xf32> to vector<16x8xbf16>
    %c0_61 = arith.constant 0 : index
    %c80 = arith.constant 80 : index
    %c0_62 = arith.constant 0 : index
    %62 = vector.load %arg5[%c0_61, %c80, %c0_62] : memref<1x128x8xbf16, #tpu.memory_space<vmem>>, vector<1x16x8xbf16>
    %63 = vector.shape_cast %62 : vector<1x16x8xbf16> to vector<16x8xbf16>
    %64 = vector.shape_cast %61 : vector<16x8xbf16> to vector<1x16x8xbf16>
    tpu.vector_store %arg5[%c0_61, %c80, %c0_62], %64 {strides = array<i32>} : memref<1x128x8xbf16, #tpu.memory_space<vmem>>, vector<1x16x8xbf16>,
    %c144 = arith.constant 144 : index
    %c0_63 = arith.constant 0 : index
    %65 = vector.load %arg7[%c144, %c0_63] : memref<184x8xf32, #tpu.memory_space<vmem>>, vector<16x8xf32>
    %66 = arith.truncf %65 : vector<16x8xf32> to vector<16x8xbf16>
    %c0_64 = arith.constant 0 : index
    %c96_65 = arith.constant 96 : index
    %c0_66 = arith.constant 0 : index
    %67 = vector.load %arg5[%c0_64, %c96_65, %c0_66] : memref<1x128x8xbf16, #tpu.memory_space<vmem>>, vector<1x16x8xbf16>
    %68 = vector.shape_cast %67 : vector<1x16x8xbf16> to vector<16x8xbf16>
    %69 = vector.shape_cast %66 : vector<16x8xbf16> to vector<1x16x8xbf16>
    tpu.vector_store %arg5[%c0_64, %c96_65, %c0_66], %69 {strides = array<i32>} : memref<1x128x8xbf16, #tpu.memory_space<vmem>>, vector<1x16x8xbf16>,
    %c168 = arith.constant 168 : index
    %c0_67 = arith.constant 0 : index
    %70 = vector.load %arg7[%c168, %c0_67] : memref<184x8xf32, #tpu.memory_space<vmem>>, vector<16x8xf32>
    %71 = arith.truncf %70 : vector<16x8xf32> to vector<16x8xbf16>
    %c0_68 = arith.constant 0 : index
    %c112 = arith.constant 112 : index
    %c0_69 = arith.constant 0 : index
    %72 = vector.load %arg5[%c0_68, %c112, %c0_69] : memref<1x128x8xbf16, #tpu.memory_space<vmem>>, vector<1x16x8xbf16>
    %73 = vector.shape_cast %72 : vector<1x16x8xbf16> to vector<16x8xbf16>
    %74 = vector.shape_cast %71 : vector<16x8xbf16> to vector<1x16x8xbf16>
    tpu.vector_store %arg5[%c0_68, %c112, %c0_69], %74 {strides = array<i32>} : memref<1x128x8xbf16, #tpu.memory_space<vmem>>, vector<1x16x8xbf16>,
    %c0_70 = arith.constant 0 : index
    %c0_71 = arith.constant 0 : index
    %75 = vector.load %arg7[%c0_70, %c0_71] : memref<184x8xf32, #tpu.memory_space<vmem>>, vector<16x8xf32>
    %c24_72 = arith.constant 24 : index
    %c0_73 = arith.constant 0 : index
    %76 = vector.load %arg7[%c24_72, %c0_73] : memref<184x8xf32, #tpu.memory_space<vmem>>, vector<16x8xf32>
    %77 = arith.maximumf %75, %76 : vector<16x8xf32>
    %c24_74 = arith.constant 24 : index
    %c0_75 = arith.constant 0 : index
    %78 = vector.load %arg7[%c24_74, %c0_75] : memref<184x8xf32, #tpu.memory_space<vmem>>, vector<16x8xf32>
    tpu.vector_store %arg7[%c24_74, %c0_75], %77 {strides = array<i32>} : memref<184x8xf32, #tpu.memory_space<vmem>>, vector<16x8xf32>,
    %c24_76 = arith.constant 24 : index
    %c0_77 = arith.constant 0 : index
    %79 = tpu.strided_load %arg7[%c24_76, %c0_77] {strides = array<i32: 2, 1>} : memref<184x8xf32, #tpu.memory_space<vmem>>, vector<8x8xf32>
    %c25_78 = arith.constant 25 : index
    %c0_79 = arith.constant 0 : index
    %80 = tpu.strided_load %arg7[%c25_78, %c0_79] {strides = array<i32: 2, 1>} : memref<184x8xf32, #tpu.memory_space<vmem>>, vector<8x8xf32>
    %81 = arith.maximumf %79, %80 : vector<8x8xf32>
    %c0_80 = arith.constant 0 : index
    %c0_81 = arith.constant 0 : index
    %c0_82 = arith.constant 0 : index
    %82 = vector.load %arg6[%c0_80, %c0_81, %c0_82] : memref<1x32x8xf32, #tpu.memory_space<vmem>>, vector<1x8x8xf32>
    %83 = vector.shape_cast %82 : vector<1x8x8xf32> to vector<8x8xf32>
    %84 = vector.shape_cast %81 : vector<8x8xf32> to vector<1x8x8xf32>
    tpu.vector_store %arg6[%c0_80, %c0_81, %c0_82], %84 {strides = array<i32>} : memref<1x32x8xf32, #tpu.memory_space<vmem>>, vector<1x8x8xf32>,
    %c48_83 = arith.constant 48 : index
    %c0_84 = arith.constant 0 : index
    %85 = vector.load %arg7[%c48_83, %c0_84] : memref<184x8xf32, #tpu.memory_space<vmem>>, vector<16x8xf32>
    %c72_85 = arith.constant 72 : index
    %c0_86 = arith.constant 0 : index
    %86 = vector.load %arg7[%c72_85, %c0_86] : memref<184x8xf32, #tpu.memory_space<vmem>>, vector<16x8xf32>
    %87 = arith.maximumf %85, %86 : vector<16x8xf32>
    %c72_87 = arith.constant 72 : index
    %c0_88 = arith.constant 0 : index
    %88 = vector.load %arg7[%c72_87, %c0_88] : memref<184x8xf32, #tpu.memory_space<vmem>>, vector<16x8xf32>
    tpu.vector_store %arg7[%c72_87, %c0_88], %87 {strides = array<i32>} : memref<184x8xf32, #tpu.memory_space<vmem>>, vector<16x8xf32>,
    %c72_89 = arith.constant 72 : index
    %c0_90 = arith.constant 0 : index
    %89 = tpu.strided_load %arg7[%c72_89, %c0_90] {strides = array<i32: 2, 1>} : memref<184x8xf32, #tpu.memory_space<vmem>>, vector<8x8xf32>
    %c73 = arith.constant 73 : index
    %c0_91 = arith.constant 0 : index
    %90 = tpu.strided_load %arg7[%c73, %c0_91] {strides = array<i32: 2, 1>} : memref<184x8xf32, #tpu.memory_space<vmem>>, vector<8x8xf32>
    %91 = arith.maximumf %89, %90 : vector<8x8xf32>
    %c0_92 = arith.constant 0 : index
    %c8 = arith.constant 8 : index
    %c0_93 = arith.constant 0 : index
    %92 = vector.load %arg6[%c0_92, %c8, %c0_93] : memref<1x32x8xf32, #tpu.memory_space<vmem>>, vector<1x8x8xf32>
    %93 = vector.shape_cast %92 : vector<1x8x8xf32> to vector<8x8xf32>
    %94 = vector.shape_cast %91 : vector<8x8xf32> to vector<1x8x8xf32>
    tpu.vector_store %arg6[%c0_92, %c8, %c0_93], %94 {strides = array<i32>} : memref<1x32x8xf32, #tpu.memory_space<vmem>>, vector<1x8x8xf32>,
    %c96_94 = arith.constant 96 : index
    %c0_95 = arith.constant 0 : index
    %95 = vector.load %arg7[%c96_94, %c0_95] : memref<184x8xf32, #tpu.memory_space<vmem>>, vector<16x8xf32>
    %c120_96 = arith.constant 120 : index
    %c0_97 = arith.constant 0 : index
    %96 = vector.load %arg7[%c120_96, %c0_97] : memref<184x8xf32, #tpu.memory_space<vmem>>, vector<16x8xf32>
    %97 = arith.maximumf %95, %96 : vector<16x8xf32>
    %c120_98 = arith.constant 120 : index
    %c0_99 = arith.constant 0 : index
    %98 = vector.load %arg7[%c120_98, %c0_99] : memref<184x8xf32, #tpu.memory_space<vmem>>, vector<16x8xf32>
    tpu.vector_store %arg7[%c120_98, %c0_99], %97 {strides = array<i32>} : memref<184x8xf32, #tpu.memory_space<vmem>>, vector<16x8xf32>,
    %c120_100 = arith.constant 120 : index
    %c0_101 = arith.constant 0 : index
    %99 = tpu.strided_load %arg7[%c120_100, %c0_101] {strides = array<i32: 2, 1>} : memref<184x8xf32, #tpu.memory_space<vmem>>, vector<8x8xf32>
    %c121 = arith.constant 121 : index
    %c0_102 = arith.constant 0 : index
    %100 = tpu.strided_load %arg7[%c121, %c0_102] {strides = array<i32: 2, 1>} : memref<184x8xf32, #tpu.memory_space<vmem>>, vector<8x8xf32>
    %101 = arith.maximumf %99, %100 : vector<8x8xf32>
    %c0_103 = arith.constant 0 : index
    %c16_104 = arith.constant 16 : index
    %c0_105 = arith.constant 0 : index
    %102 = vector.load %arg6[%c0_103, %c16_104, %c0_105] : memref<1x32x8xf32, #tpu.memory_space<vmem>>, vector<1x8x8xf32>
    %103 = vector.shape_cast %102 : vector<1x8x8xf32> to vector<8x8xf32>
    %104 = vector.shape_cast %101 : vector<8x8xf32> to vector<1x8x8xf32>
    tpu.vector_store %arg6[%c0_103, %c16_104, %c0_105], %104 {strides = array<i32>} : memref<1x32x8xf32, #tpu.memory_space<vmem>>, vector<1x8x8xf32>,
    %c144_106 = arith.constant 144 : index
    %c0_107 = arith.constant 0 : index
    %105 = vector.load %arg7[%c144_106, %c0_107] : memref<184x8xf32, #tpu.memory_space<vmem>>, vector<16x8xf32>
    %c168_108 = arith.constant 168 : index
    %c0_109 = arith.constant 0 : index
    %106 = vector.load %arg7[%c168_108, %c0_109] : memref<184x8xf32, #tpu.memory_space<vmem>>, vector<16x8xf32>
    %107 = arith.maximumf %105, %106 : vector<16x8xf32>
    %c168_110 = arith.constant 168 : index
    %c0_111 = arith.constant 0 : index
    %108 = vector.load %arg7[%c168_110, %c0_111] : memref<184x8xf32, #tpu.memory_space<vmem>>, vector<16x8xf32>
    tpu.vector_store %arg7[%c168_110, %c0_111], %107 {strides = array<i32>} : memref<184x8xf32, #tpu.memory_space<vmem>>, vector<16x8xf32>,
    %c168_112 = arith.constant 168 : index
    %c0_113 = arith.constant 0 : index
    %109 = tpu.strided_load %arg7[%c168_112, %c0_113] {strides = array<i32: 2, 1>} : memref<184x8xf32, #tpu.memory_space<vmem>>, vector<8x8xf32>
    %c169 = arith.constant 169 : index
    %c0_114 = arith.constant 0 : index
    %110 = tpu.strided_load %arg7[%c169, %c0_114] {strides = array<i32: 2, 1>} : memref<184x8xf32, #tpu.memory_space<vmem>>, vector<8x8xf32>
    %111 = arith.maximumf %109, %110 : vector<8x8xf32>
    %c0_115 = arith.constant 0 : index
    %c24_116 = arith.constant 24 : index
    %c0_117 = arith.constant 0 : index
    %112 = vector.load %arg6[%c0_115, %c24_116, %c0_117] : memref<1x32x8xf32, #tpu.memory_space<vmem>>, vector<1x8x8xf32>
    %113 = vector.shape_cast %112 : vector<1x8x8xf32> to vector<8x8xf32>
    %114 = vector.shape_cast %111 : vector<8x8xf32> to vector<1x8x8xf32>
    tpu.vector_store %arg6[%c0_115, %c24_116, %c0_117], %114 {strides = array<i32>} : memref<1x32x8xf32, #tpu.memory_space<vmem>>, vector<1x8x8xf32>,
    return
  }
  func.func @transform_0(%arg0: i32, %arg1: i32) -> (i32, i32, i32, i32) {
    %c0_i32 = arith.constant 0 : i32
    %c0_i32_0 = arith.constant 0 : i32
    %c0_i32_1 = arith.constant 0 : i32
    return %arg0, %arg1, %c0_i32, %c0_i32_0 : i32, i32, i32, i32
  }
  func.func @transform_1(%arg0: i32, %arg1: i32) -> (i32, i32) {
    %c0_i32 = arith.constant 0 : i32
    %c0_i32_0 = arith.constant 0 : i32
    %c0_i32_1 = arith.constant 0 : i32
    return %c0_i32, %c0_i32_0 : i32, i32
  }
  func.func @transform_2(%arg0: i32, %arg1: i32) -> (i32, i32) {
    %c0_i32 = arith.constant 0 : i32
    %c0_i32_0 = arith.constant 0 : i32
    %c0_i32_1 = arith.constant 0 : i32
    return %c0_i32, %c0_i32_0 : i32, i32
  }
  func.func @transform_3(%arg0: i32, %arg1: i32) -> (i32, i32, i32) {
    %c0_i32 = arith.constant 0 : i32
    %c0_i32_0 = arith.constant 0 : i32
    return %arg0, %arg1, %c0_i32 : i32, i32, i32
  }
  func.func @transform_4(%arg0: i32, %arg1: i32) -> (i32, i32, i32) {
    %c0_i32 = arith.constant 0 : i32
    %c0_i32_0 = arith.constant 0 : i32
    return %arg0, %arg1, %c0_i32 : i32, i32, i32
  }
}

module attributes {stable_mosaic.version = 11 : i64} {
  func.func @_attn_chain_kernel(%arg0: i32, %arg1: memref<128x4xbf16, #tpu.memory_space<vmem>>, %arg2: memref<128x8xbf16, #tpu.memory_space<vmem>>, %arg3: memref<4x64xbf16, #tpu.memory_space<vmem>>, %arg4: memref<1x64xf32, #tpu.memory_space<vmem>>, %arg5: memref<64x16xbf16, #tpu.memory_space<vmem>>, %arg6: memref<1x16xf32, #tpu.memory_space<vmem>>, %arg7: memref<128x16xbf16, #tpu.memory_space<vmem>>) attributes {dimension_semantics = [#tpu.dimension_semantics<parallel>], iteration_bounds = array<i64: 4>, scalar_prefetch = 0 : i64, scratch_operands = 0 : i64, tpu.core_type = #tpu.core_type<tc>, window_params = [{transform_indices = @transform_0, window_bounds = array<i64: 128, 4>}, {transform_indices = @transform_1, window_bounds = array<i64: 128, 8>}, {pipeline_mode = #tpu.pipeline_mode<synchronous>, transform_indices = @transform_2, window_bounds = array<i64: 4, 64>}, {pipeline_mode = #tpu.pipeline_mode<synchronous>, transform_indices = @transform_3, window_bounds = array<i64: 1, 64>}, {pipeline_mode = #tpu.pipeline_mode<synchronous>, transform_indices = @transform_4, window_bounds = array<i64: 64, 16>}, {pipeline_mode = #tpu.pipeline_mode<synchronous>, transform_indices = @transform_5, window_bounds = array<i64: 1, 16>}, {transform_indices = @transform_6, window_bounds = array<i64: 128, 16>}]} {
    %c0 = arith.constant 0 : index
    %c0_0 = arith.constant 0 : index
    %0 = vector.load %arg1[%c0, %c0_0] : memref<128x4xbf16, #tpu.memory_space<vmem>>, vector<128x4xbf16>
    %c0_1 = arith.constant 0 : index
    %c0_2 = arith.constant 0 : index
    %1 = vector.load %arg3[%c0_1, %c0_2] : memref<4x64xbf16, #tpu.memory_space<vmem>>, vector<4x64xbf16>
    %cst = arith.constant dense<0.000000e+00> : vector<128x64xf32>
    %2 = tpu.matmul %0, %1, %cst {dimension_numbers = #tpu.dot_dimension_numbers<[1], [0], [0], [1], [0, 0, 1, 1], [], []>} : vector<128x4xbf16>, vector<4x64xbf16>, vector<128x64xf32> -> vector<128x64xf32>
    %c0_3 = arith.constant 0 : index
    %c0_4 = arith.constant 0 : index
    %3 = vector.load %arg4[%c0_3, %c0_4] : memref<1x64xf32, #tpu.memory_space<vmem>>, vector<1x64xf32>
    %4 = vector.broadcast %3 : vector<1x64xf32> to vector<128x64xf32>
    %5 = arith.addf %2, %4 : vector<128x64xf32>
    %cst_5 = arith.constant 0.000000e+00 : f32
    %6 = vector.broadcast %cst_5 : f32 to vector<128x64xf32>
    %7 = arith.maximumf %5, %6 : vector<128x64xf32>
    %8 = arith.truncf %7 : vector<128x64xf32> to vector<128x64xbf16>
    %c0_6 = arith.constant 0 : index
    %c0_7 = arith.constant 0 : index
    %9 = vector.load %arg5[%c0_6, %c0_7] : memref<64x16xbf16, #tpu.memory_space<vmem>>, vector<64x16xbf16>
    %cst_8 = arith.constant dense<0.000000e+00> : vector<128x16xf32>
    %10 = tpu.matmul %8, %9, %cst_8 {dimension_numbers = #tpu.dot_dimension_numbers<[1], [0], [0], [1], [0, 0, 1, 1], [], []>} : vector<128x64xbf16>, vector<64x16xbf16>, vector<128x16xf32> -> vector<128x16xf32>
    %c0_9 = arith.constant 0 : index
    %c0_10 = arith.constant 0 : index
    %11 = vector.load %arg6[%c0_9, %c0_10] : memref<1x16xf32, #tpu.memory_space<vmem>>, vector<1x16xf32>
    %12 = vector.broadcast %11 : vector<1x16xf32> to vector<128x16xf32>
    %13 = arith.addf %10, %12 : vector<128x16xf32>
    %14 = arith.negf %13 : vector<128x16xf32>
    %15 = math.exp %14 : vector<128x16xf32>
    %cst_11 = arith.constant 1.000000e+00 : f32
    %16 = vector.broadcast %cst_11 : f32 to vector<128x16xf32>
    %17 = arith.addf %16, %15 : vector<128x16xf32>
    %18 = arith.divf %16, %17 : vector<128x16xf32>
    %c0_12 = arith.constant 0 : index
    %c0_13 = arith.constant 0 : index
    %19 = vector.load %arg2[%c0_12, %c0_13] : memref<128x8xbf16, #tpu.memory_space<vmem>>, vector<128x8xbf16>
    %20 = arith.extf %19 : vector<128x8xbf16> to vector<128x8xf32>
    %21 = tpu.concatenate %20, %20 in 1 : vector<128x8xf32>, vector<128x8xf32> -> vector<128x16xf32>
    %22 = arith.mulf %21, %18 : vector<128x16xf32>
    %23 = arith.truncf %22 : vector<128x16xf32> to vector<128x16xbf16>
    %c0_14 = arith.constant 0 : index
    %c0_15 = arith.constant 0 : index
    %24 = vector.load %arg7[%c0_14, %c0_15] : memref<128x16xbf16, #tpu.memory_space<vmem>>, vector<128x16xbf16>
    tpu.vector_store %arg7[%c0_14, %c0_15], %23 {strides = array<i32>} : memref<128x16xbf16, #tpu.memory_space<vmem>>, vector<128x16xbf16>,
    return
  }
  func.func @transform_0(%arg0: i32) -> (i32, i32) {
    %c0_i32 = arith.constant 0 : i32
    %c0_i32_0 = arith.constant 0 : i32
    return %arg0, %c0_i32 : i32, i32
  }
  func.func @transform_1(%arg0: i32) -> (i32, i32) {
    %c0_i32 = arith.constant 0 : i32
    %c0_i32_0 = arith.constant 0 : i32
    return %arg0, %c0_i32 : i32, i32
  }
  func.func @transform_2(%arg0: i32) -> (i32, i32) {
    %c0_i32 = arith.constant 0 : i32
    %c0_i32_0 = arith.constant 0 : i32
    %c0_i32_1 = arith.constant 0 : i32
    return %c0_i32, %c0_i32_0 : i32, i32
  }
  func.func @transform_3(%arg0: i32) -> (i32, i32) {
    %c0_i32 = arith.constant 0 : i32
    %c0_i32_0 = arith.constant 0 : i32
    %c0_i32_1 = arith.constant 0 : i32
    return %c0_i32, %c0_i32_0 : i32, i32
  }
  func.func @transform_4(%arg0: i32) -> (i32, i32) {
    %c0_i32 = arith.constant 0 : i32
    %c0_i32_0 = arith.constant 0 : i32
    %c0_i32_1 = arith.constant 0 : i32
    return %c0_i32, %c0_i32_0 : i32, i32
  }
  func.func @transform_5(%arg0: i32) -> (i32, i32) {
    %c0_i32 = arith.constant 0 : i32
    %c0_i32_0 = arith.constant 0 : i32
    %c0_i32_1 = arith.constant 0 : i32
    return %c0_i32, %c0_i32_0 : i32, i32
  }
  func.func @transform_6(%arg0: i32) -> (i32, i32) {
    %c0_i32 = arith.constant 0 : i32
    %c0_i32_0 = arith.constant 0 : i32
    return %arg0, %c0_i32 : i32, i32
  }
}

module attributes {stable_mosaic.version = 11 : i64} {
  func.func @_conv3x3_kernel(%arg0: i32, %arg1: i32, %arg2: memref<1x1x240x16xbf16, #tpu.memory_space<vmem>>, %arg3: memref<144x16xbf16, #tpu.memory_space<vmem>>, %arg4: memref<1x16xf32, #tpu.memory_space<vmem>>, %arg5: memref<1x32x16xf32, #tpu.memory_space<vmem>>, %arg6: memref<184x16xf32, #tpu.memory_space<vmem>>) attributes {dimension_semantics = [#tpu.dimension_semantics<parallel>, #tpu.dimension_semantics<parallel>], iteration_bounds = array<i64: 2, 2>, scalar_prefetch = 0 : i64, scratch_operands = 1 : i64, tpu.core_type = #tpu.core_type<tc>, window_params = [{transform_indices = @transform_0, window_bounds = array<i64: 1, 1, 240, 16>}, {pipeline_mode = #tpu.pipeline_mode<synchronous>, transform_indices = @transform_1, window_bounds = array<i64: 144, 16>}, {pipeline_mode = #tpu.pipeline_mode<synchronous>, transform_indices = @transform_2, window_bounds = array<i64: 1, 16>}, {transform_indices = @transform_3, window_bounds = array<i64: 1, 32, 16>}]} {
    %c0 = arith.constant 0 : index
    %c0_0 = arith.constant 0 : index
    %c0_1 = arith.constant 0 : index
    %c0_2 = arith.constant 0 : index
    %0 = vector.load %arg2[%c0, %c0_0, %c0_1, %c0_2] : memref<1x1x240x16xbf16, #tpu.memory_space<vmem>>, vector<1x1x184x16xbf16>
    %1 = vector.shape_cast %0 : vector<1x1x184x16xbf16> to vector<184x16xbf16>
    %c0_3 = arith.constant 0 : index
    %c0_4 = arith.constant 0 : index
    %c1 = arith.constant 1 : index
    %c0_5 = arith.constant 0 : index
    %2 = vector.load %arg2[%c0_3, %c0_4, %c1, %c0_5] : memref<1x1x240x16xbf16, #tpu.memory_space<vmem>>, vector<1x1x184x16xbf16>
    %3 = vector.shape_cast %2 : vector<1x1x184x16xbf16> to vector<184x16xbf16>
    %c0_6 = arith.constant 0 : index
    %c0_7 = arith.constant 0 : index
    %c2 = arith.constant 2 : index
    %c0_8 = arith.constant 0 : index
    %4 = vector.load %arg2[%c0_6, %c0_7, %c2, %c0_8] : memref<1x1x240x16xbf16, #tpu.memory_space<vmem>>, vector<1x1x184x16xbf16>
    %5 = vector.shape_cast %4 : vector<1x1x184x16xbf16> to vector<184x16xbf16>
    %6 = tpu.concatenate %1, %3, %5 in 1 : vector<184x16xbf16>, vector<184x16xbf16>, vector<184x16xbf16> -> vector<184x48xbf16>
    %c0_9 = arith.constant 0 : index
    %c0_10 = arith.constant 0 : index
    %7 = vector.load %arg3[%c0_9, %c0_10] : memref<144x16xbf16, #tpu.memory_space<vmem>>, vector<48x16xbf16>
    %cst = arith.constant dense<0.000000e+00> : vector<184x16xf32>
    %8 = tpu.matmul %6, %7, %cst {dimension_numbers = #tpu.dot_dimension_numbers<[1], [0], [0], [1], [0, 0, 1, 1], [], []>} : vector<184x48xbf16>, vector<48x16xbf16>, vector<184x16xf32> -> vector<184x16xf32>
    %c0_11 = arith.constant 0 : index
    %c0_12 = arith.constant 0 : index
    %c24 = arith.constant 24 : index
    %c0_13 = arith.constant 0 : index
    %9 = vector.load %arg2[%c0_11, %c0_12, %c24, %c0_13] : memref<1x1x240x16xbf16, #tpu.memory_space<vmem>>, vector<1x1x184x16xbf16>
    %10 = vector.shape_cast %9 : vector<1x1x184x16xbf16> to vector<184x16xbf16>
    %c0_14 = arith.constant 0 : index
    %c0_15 = arith.constant 0 : index
    %c25 = arith.constant 25 : index
    %c0_16 = arith.constant 0 : index
    %11 = vector.load %arg2[%c0_14, %c0_15, %c25, %c0_16] : memref<1x1x240x16xbf16, #tpu.memory_space<vmem>>, vector<1x1x184x16xbf16>
    %12 = vector.shape_cast %11 : vector<1x1x184x16xbf16> to vector<184x16xbf16>
    %c0_17 = arith.constant 0 : index
    %c0_18 = arith.constant 0 : index
    %c26 = arith.constant 26 : index
    %c0_19 = arith.constant 0 : index
    %13 = vector.load %arg2[%c0_17, %c0_18, %c26, %c0_19] : memref<1x1x240x16xbf16, #tpu.memory_space<vmem>>, vector<1x1x184x16xbf16>
    %14 = vector.shape_cast %13 : vector<1x1x184x16xbf16> to vector<184x16xbf16>
    %15 = tpu.concatenate %10, %12, %14 in 1 : vector<184x16xbf16>, vector<184x16xbf16>, vector<184x16xbf16> -> vector<184x48xbf16>
    %c48 = arith.constant 48 : index
    %c0_20 = arith.constant 0 : index
    %16 = vector.load %arg3[%c48, %c0_20] : memref<144x16xbf16, #tpu.memory_space<vmem>>, vector<48x16xbf16>
    %cst_21 = arith.constant dense<0.000000e+00> : vector<184x16xf32>
    %17 = tpu.matmul %15, %16, %cst_21 {dimension_numbers = #tpu.dot_dimension_numbers<[1], [0], [0], [1], [0, 0, 1, 1], [], []>} : vector<184x48xbf16>, vector<48x16xbf16>, vector<184x16xf32> -> vector<184x16xf32>
    %18 = arith.addf %8, %17 : vector<184x16xf32>
    %c0_22 = arith.constant 0 : index
    %c0_23 = arith.constant 0 : index
    %c48_24 = arith.constant 48 : index
    %c0_25 = arith.constant 0 : index
    %19 = vector.load %arg2[%c0_22, %c0_23, %c48_24, %c0_25] : memref<1x1x240x16xbf16, #tpu.memory_space<vmem>>, vector<1x1x184x16xbf16>
    %20 = vector.shape_cast %19 : vector<1x1x184x16xbf16> to vector<184x16xbf16>
    %c0_26 = arith.constant 0 : index
    %c0_27 = arith.constant 0 : index
    %c49 = arith.constant 49 : index
    %c0_28 = arith.constant 0 : index
    %21 = vector.load %arg2[%c0_26, %c0_27, %c49, %c0_28] : memref<1x1x240x16xbf16, #tpu.memory_space<vmem>>, vector<1x1x184x16xbf16>
    %22 = vector.shape_cast %21 : vector<1x1x184x16xbf16> to vector<184x16xbf16>
    %c0_29 = arith.constant 0 : index
    %c0_30 = arith.constant 0 : index
    %c50 = arith.constant 50 : index
    %c0_31 = arith.constant 0 : index
    %23 = vector.load %arg2[%c0_29, %c0_30, %c50, %c0_31] : memref<1x1x240x16xbf16, #tpu.memory_space<vmem>>, vector<1x1x184x16xbf16>
    %24 = vector.shape_cast %23 : vector<1x1x184x16xbf16> to vector<184x16xbf16>
    %25 = tpu.concatenate %20, %22, %24 in 1 : vector<184x16xbf16>, vector<184x16xbf16>, vector<184x16xbf16> -> vector<184x48xbf16>
    %c96 = arith.constant 96 : index
    %c0_32 = arith.constant 0 : index
    %26 = vector.load %arg3[%c96, %c0_32] : memref<144x16xbf16, #tpu.memory_space<vmem>>, vector<48x16xbf16>
    %cst_33 = arith.constant dense<0.000000e+00> : vector<184x16xf32>
    %27 = tpu.matmul %25, %26, %cst_33 {dimension_numbers = #tpu.dot_dimension_numbers<[1], [0], [0], [1], [0, 0, 1, 1], [], []>} : vector<184x48xbf16>, vector<48x16xbf16>, vector<184x16xf32> -> vector<184x16xf32>
    %28 = arith.addf %18, %27 : vector<184x16xf32>
    %c0_34 = arith.constant 0 : index
    %c0_35 = arith.constant 0 : index
    %29 = vector.load %arg4[%c0_34, %c0_35] : memref<1x16xf32, #tpu.memory_space<vmem>>, vector<1x16xf32>
    %30 = vector.broadcast %29 : vector<1x16xf32> to vector<184x16xf32>
    %31 = arith.addf %28, %30 : vector<184x16xf32>
    %cst_36 = arith.constant 0.000000e+00 : f32
    %32 = vector.broadcast %cst_36 : f32 to vector<184x16xf32>
    %33 = arith.maximumf %31, %32 : vector<184x16xf32>
    %c0_37 = arith.constant 0 : index
    %c0_38 = arith.constant 0 : index
    %34 = vector.load %arg6[%c0_37, %c0_38] : memref<184x16xf32, #tpu.memory_space<vmem>>, vector<184x16xf32>
    tpu.vector_store %arg6[%c0_37, %c0_38], %33 {strides = array<i32>} : memref<184x16xf32, #tpu.memory_space<vmem>>, vector<184x16xf32>,
    %c0_39 = arith.constant 0 : index
    %c0_40 = arith.constant 0 : index
    %35 = vector.load %arg6[%c0_39, %c0_40] : memref<184x16xf32, #tpu.memory_space<vmem>>, vector<16x16xf32>
    %c24_41 = arith.constant 24 : index
    %c0_42 = arith.constant 0 : index
    %36 = vector.load %arg6[%c24_41, %c0_42] : memref<184x16xf32, #tpu.memory_space<vmem>>, vector<16x16xf32>
    %37 = arith.maximumf %35, %36 : vector<16x16xf32>
    %c24_43 = arith.constant 24 : index
    %c0_44 = arith.constant 0 : index
    %38 = vector.load %arg6[%c24_43, %c0_44] : memref<184x16xf32, #tpu.memory_space<vmem>>, vector<16x16xf32>
    tpu.vector_store %arg6[%c24_43, %c0_44], %37 {strides = array<i32>} : memref<184x16xf32, #tpu.memory_space<vmem>>, vector<16x16xf32>,
    %c24_45 = arith.constant 24 : index
    %c0_46 = arith.constant 0 : index
    %39 = tpu.strided_load %arg6[%c24_45, %c0_46] {strides = array<i32: 2, 1>} : memref<184x16xf32, #tpu.memory_space<vmem>>, vector<8x16xf32>
    %c25_47 = arith.constant 25 : index
    %c0_48 = arith.constant 0 : index
    %40 = tpu.strided_load %arg6[%c25_47, %c0_48] {strides = array<i32: 2, 1>} : memref<184x16xf32, #tpu.memory_space<vmem>>, vector<8x16xf32>
    %41 = arith.maximumf %39, %40 : vector<8x16xf32>
    %c0_49 = arith.constant 0 : index
    %c0_50 = arith.constant 0 : index
    %c0_51 = arith.constant 0 : index
    %42 = vector.load %arg5[%c0_49, %c0_50, %c0_51] : memref<1x32x16xf32, #tpu.memory_space<vmem>>, vector<1x8x16xf32>
    %43 = vector.shape_cast %42 : vector<1x8x16xf32> to vector<8x16xf32>
    %44 = vector.shape_cast %41 : vector<8x16xf32> to vector<1x8x16xf32>
    tpu.vector_store %arg5[%c0_49, %c0_50, %c0_51], %44 {strides = array<i32>} : memref<1x32x16xf32, #tpu.memory_space<vmem>>, vector<1x8x16xf32>,
    %c48_52 = arith.constant 48 : index
    %c0_53 = arith.constant 0 : index
    %45 = vector.load %arg6[%c48_52, %c0_53] : memref<184x16xf32, #tpu.memory_space<vmem>>, vector<16x16xf32>
    %c72 = arith.constant 72 : index
    %c0_54 = arith.constant 0 : index
    %46 = vector.load %arg6[%c72, %c0_54] : memref<184x16xf32, #tpu.memory_space<vmem>>, vector<16x16xf32>
    %47 = arith.maximumf %45, %46 : vector<16x16xf32>
    %c72_55 = arith.constant 72 : index
    %c0_56 = arith.constant 0 : index
    %48 = vector.load %arg6[%c72_55, %c0_56] : memref<184x16xf32, #tpu.memory_space<vmem>>, vector<16x16xf32>
    tpu.vector_store %arg6[%c72_55, %c0_56], %47 {strides = array<i32>} : memref<184x16xf32, #tpu.memory_space<vmem>>, vector<16x16xf32>,
    %c72_57 = arith.constant 72 : index
    %c0_58 = arith.constant 0 : index
    %49 = tpu.strided_load %arg6[%c72_57, %c0_58] {strides = array<i32: 2, 1>} : memref<184x16xf32, #tpu.memory_space<vmem>>, vector<8x16xf32>
    %c73 = arith.constant 73 : index
    %c0_59 = arith.constant 0 : index
    %50 = tpu.strided_load %arg6[%c73, %c0_59] {strides = array<i32: 2, 1>} : memref<184x16xf32, #tpu.memory_space<vmem>>, vector<8x16xf32>
    %51 = arith.maximumf %49, %50 : vector<8x16xf32>
    %c0_60 = arith.constant 0 : index
    %c8 = arith.constant 8 : index
    %c0_61 = arith.constant 0 : index
    %52 = vector.load %arg5[%c0_60, %c8, %c0_61] : memref<1x32x16xf32, #tpu.memory_space<vmem>>, vector<1x8x16xf32>
    %53 = vector.shape_cast %52 : vector<1x8x16xf32> to vector<8x16xf32>
    %54 = vector.shape_cast %51 : vector<8x16xf32> to vector<1x8x16xf32>
    tpu.vector_store %arg5[%c0_60, %c8, %c0_61], %54 {strides = array<i32>} : memref<1x32x16xf32, #tpu.memory_space<vmem>>, vector<1x8x16xf32>,
    %c96_62 = arith.constant 96 : index
    %c0_63 = arith.constant 0 : index
    %55 = vector.load %arg6[%c96_62, %c0_63] : memref<184x16xf32, #tpu.memory_space<vmem>>, vector<16x16xf32>
    %c120 = arith.constant 120 : index
    %c0_64 = arith.constant 0 : index
    %56 = vector.load %arg6[%c120, %c0_64] : memref<184x16xf32, #tpu.memory_space<vmem>>, vector<16x16xf32>
    %57 = arith.maximumf %55, %56 : vector<16x16xf32>
    %c120_65 = arith.constant 120 : index
    %c0_66 = arith.constant 0 : index
    %58 = vector.load %arg6[%c120_65, %c0_66] : memref<184x16xf32, #tpu.memory_space<vmem>>, vector<16x16xf32>
    tpu.vector_store %arg6[%c120_65, %c0_66], %57 {strides = array<i32>} : memref<184x16xf32, #tpu.memory_space<vmem>>, vector<16x16xf32>,
    %c120_67 = arith.constant 120 : index
    %c0_68 = arith.constant 0 : index
    %59 = tpu.strided_load %arg6[%c120_67, %c0_68] {strides = array<i32: 2, 1>} : memref<184x16xf32, #tpu.memory_space<vmem>>, vector<8x16xf32>
    %c121 = arith.constant 121 : index
    %c0_69 = arith.constant 0 : index
    %60 = tpu.strided_load %arg6[%c121, %c0_69] {strides = array<i32: 2, 1>} : memref<184x16xf32, #tpu.memory_space<vmem>>, vector<8x16xf32>
    %61 = arith.maximumf %59, %60 : vector<8x16xf32>
    %c0_70 = arith.constant 0 : index
    %c16 = arith.constant 16 : index
    %c0_71 = arith.constant 0 : index
    %62 = vector.load %arg5[%c0_70, %c16, %c0_71] : memref<1x32x16xf32, #tpu.memory_space<vmem>>, vector<1x8x16xf32>
    %63 = vector.shape_cast %62 : vector<1x8x16xf32> to vector<8x16xf32>
    %64 = vector.shape_cast %61 : vector<8x16xf32> to vector<1x8x16xf32>
    tpu.vector_store %arg5[%c0_70, %c16, %c0_71], %64 {strides = array<i32>} : memref<1x32x16xf32, #tpu.memory_space<vmem>>, vector<1x8x16xf32>,
    %c144 = arith.constant 144 : index
    %c0_72 = arith.constant 0 : index
    %65 = vector.load %arg6[%c144, %c0_72] : memref<184x16xf32, #tpu.memory_space<vmem>>, vector<16x16xf32>
    %c168 = arith.constant 168 : index
    %c0_73 = arith.constant 0 : index
    %66 = vector.load %arg6[%c168, %c0_73] : memref<184x16xf32, #tpu.memory_space<vmem>>, vector<16x16xf32>
    %67 = arith.maximumf %65, %66 : vector<16x16xf32>
    %c168_74 = arith.constant 168 : index
    %c0_75 = arith.constant 0 : index
    %68 = vector.load %arg6[%c168_74, %c0_75] : memref<184x16xf32, #tpu.memory_space<vmem>>, vector<16x16xf32>
    tpu.vector_store %arg6[%c168_74, %c0_75], %67 {strides = array<i32>} : memref<184x16xf32, #tpu.memory_space<vmem>>, vector<16x16xf32>,
    %c168_76 = arith.constant 168 : index
    %c0_77 = arith.constant 0 : index
    %69 = tpu.strided_load %arg6[%c168_76, %c0_77] {strides = array<i32: 2, 1>} : memref<184x16xf32, #tpu.memory_space<vmem>>, vector<8x16xf32>
    %c169 = arith.constant 169 : index
    %c0_78 = arith.constant 0 : index
    %70 = tpu.strided_load %arg6[%c169, %c0_78] {strides = array<i32: 2, 1>} : memref<184x16xf32, #tpu.memory_space<vmem>>, vector<8x16xf32>
    %71 = arith.maximumf %69, %70 : vector<8x16xf32>
    %c0_79 = arith.constant 0 : index
    %c24_80 = arith.constant 24 : index
    %c0_81 = arith.constant 0 : index
    %72 = vector.load %arg5[%c0_79, %c24_80, %c0_81] : memref<1x32x16xf32, #tpu.memory_space<vmem>>, vector<1x8x16xf32>
    %73 = vector.shape_cast %72 : vector<1x8x16xf32> to vector<8x16xf32>
    %74 = vector.shape_cast %71 : vector<8x16xf32> to vector<1x8x16xf32>
    tpu.vector_store %arg5[%c0_79, %c24_80, %c0_81], %74 {strides = array<i32>} : memref<1x32x16xf32, #tpu.memory_space<vmem>>, vector<1x8x16xf32>,
    return
  }
  func.func @transform_0(%arg0: i32, %arg1: i32) -> (i32, i32, i32, i32) {
    %c0_i32 = arith.constant 0 : i32
    %c0_i32_0 = arith.constant 0 : i32
    %c0_i32_1 = arith.constant 0 : i32
    return %arg0, %arg1, %c0_i32, %c0_i32_0 : i32, i32, i32, i32
  }
  func.func @transform_1(%arg0: i32, %arg1: i32) -> (i32, i32) {
    %c0_i32 = arith.constant 0 : i32
    %c0_i32_0 = arith.constant 0 : i32
    %c0_i32_1 = arith.constant 0 : i32
    return %c0_i32, %c0_i32_0 : i32, i32
  }
  func.func @transform_2(%arg0: i32, %arg1: i32) -> (i32, i32) {
    %c0_i32 = arith.constant 0 : i32
    %c0_i32_0 = arith.constant 0 : i32
    %c0_i32_1 = arith.constant 0 : i32
    return %c0_i32, %c0_i32_0 : i32, i32
  }
  func.func @transform_3(%arg0: i32, %arg1: i32) -> (i32, i32, i32) {
    %c0_i32 = arith.constant 0 : i32
    %c0_i32_0 = arith.constant 0 : i32
    return %arg0, %arg1, %c0_i32 : i32, i32, i32
  }
}

</mosaic_0001>

<llo_original>
// kernel: mtan_down_pallas.4
$region0: #{mtan_down_pallas.4}
  #allocation0 [shape = 'u32[]', space=smem, size = 0x4, offset = 0x4, fixed_abs, tag = 'smem constant byte address 0x4 - core index']
  #allocation1 [shape = 'u32[72,128]{1,0:T(1,128)}', space=vmem, size = 0x9000, scoped, tag = 'internal scratch']
  #allocation2 [shape = 'f32[184,8]{1,0:T(8,128)}', space=vmem, size = 0x17000, scoped, tag = 'scratch operand']
  %s0 = inlined_call_operand.vmem [shape: bf16[2,2,240,4], index: 0, kind: input, shape index: {}]
  %s1 = inlined_call_operand.vmem [shape: bf16[36,8], index: 1, kind: input, shape index: {}]
  %s2 = inlined_call_operand.vmem [shape: f32[1,8], index: 2, kind: input, shape index: {}]
  %s3 = inlined_call_operand.vmem [shape: bf16[2,256,8], index: 3, kind: output, shape index: {}]
  %s4 = sld [smem:[#allocation0]]
  $region45: #{mtan_down_pallas.4} parent=0
    _
  %s6 = ssub.s32 1, %s4
  %s7 = scalar_select 0, %s6, %s4
  loop: start=0, step=1, limit=6
  $region2: #{mtan_down_pallas.4} parent=0 // loop_pre_header
    _
  $region3: #{mtan_down_pallas.4} parent=0 // loop_header
    %s9 = sphi 0, %s13
    %p10 = scmp.ge.s32.totalorder %s9, 6
    %s16 = sphi 0, %s28
    %s17 = sphi 0, %s24
    %s18 = sphi 0, %s16
    %s19 = sphi 0, %s17
    %s20 = sphi 0, %s18
    %s21 = sphi 0, %s19
    %s33 = sphi 0, %s35
    %s36 = sphi 0, %s33
    %s37 = sphi 0, %s36
    %s53 = sphi 0, %s37
    %s57 = sphi 0, %s57
    %s59 = sphi 0, %s57
    %s60 = sphi 0, %s59
    %s74 = sphi 0, %s60
    %s78 = sphi 0, %s78
    %s80 = sphi 0, %s78
    %s81 = sphi 0, %s80
    %s95 = sphi 0, %s81
    %s103 = sphi 0, %s105
    %s106 = sphi 0, %s103
    %s107 = sphi 0, %s106
    %s123 = sphi 0, %s107
  $region4: #{mtan_down_pallas.4} parent=0 // loop_header_branch
    %12 = sbr.rel (%p10) target = $region8
  $region5: #{mtan_down_pallas.4} parent=0 // loop_body
    %s14 = ssub.s32 %s9, 1
    %s15 = ssub.s32 %s9, 2
    %s22 = sadd.s32 1, %s17
    %p23 = scmp.ge.s32.totalorder %s22, 2
    %s24 = scalar_select %p23, 0, %s22
    %s25 = sadd.s32 1, %s16
    %s26 = scalar_select %p23, %s25, %s16
    %p27 = scmp.ge.s32.totalorder %s26, 2
    %s28 = scalar_select %p27, 0, %s26
    %s29 = ssub.s32 %s16, %s28
    %s30 = ssub.s32 %s17, %s24
    %s31 = sor.u32 %s29, %s30
    %p32 = scmp.eq.s32.totalorder %s31, 0
    %s34 = sadd.s32 %s33, 1
    %s35 = scalar_select %p32, %s33, %s34
    %p38 = pneg %p32
    %p39 = scmp.eq.s32.totalorder %s9, 3
    %p40 = por %p38, %p39
    %p41 = scmp.ne.s32.totalorder %s33, %s36
    %p42 = scmp.eq.s32.totalorder %s9, 0
    %p43 = por %p41, %p42
    %p44 = scmp.ne.s32.totalorder %s33, %s36
    %p45 = scmp.eq.s32.totalorder %s14, 3
    %p46 = por %p44, %p45
    %p47 = scmp.ne.s32.totalorder %s36, %s37
    %p48 = scmp.eq.s32.totalorder %s14, 0
    %p49 = por %p47, %p48
    %p50 = scmp.ne.s32.totalorder %s36, %s37
    %p51 = scmp.eq.s32.totalorder %s15, 3
    %p52 = por %p50, %p51
    %p54 = scmp.ne.s32.totalorder %s37, %s53
    %p55 = scmp.eq.s32.totalorder %s15, 0
    %p56 = por %p54, %p55
    %s58 = sadd.s32 %s57, 1
    %p61 = scmp.eq.s32.totalorder %s9, 3
    %p62 = scmp.ne.s32.totalorder %s57, %s59
    %p63 = scmp.eq.s32.totalorder %s9, 0
    %p64 = por %p62, %p63
    %p65 = scmp.ne.s32.totalorder %s57, %s59
    %p66 = scmp.eq.s32.totalorder %s14, 3
    %p67 = por %p65, %p66
    %p68 = scmp.ne.s32.totalorder %s59, %s60
    %p69 = scmp.eq.s32.totalorder %s14, 0
    %p70 = por %p68, %p69
    %p71 = scmp.ne.s32.totalorder %s59, %s60
    %p72 = scmp.eq.s32.totalorder %s15, 3
    %p73 = por %p71, %p72
    %p75 = scmp.ne.s32.totalorder %s60, %s74
    %p76 = scmp.eq.s32.totalorder %s15, 0
    %p77 = por %p75, %p76
    %s79 = sadd.s32 %s78, 1
    %p82 = scmp.eq.s32.totalorder %s9, 3
    %p83 = scmp.ne.s32.totalorder %s78, %s80
    %p84 = scmp.eq.s32.totalorder %s9, 0
    %p85 = por %p83, %p84
    %p86 = scmp.ne.s32.totalorder %s78, %s80
    %p87 = scmp.eq.s32.totalorder %s14, 3
    %p88 = por %p86, %p87
    %p89 = scmp.ne.s32.totalorder %s80, %s81
    %p90 = scmp.eq.s32.totalorder %s14, 0
    %p91 = por %p89, %p90
    %p92 = scmp.ne.s32.totalorder %s80, %s81
    %p93 = scmp.eq.s32.totalorder %s15, 3
    %p94 = por %p92, %p93
    %p96 = scmp.ne.s32.totalorder %s81, %s95
    %p97 = scmp.eq.s32.totalorder %s15, 0
    %p98 = por %p96, %p97
    %s99 = ssub.s32 %s16, %s28
    %s100 = ssub.s32 %s17, %s24
    %s101 = sor.u32 %s99, %s100
    %p102 = scmp.eq.s32.totalorder %s101, 0
    %s104 = sadd.s32 %s103, 1
    %s105 = scalar_select %p102, %s103, %s104
    %p108 = pneg %p102
    %p109 = scmp.eq.s32.totalorder %s9, 3
    %p110 = por %p108, %p109
    %p111 = scmp.ne.s32.totalorder %s103, %s106
    %p112 = scmp.eq.s32.totalorder %s9, 0
    %p113 = por %p111, %p112
    %p114 = scmp.ne.s32.totalorder %s103, %s106
    %p115 = scmp.eq.s32.totalorder %s14, 3
    %p116 = por %p114, %p115
    %p117 = scmp.ne.s32.totalorder %s106, %s107
    %p118 = scmp.eq.s32.totalorder %s14, 0
    %p119 = por %p117, %p118
    %p120 = scmp.ne.s32.totalorder %s106, %s107
    %p121 = scmp.eq.s32.totalorder %s15, 3
    %p122 = por %p120, %p121
    %p124 = scmp.ne.s32.totalorder %s107, %s123
    %p125 = scmp.eq.s32.totalorder %s15, 0
    %p126 = por %p124, %p125
    %p127 = scmp.le.s32.totalorder 1, %s9
    %p128 = scmp.lt.s32.totalorder %s9, 5
    %p129 = pnand %p127, %p128
    %p130 = pneg %p129
    // Predicated region
    $region9: #{mtan_down_pallas.4} parent=5 // pred_check
      _
    $region10: #{mtan_down_pallas.4} parent=5 // pred_check_branch
      %132 = sbr.rel (%p129) target = $region12
    $region11: #{mtan_down_pallas.4} parent=5 // pred_region
      %s133 = ssub.s32 %s9, 1
      // Predicated region
      $region13: #{mtan_down_pallas.4} parent=11 // pred_check
        %p134 = pneg %p70
      $region14: #{mtan_down_pallas.4} parent=11 // pred_check_branch
        %136 = sbr.rel (%p134) target = $region16
      $region15: #{mtan_down_pallas.4} parent=11 // pred_region
        _
      $region16: #{mtan_down_pallas.4} parent=11 // pred_fallthru
        _
      // Predicated region
      $region17: #{mtan_down_pallas.4} parent=11 // pred_check
        %p137 = pneg %p91
      $region18: #{mtan_down_pallas.4} parent=11 // pred_check_branch
        %139 = sbr.rel (%p137) target = $region20
      $region19: #{mtan_down_pallas.4} parent=11 // pred_region
        _
      $region20: #{mtan_down_pallas.4} parent=11 // pred_fallthru
        _
    $region12: #{mtan_down_pallas.4} parent=5 // pred_fallthru
      _
    %p140 = scmp.lt.s32.totalorder %s9, 4
    // Predicated region
    $region21: #{mtan_down_pallas.4} parent=5 // pred_check
      %p141 = pneg %p140
    $region22: #{mtan_down_pallas.4} parent=5 // pred_check_branch
      %143 = sbr.rel (%p141) target = $region24
    $region23: #{mtan_down_pallas.4} parent=5 // pred_region
      // Predicated region
      $region25: #{mtan_down_pallas.4} parent=23 // pred_check
        %p144 = pneg %p43
      $region26: #{mtan_down_pallas.4} parent=23 // pred_check_branch
        %146 = sbr.rel (%p144) target = $region28
      $region27: #{mtan_down_pallas.4} parent=23 // pred_region
        %p147 = scmp.lt.s32.totalorder %s16, 1
        %s148 = scalar_select %p147, %s16, 1
        %p149 = scmp.lt.s32.totalorder %s17, 1
        %s150 = scalar_select %p149, %s17, 1
        %s151 = smul.addr %s150, 30
        %s152 = smul.addr %s148, 60
        %s153 = sadd.s32 %s151, %s152
        %s154 = smul.addr %s153, 4
        %s155 = scalar_lea.vmem %s0, %s154
      $region28: #{mtan_down_pallas.4} parent=23 // pred_fallthru
        _
    $region24: #{mtan_down_pallas.4} parent=5 // pred_fallthru
      _
    %p156 = scmp.le.s32.totalorder 1, %s9
    %p157 = scmp.lt.s32.totalorder %s9, 5
    %p158 = pnand %p156, %p157
    %p159 = pneg %p158
    // Predicated region
    $region29: #{mtan_down_pallas.4} parent=5 // pred_check
      _
    $region30: #{mtan_down_pallas.4} parent=5 // pred_check_branch
      %161 = sbr.rel (%p158) target = $region32
    $region31: #{mtan_down_pallas.4} parent=5 // pred_region
      %s162 = ssub.s32 %s9, 1
      %p163 = scmp.lt.s32.totalorder %s18, 1
      %s164 = scalar_select %p163, %s18, 1
      %p165 = scmp.lt.s32.totalorder %s19, 1
      %s166 = scalar_select %p165, %s19, 1
      %s167 = smul.addr %s166, 30
      %s168 = smul.addr %s164, 60
      %s169 = sadd.s32 %s167, %s168
      %s170 = smul.addr %s169, 4
      %s171 = scalar_lea.vmem %s0, %s170
      %p172 = pneg %p49
      %p173 = pneg %p46
      %p174 = pneg %p70
      %p175 = pneg %p67
      %p176 = pneg %p91
      %p177 = pneg %p88
      %p178 = pneg %p119
      %p179 = pneg %p116
      %s180 = smul.u32 16, %s19
      %p181 = scmp.lt.s32.totalorder %s18, 1
      %s182 = scalar_select %p181, %s18, 1
      %p183 = scmp.lt.s32.totalorder %s180, 31
      %s184 = scalar_select %p183, %s180, 31
      %s185 = smul.addr %s182, 32
      %s186 = sadd.s32 %s184, %s185
      %s187 = smul.addr %s186, 4
      %s188 = scalar_lea.vmem %s3, %s187
      %p189 = scmp.lt.s32.totalorder %s18, 1
      %s190 = scalar_select %p189, %s18, 1
      %p191 = scmp.lt.s32.totalorder %s19, 1
      %s192 = scalar_select %p191, %s19, 1
      %s193 = smul.addr %s192, 30
      %s194 = smul.addr %s190, 60
      %s195 = sadd.s32 %s193, %s194
      %s196 = smul.addr %s195, 4
      %s197 = scalar_lea.vmem %s0, %s196
      %s198 = smul.u32 16, %s19
      %p199 = scmp.lt.s32.totalorder %s18, 1
      %s200 = scalar_select %p199, %s18, 1
      %p201 = scmp.lt.s32.totalorder %s198, 31
      %s202 = scalar_select %p201, %s198, 31
      %s203 = smul.addr %s200, 32
      %s204 = sadd.s32 %s202, %s203
      %s205 = smul.addr %s204, 4
      %s206 = scalar_lea.vmem %s3, %s205
      %s207 = smul.u32 16, %s19
      %v209 = vld [vmem:[%s197] sm:$0xf]
      %v210 = vld [vmem:[%s197 + $0x4] sm:$0xf]
      %v211 = vld [vmem:[%s197 + $0x8] sm:$0xf]
      %v212 = vld [vmem:[%s197 + $0xc] sm:$0xf]
      %v213 = vld [vmem:[%s197 + $0x10] sm:$0xf]
      %v214 = vld [vmem:[%s197 + $0x14] sm:$0xf]
      %v215 = vld [vmem:[%s197 + $0x18] sm:$0xf]
      %v216 = vld [vmem:[%s197 + $0x1c] sm:$0xf]
      %v217 = vld [vmem:[%s197 + $0x20] sm:$0xf]
      %v218 = vld [vmem:[%s197 + $0x24] sm:$0xf]
      %v219 = vld [vmem:[%s197 + $0x28] sm:$0xf]
      %v220 = vld [vmem:[%s197 + $0x2c] sm:$0xf]
      %v221 = vld [vmem:[%s197 + $0x30] sm:$0xf]
      %v222 = vld [vmem:[%s197 + $0x34] sm:$0xf]
      %v223 = vld [vmem:[%s197 + $0x38] sm:$0xf]
      %v224 = vld [vmem:[%s197 + $0x3c] sm:$0xf]
      %v225 = vld [vmem:[%s197 + $0x40] sm:$0xf]
      %v226 = vld [vmem:[%s197 + $0x44] sm:$0xf]
      %v227 = vld [vmem:[%s197 + $0x48] sm:$0xf]
      %v228 = vld [vmem:[%s197 + $0x4c] sm:$0xf]
      %v229 = vld [vmem:[%s197 + $0x50] sm:$0xf]
      %v230 = vld [vmem:[%s197 + $0x54] sm:$0xf]
      %v231 = vld [vmem:[%s197 + $0x58] sm:$0xf]
      %v232 = vld [vmem:[%s197 + $0x5c] sm:$0x1]
      %v233 = vld [vmem:[%s197] sm:$0xe]
      %v257 = vunpack.c.l.b16 %v209
      %v258 = vunpack.c.l.b16 %v210
      %v259 = vunpack.c.l.b16 %v211
      %v260 = vunpack.c.l.b16 %v212
      %v261 = vunpack.c.l.b16 %v213
      %v262 = vunpack.c.l.b16 %v214
      %v263 = vunpack.c.l.b16 %v215
      %v264 = vunpack.c.l.b16 %v216
      %v265 = vunpack.c.l.b16 %v217
      %v266 = vunpack.c.l.b16 %v218
      %v267 = vunpack.c.l.b16 %v219
      %v268 = vunpack.c.l.b16 %v220
      %v269 = vunpack.c.l.b16 %v221
      %v270 = vunpack.c.l.b16 %v222
      %v271 = vunpack.c.l.b16 %v223
      %v272 = vunpack.c.l.b16 %v224
      %v273 = vunpack.c.l.b16 %v225
      %v274 = vunpack.c.l.b16 %v226
      %v275 = vunpack.c.l.b16 %v227
      %v276 = vunpack.c.l.b16 %v228
      %v277 = vunpack.c.l.b16 %v229
      %v278 = vunpack.c.l.b16 %v230
      %v279 = vunpack.c.l.b16 %v231
      %v280 = vpack.c.b16 %v258, %v257
      %v281 = vpack.c.b16 %v260, %v259
      %v282 = vpack.c.b16 %v262, %v261
      %v283 = vpack.c.b16 %v264, %v263
      %v284 = vpack.c.b16 %v266, %v265
      %v285 = vpack.c.b16 %v268, %v267
      %v286 = vpack.c.b16 %v270, %v269
      %v287 = vpack.c.b16 %v272, %v271
      %v288 = vpack.c.b16 %v274, %v273
      %v289 = vpack.c.b16 %v276, %v275
      %v290 = vpack.c.b16 %v278, %v277
      %v291 = vpack.c.b16 %v279, %v279
      %v293 = vunpack.c.l.b16 %v232
      %v294 = vpack.c.b16 %v293, %v279
      %vm295 = vsmask.f32 7424
      %v297 = vshrl.u32 %v280, 16
      %v299 = vshll.u32 %v280, 16
      %v301 = vrot.slane %v299, 1
      %v302 = vor.u32 %v297, %v301
      %v304 = vshll.u32 %v281, 16
      %v306 = vrot.slane %v304, 1
      %v307 = vsel %vm295, %v302, %v306
      %v308 = vshrl.u32 %v281, 16
      %v310 = vor.u32 %v308, %v306
      %v312 = vshll.u32 %v282, 16
      %v314 = vrot.slane %v312, 1
      %v315 = vsel %vm295, %v310, %v314
      %v316 = vshrl.u32 %v282, 16
      %v318 = vor.u32 %v316, %v314
      %v320 = vshll.u32 %v283, 16
      %v322 = vrot.slane %v320, 1
      %v323 = vsel %vm295, %v318, %v322
      %v324 = vshrl.u32 %v283, 16
      %v326 = vor.u32 %v324, %v322
      %v328 = vshll.u32 %v284, 16
      %v330 = vrot.slane %v328, 1
      %v331 = vsel %vm295, %v326, %v330
      %v332 = vshrl.u32 %v284, 16
      %v334 = vor.u32 %v332, %v330
      %v336 = vshll.u32 %v285, 16
      %v338 = vrot.slane %v336, 1
      %v339 = vsel %vm295, %v334, %v338
      %v340 = vshrl.u32 %v285, 16
      %v342 = vor.u32 %v340, %v338
      %v344 = vshll.u32 %v286, 16
      %v346 = vrot.slane %v344, 1
      %v347 = vsel %vm295, %v342, %v346
      %v348 = vshrl.u32 %v286, 16
      %v350 = vor.u32 %v348, %v346
      %v352 = vshll.u32 %v287, 16
      %v354 = vrot.slane %v352, 1
      %v355 = vsel %vm295, %v350, %v354
      %v356 = vshrl.u32 %v287, 16
      %v358 = vor.u32 %v356, %v354
      %v360 = vshll.u32 %v288, 16
      %v362 = vrot.slane %v360, 1
      %v363 = vsel %vm295, %v358, %v362
      %v364 = vshrl.u32 %v288, 16
      %v366 = vor.u32 %v364, %v362
      %v368 = vshll.u32 %v289, 16
      %v370 = vrot.slane %v368, 1
      %v371 = vsel %vm295, %v366, %v370
      %v372 = vshrl.u32 %v289, 16
      %v374 = vor.u32 %v372, %v370
      %v376 = vshll.u32 %v290, 16
      %v378 = vrot.slane %v376, 1
      %v379 = vsel %vm295, %v374, %v378
      %v380 = vshrl.u32 %v290, 16
      %v382 = vor.u32 %v380, %v378
      %v384 = vshll.u32 %v294, 16
      %v386 = vrot.slane %v384, 1
      %v387 = vsel %vm295, %v382, %v386
      %v388 = vshrl.u32 %v294, 16
      %v390 = vor.u32 %v388, %v386
      %391 = vrot.lane.b32.xlu0 %v307, 4
      %v392 = vpop.permute.xlu0 %391
      %393 = vrot.lane.b32.xlu0 %v315, 4
      %v394 = vpop.permute.xlu0 %393
      %395 = vrot.lane.b32.xlu0 %v323, 4
      %v396 = vpop.permute.xlu0 %395
      %397 = vrot.lane.b32.xlu0 %v331, 4
      %v398 = vpop.permute.xlu0 %397
      %399 = vrot.lane.b32.xlu0 %v339, 4
      %v400 = vpop.permute.xlu0 %399
      %401 = vrot.lane.b32.xlu0 %v347, 4
      %v402 = vpop.permute.xlu0 %401
      %403 = vrot.lane.b32.xlu0 %v355, 4
      %v404 = vpop.permute.xlu0 %403
      %405 = vrot.lane.b32.xlu0 %v363, 4
      %v406 = vpop.permute.xlu0 %405
      %407 = vrot.lane.b32.xlu0 %v371, 4
      %v408 = vpop.permute.xlu0 %407
      %409 = vrot.lane.b32.xlu0 %v379, 4
      %v410 = vpop.permute.xlu0 %409
      %411 = vrot.lane.b32.xlu0 %v387, 4
      %v412 = vpop.permute.xlu0 %411
      %413 = vrot.lane.b32.xlu0 %v390, 4
      %v414 = vpop.permute.xlu0 %413
      %v416 = vunpack.c.l.b16 %v233
      %v417 = vpack.c.b16 %v258, %v416
      %vm418 = vcmask 1046528
      %v419 = vrot.slane %v417, 1
      %v420 = vrot.slane %v281, 1
      %v421 = vsel %vm418, %v419, %v420
      %v422 = vrot.slane %v282, 1
      %v423 = vsel %vm418, %v420, %v422
      %v424 = vrot.slane %v283, 1
      %v425 = vsel %vm418, %v422, %v424
      %v426 = vrot.slane %v284, 1
      %v427 = vsel %vm418, %v424, %v426
      %v428 = vrot.slane %v285, 1
      %v429 = vsel %vm418, %v426, %v428
      %v430 = vrot.slane %v286, 1
      %v431 = vsel %vm418, %v428, %v430
      %v432 = vrot.slane %v287, 1
      %v433 = vsel %vm418, %v430, %v432
      %v434 = vrot.slane %v288, 1
      %v435 = vsel %vm418, %v432, %v434
      %v436 = vrot.slane %v289, 1
      %v437 = vsel %vm418, %v434, %v436
      %v438 = vrot.slane %v290, 1
      %v439 = vsel %vm418, %v436, %v438
      %v440 = vrot.slane %v294, 1
      %v441 = vsel %vm418, %v438, %v440
      %442 = vrot.lane.b32.xlu0 %v421, 8
      %v443 = vpop.permute.xlu0 %442
      %444 = vrot.lane.b32.xlu0 %v423, 8
      %v445 = vpop.permute.xlu0 %444
      %446 = vrot.lane.b32.xlu0 %v425, 8
      %v447 = vpop.permute.xlu0 %446
      %448 = vrot.lane.b32.xlu0 %v427, 8
      %v449 = vpop.permute.xlu0 %448
      %450 = vrot.lane.b32.xlu0 %v429, 8
      %v451 = vpop.permute.xlu0 %450
      %452 = vrot.lane.b32.xlu0 %v431, 8
      %v453 = vpop.permute.xlu0 %452
      %454 = vrot.lane.b32.xlu0 %v433, 8
      %v455 = vpop.permute.xlu0 %454
      %456 = vrot.lane.b32.xlu0 %v435, 8
      %v457 = vpop.permute.xlu0 %456
      %458 = vrot.lane.b32.xlu0 %v437, 8
      %v459 = vpop.permute.xlu0 %458
      %460 = vrot.lane.b32.xlu0 %v439, 8
      %v461 = vpop.permute.xlu0 %460
      %462 = vrot.lane.b32.xlu0 %v441, 8
      %v463 = vpop.permute.xlu0 %462
      %464 = vrot.lane.b32.xlu0 %v440, 8
      %v465 = vpop.permute.xlu0 %464
      %vm466 = vcmask 31744
      %v468 = vsel %vm466, %v280, %v392
      %v470 = vsel %vm466, %v281, %v394
      %v472 = vsel %vm466, %v282, %v396
      %v474 = vsel %vm466, %v283, %v398
      %v476 = vsel %vm466, %v284, %v400
      %v478 = vsel %vm466, %v285, %v402
      %v480 = vsel %vm466, %v286, %v404
      %v482 = vsel %vm466, %v287, %v406
      %v484 = vsel %vm466, %v288, %v408
      %v486 = vsel %vm466, %v289, %v410
      %v488 = vsel %vm466, %v290, %v412
      %v491 = vsel %vm466, %v291, %v414
      %vm492 = vcmask 64512
      %v494 = vsel %vm492, %v468, %v443
      %v496 = vsel %vm492, %v470, %v445
      %v498 = vsel %vm492, %v472, %v447
      %v500 = vsel %vm492, %v474, %v449
      %v502 = vsel %vm492, %v476, %v451
      %v504 = vsel %vm492, %v478, %v453
      %v506 = vsel %vm492, %v480, %v455
      %v508 = vsel %vm492, %v482, %v457
      %v510 = vsel %vm492, %v484, %v459
      %v512 = vsel %vm492, %v486, %v461
      %v514 = vsel %vm492, %v488, %v463
      %v516 = vsel %vm492, %v491, %v465
      %v517 = vld [vmem:[%s1] sm:$0xf]
      %v518 = vld [vmem:[%s1 + $0x4] sm:$0x3]
      %v519 = vld [vmem:[%s197 + $0x5c] sm:$0xf]
      %v520 = vld [vmem:[%s197 + $0x60] sm:$0xf]
      %v521 = vld [vmem:[%s197 + $0x64] sm:$0xf]
      %v522 = vld [vmem:[%s197 + $0x68] sm:$0x1]
      %v523 = vld [vmem:[%s197 + $0xc] sm:$0xe]
      %v527 = vunpack.c.l.b16 %v519
      %v528 = vunpack.c.l.b16 %v520
      %v529 = vunpack.c.l.b16 %v521
      %v530 = vpack.c.b16 %v261, %v260
      %v531 = vpack.c.b16 %v263, %v262
      %v532 = vpack.c.b16 %v265, %v264
      %v533 = vpack.c.b16 %v267, %v266
      %v534 = vpack.c.b16 %v269, %v268
      %v535 = vpack.c.b16 %v271, %v270
      %v536 = vpack.c.b16 %v273, %v272
      %v537 = vpack.c.b16 %v275, %v274
      %v538 = vpack.c.b16 %v277, %v276
      %v539 = vpack.c.b16 %v279, %v278
      %v540 = vpack.c.b16 %v528, %v527
      %v541 = vpack.c.b16 %v529, %v529
      %v543 = vunpack.c.l.b16 %v522
      %v544 = vpack.c.b16 %v543, %v529
      %v546 = vshrl.u32 %v530, 16
      %v548 = vshll.u32 %v530, 16
      %v550 = vrot.slane %v548, 1
      %v551 = vor.u32 %v546, %v550
      %v553 = vshll.u32 %v531, 16
      %v555 = vrot.slane %v553, 1
      %v556 = vsel %vm295, %v551, %v555
      %v557 = vshrl.u32 %v531, 16
      %v559 = vor.u32 %v557, %v555
      %v561 = vshll.u32 %v532, 16
      %v563 = vrot.slane %v561, 1
      %v564 = vsel %vm295, %v559, %v563
      %v565 = vshrl.u32 %v532, 16
      %v567 = vor.u32 %v565, %v563
      %v569 = vshll.u32 %v533, 16
      %v571 = vrot.slane %v569, 1
      %v572 = vsel %vm295, %v567, %v571
      %v573 = vshrl.u32 %v533, 16
      %v575 = vor.u32 %v573, %v571
      %v577 = vshll.u32 %v534, 16
      %v579 = vrot.slane %v577, 1
      %v580 = vsel %vm295, %v575, %v579
      %v581 = vshrl.u32 %v534, 16
      %v583 = vor.u32 %v581, %v579
      %v585 = vshll.u32 %v535, 16
      %v587 = vrot.slane %v585, 1
      %v588 = vsel %vm295, %v583, %v587
      %v589 = vshrl.u32 %v535, 16
      %v591 = vor.u32 %v589, %v587
      %v593 = vshll.u32 %v536, 16
      %v595 = vrot.slane %v593, 1
      %v596 = vsel %vm295, %v591, %v595
      %v597 = vshrl.u32 %v536, 16
      %v599 = vor.u32 %v597, %v595
      %v601 = vshll.u32 %v537, 16
      %v603 = vrot.slane %v601, 1
      %v604 = vsel %vm295, %v599, %v603
      %v605 = vshrl.u32 %v537, 16
      %v607 = vor.u32 %v605, %v603
      %v609 = vshll.u32 %v538, 16
      %v611 = vrot.slane %v609, 1
      %v612 = vsel %vm295, %v607, %v611
      %v613 = vshrl.u32 %v538, 16
      %v615 = vor.u32 %v613, %v611
      %v617 = vshll.u32 %v539, 16
      %v619 = vrot.slane %v617, 1
      %v620 = vsel %vm295, %v615, %v619
      %v621 = vshrl.u32 %v539, 16
      %v623 = vor.u32 %v621, %v619
      %v625 = vshll.u32 %v540, 16
      %v627 = vrot.slane %v625, 1
      %v628 = vsel %vm295, %v623, %v627
      %v629 = vshrl.u32 %v540, 16
      %v631 = vor.u32 %v629, %v627
      %v633 = vshll.u32 %v544, 16
      %v635 = vrot.slane %v633, 1
      %v636 = vsel %vm295, %v631, %v635
      %v637 = vshrl.u32 %v544, 16
      %v639 = vor.u32 %v637, %v635
      %640 = vrot.lane.b32.xlu0 %v556, 4
      %v641 = vpop.permute.xlu0 %640
      %642 = vrot.lane.b32.xlu0 %v564, 4
      %v643 = vpop.permute.xlu0 %642
      %644 = vrot.lane.b32.xlu0 %v572, 4
      %v645 = vpop.permute.xlu0 %644
      %646 = vrot.lane.b32.xlu0 %v580, 4
      %v647 = vpop.permute.xlu0 %646
      %648 = vrot.lane.b32.xlu0 %v588, 4
      %v649 = vpop.permute.xlu0 %648
      %650 = vrot.lane.b32.xlu0 %v596, 4
      %v651 = vpop.permute.xlu0 %650
      %652 = vrot.lane.b32.xlu0 %v604, 4
      %v653 = vpop.permute.xlu0 %652
      %654 = vrot.lane.b32.xlu0 %v612, 4
      %v655 = vpop.permute.xlu0 %654
      %656 = vrot.lane.b32.xlu0 %v620, 4
      %v657 = vpop.permute.xlu0 %656
      %658 = vrot.lane.b32.xlu0 %v628, 4
      %v659 = vpop.permute.xlu0 %658
      %660 = vrot.lane.b32.xlu0 %v636, 4
      %v661 = vpop.permute.xlu0 %660
      %662 = vrot.lane.b32.xlu0 %v639, 4
      %v663 = vpop.permute.xlu0 %662
      %v665 = vunpack.c.l.b16 %v523
      %v666 = vpack.c.b16 %v261, %v665
      %v667 = vrot.slane %v666, 1
      %v668 = vrot.slane %v531, 1
      %v669 = vsel %vm418, %v667, %v668
      %v670 = vrot.slane %v532, 1
      %v671 = vsel %vm418, %v668, %v670
      %v672 = vrot.slane %v533, 1
      %v673 = vsel %vm418, %v670, %v672
      %v674 = vrot.slane %v534, 1
      %v675 = vsel %vm418, %v672, %v674
      %v676 = vrot.slane %v535, 1
      %v677 = vsel %vm418, %v674, %v676
      %v678 = vrot.slane %v536, 1
      %v679 = vsel %vm418, %v676, %v678
      %v680 = vrot.slane %v537, 1
      %v681 = vsel %vm418, %v678, %v680
      %v682 = vrot.slane %v538, 1
      %v683 = vsel %vm418, %v680, %v682
      %v684 = vrot.slane %v539, 1
      %v685 = vsel %vm418, %v682, %v684
      %v686 = vrot.slane %v540, 1
      %v687 = vsel %vm418, %v684, %v686
      %v688 = vrot.slane %v544, 1
      %v689 = vsel %vm418, %v686, %v688
      %690 = vrot.lane.b32.xlu0 %v669, 8
      %v691 = vpop.permute.xlu0 %690
      %692 = vrot.lane.b32.xlu0 %v671, 8
      %v693 = vpop.permute.xlu0 %692
      %694 = vrot.lane.b32.xlu0 %v673, 8
      %v695 = vpop.permute.xlu0 %694
      %696 = vrot.lane.b32.xlu0 %v675, 8
      %v697 = vpop.permute.xlu0 %696
      %698 = vrot.lane.b32.xlu0 %v677, 8
      %v699 = vpop.permute.xlu0 %698
      %700 = vrot.lane.b32.xlu0 %v679, 8
      %v701 = vpop.permute.xlu0 %700
      %702 = vrot.lane.b32.xlu0 %v681, 8
      %v703 = vpop.permute.xlu0 %702
      %704 = vrot.lane.b32.xlu0 %v683, 8
      %v705 = vpop.permute.xlu0 %704
      %706 = vrot.lane.b32.xlu0 %v685, 8
      %v707 = vpop.permute.xlu0 %706
      %708 = vrot.lane.b32.xlu0 %v687, 8
      %v709 = vpop.permute.xlu0 %708
      %710 = vrot.lane.b32.xlu0 %v689, 8
      %v711 = vpop.permute.xlu0 %710
      %712 = vrot.lane.b32.xlu0 %v688, 8
      %v713 = vpop.permute.xlu0 %712
      %v715 = vsel %vm466, %v530, %v641
      %v717 = vsel %vm466, %v531, %v643
      %v719 = vsel %vm466, %v532, %v645
      %v721 = vsel %vm466, %v533, %v647
      %v723 = vsel %vm466, %v534, %v649
      %v725 = vsel %vm466, %v535, %v651
      %v727 = vsel %vm466, %v536, %v653
      %v729 = vsel %vm466, %v537, %v655
      %v731 = vsel %vm466, %v538, %v657
      %v733 = vsel %vm466, %v539, %v659
      %v735 = vsel %vm466, %v540, %v661
      %v738 = vsel %vm466, %v541, %v663
      %v740 = vsel %vm492, %v715, %v691
      %v742 = vsel %vm492, %v717, %v693
      %v744 = vsel %vm492, %v719, %v695
      %v746 = vsel %vm492, %v721, %v697
      %v748 = vsel %vm492, %v723, %v699
      %v750 = vsel %vm492, %v725, %v701
      %v752 = vsel %vm492, %v727, %v703
      %v754 = vsel %vm492, %v729, %v705
      %v756 = vsel %vm492, %v731, %v707
      %v758 = vsel %vm492, %v733, %v709
      %v760 = vsel %vm492, %v735, %v711
      %v762 = vsel %vm492, %v738, %v713
      %v763 = vld [vmem:[%s1 + $0x4] sm:$0xc]
      %v764 = vld [vmem:[%s1 + $0x8] sm:$0xf]
      %v767 = vunpack.c.l.b16 %v763
      %v768 = vunpack.c.l.b16 %v764
      %v769 = vpack.c.b16 %v768, %v767
      %v770 = vrot.slane %v769, 2
      %vm771 = vcmask 97280
      %v772 = vsel %vm771, %v740, 0
      %v774 = vsel %vm771, %v742, 0
      %v776 = vsel %vm771, %v744, 0
      %v778 = vsel %vm771, %v746, 0
      %v780 = vsel %vm771, %v748, 0
      %v782 = vsel %vm771, %v750, 0
      %v784 = vsel %vm771, %v752, 0
      %v786 = vsel %vm771, %v754, 0
      %v788 = vsel %vm771, %v756, 0
      %v790 = vsel %vm771, %v758, 0
      %v792 = vsel %vm771, %v760, 0
      %v794 = vsel %vm771, %v762, 0
      %vm796 = vcmask 1045504
      %v798 = vsel %vm796, %v770, 0
      %800 = vmatpush.bf16.msra.mxu0 0
      %801 = vmatpush.bf16.msra.mxu0 0
      %802 = vmatpush.bf16.msra.mxu0 0
      %803 = vmatpush.bf16.msra.mxu0 0
      %804 = vmatpush.bf16.msra.mxu0 0
      %805 = vmatpush.bf16.msra.mxu0 0
      %806 = vmatpush.bf16.msra.mxu0 0
      %807 = vmatpush.bf16.msra.mxu0 %v798
      %808 = vmatmul.bf16.gmra.mxu0 %v772
      %v809 = vpop.f32.mrf.mxu0
      %v810 = vadd.f32 0.0, %v809
      %v811 = vpop.f32.mrf.mxu0
      %v812 = vadd.f32 0.0, %v811
      %813 = vmatmul.bf16.gmra.mxu0 %v774
      %v814 = vpop.f32.mrf.mxu0
      %v815 = vadd.f32 0.0, %v814
      %v816 = vpop.f32.mrf.mxu0
      %v817 = vadd.f32 0.0, %v816
      %818 = vmatmul.bf16.gmra.mxu0 %v776
      %v819 = vpop.f32.mrf.mxu0
      %v820 = vadd.f32 0.0, %v819
      %v821 = vpop.f32.mrf.mxu0
      %v822 = vadd.f32 0.0, %v821
      %823 = vmatmul.bf16.gmra.mxu0 %v778
      %v824 = vpop.f32.mrf.mxu0
      %v825 = vadd.f32 0.0, %v824
      %v826 = vpop.f32.mrf.mxu0
      %v827 = vadd.f32 0.0, %v826
      %828 = vmatmul.bf16.gmra.mxu0 %v780
      %v829 = vpop.f32.mrf.mxu0
      %v830 = vadd.f32 0.0, %v829
      %v831 = vpop.f32.mrf.mxu0
      %v832 = vadd.f32 0.0, %v831
      %833 = vmatmul.bf16.gmra.mxu0 %v782
      %v834 = vpop.f32.mrf.mxu0
      %v835 = vadd.f32 0.0, %v834
      %v836 = vpop.f32.mrf.mxu0
      %v837 = vadd.f32 0.0, %v836
      %838 = vmatmul.bf16.gmra.mxu0 %v784
      %v839 = vpop.f32.mrf.mxu0
      %v840 = vadd.f32 0.0, %v839
      %v841 = vpop.f32.mrf.mxu0
      %v842 = vadd.f32 0.0, %v841
      %843 = vmatmul.bf16.gmra.mxu0 %v786
      %v844 = vpop.f32.mrf.mxu0
      %v845 = vadd.f32 0.0, %v844
      %v846 = vpop.f32.mrf.mxu0
      %v847 = vadd.f32 0.0, %v846
      %848 = vmatmul.bf16.gmra.mxu0 %v788
      %v849 = vpop.f32.mrf.mxu0
      %v850 = vadd.f32 0.0, %v849
      %v851 = vpop.f32.mrf.mxu0
      %v852 = vadd.f32 0.0, %v851
      %853 = vmatmul.bf16.gmra.mxu0 %v790
      %v854 = vpop.f32.mrf.mxu0
      %v855 = vadd.f32 0.0, %v854
      %v856 = vpop.f32.mrf.mxu0
      %v857 = vadd.f32 0.0, %v856
      %858 = vmatmul.bf16.gmra.mxu0 %v792
      %v859 = vpop.f32.mrf.mxu0
      %v860 = vadd.f32 0.0, %v859
      %v861 = vpop.f32.mrf.mxu0
      %v862 = vadd.f32 0.0, %v861
      %863 = vmatmul.bf16.gmra.mxu0 %v794
      %v864 = vpop.f32.mrf.mxu0
      %v865 = vadd.f32 0.0, %v864
      %v866 = vpop.f32.mrf.mxu0
      %867 = vdwg.mxu0
      %v870 = vunpack.c.l.b16 %v517
      %v871 = vunpack.c.l.b16 %v518
      %v872 = vpack.c.b16 %v871, %v870
      %v873 = vsel %vm771, %v494, 0
      %v875 = vsel %vm771, %v496, 0
      %v877 = vsel %vm771, %v498, 0
      %v879 = vsel %vm771, %v500, 0
      %v881 = vsel %vm771, %v502, 0
      %v883 = vsel %vm771, %v504, 0
      %v885 = vsel %vm771, %v506, 0
      %v887 = vsel %vm771, %v508, 0
      %v889 = vsel %vm771, %v510, 0
      %v891 = vsel %vm771, %v512, 0
      %v893 = vsel %vm771, %v514, 0
      %v895 = vsel %vm771, %v516, 0
      %v898 = vsel %vm796, %v872, 0
      %900 = vmatpush.bf16.msra.mxu0 0
      %901 = vmatpush.bf16.msra.mxu0 0
      %902 = vmatpush.bf16.msra.mxu0 0
      %903 = vmatpush.bf16.msra.mxu0 0
      %904 = vmatpush.bf16.msra.mxu0 0
      %905 = vmatpush.bf16.msra.mxu0 0
      %906 = vmatpush.bf16.msra.mxu0 0
      %907 = vmatpush.bf16.msra.mxu0 %v898
      %908 = vmatmul.bf16.gmra.mxu0 %v873
      %v909 = vpop.f32.mrf.mxu0
      %v910 = vadd.f32 %v810, %v909
      %v911 = vpop.f32.mrf.mxu0
      %v912 = vadd.f32 %v812, %v911
      %913 = vmatmul.bf16.gmra.mxu0 %v875
      %v914 = vpop.f32.mrf.mxu0
      %v915 = vadd.f32 %v815, %v914
      %v916 = vpop.f32.mrf.mxu0
      %v917 = vadd.f32 %v817, %v916
      %918 = vmatmul.bf16.gmra.mxu0 %v877
      %v919 = vpop.f32.mrf.mxu0
      %v920 = vadd.f32 %v820, %v919
      %v921 = vpop.f32.mrf.mxu0
      %v922 = vadd.f32 %v822, %v921
      %923 = vmatmul.bf16.gmra.mxu0 %v879
      %v924 = vpop.f32.mrf.mxu0
      %v925 = vadd.f32 %v825, %v924
      %v926 = vpop.f32.mrf.mxu0
      %v927 = vadd.f32 %v827, %v926
      %928 = vmatmul.bf16.gmra.mxu0 %v881
      %v929 = vpop.f32.mrf.mxu0
      %v930 = vadd.f32 %v830, %v929
      %v931 = vpop.f32.mrf.mxu0
      %v932 = vadd.f32 %v832, %v931
      %933 = vmatmul.bf16.gmra.mxu0 %v883
      %v934 = vpop.f32.mrf.mxu0
      %v935 = vadd.f32 %v835, %v934
      %v936 = vpop.f32.mrf.mxu0
      %v937 = vadd.f32 %v837, %v936
      %938 = vmatmul.bf16.gmra.mxu0 %v885
      %v939 = vpop.f32.mrf.mxu0
      %v940 = vadd.f32 %v840, %v939
      %v941 = vpop.f32.mrf.mxu0
      %v942 = vadd.f32 %v842, %v941
      %943 = vmatmul.bf16.gmra.mxu0 %v887
      %v944 = vpop.f32.mrf.mxu0
      %v945 = vadd.f32 %v845, %v944
      %v946 = vpop.f32.mrf.mxu0
      %v947 = vadd.f32 %v847, %v946
      %948 = vmatmul.bf16.gmra.mxu0 %v889
      %v949 = vpop.f32.mrf.mxu0
      %v950 = vadd.f32 %v850, %v949
      %v951 = vpop.f32.mrf.mxu0
      %v952 = vadd.f32 %v852, %v951
      %953 = vmatmul.bf16.gmra.mxu0 %v891
      %v954 = vpop.f32.mrf.mxu0
      %v955 = vadd.f32 %v855, %v954
      %v956 = vpop.f32.mrf.mxu0
      %v957 = vadd.f32 %v857, %v956
      %958 = vmatmul.bf16.gmra.mxu0 %v893
      %v959 = vpop.f32.mrf.mxu0
      %v960 = vadd.f32 %v860, %v959
      %v961 = vpop.f32.mrf.mxu0
      %v962 = vadd.f32 %v862, %v961
      %963 = vmatmul.bf16.gmra.mxu0 %v895
      %v964 = vpop.f32.mrf.mxu0
      %v965 = vadd.f32 %v865, %v964
      %v966 = vpop.f32.mrf.mxu0
      %967 = vdwg.mxu0
      %v968 = vld [vmem:[%s197 + $0x18] sm:$0xf]
      %v969 = vld [vmem:[%s197 + $0x1c] sm:$0xf]
      %v970 = vld [vmem:[%s197 + $0x20] sm:$0xf]
      %v971 = vld [vmem:[%s197 + $0x24] sm:$0xf]
      %v972 = vld [vmem:[%s197 + $0x28] sm:$0xf]
      %v973 = vld [vmem:[%s197 + $0x2c] sm:$0xf]
      %v974 = vld [vmem:[%s197 + $0x30] sm:$0xf]
      %v975 = vld [vmem:[%s197 + $0x34] sm:$0xf]
      %v976 = vld [vmem:[%s197 + $0x38] sm:$0xf]
      %v977 = vld [vmem:[%s197 + $0x3c] sm:$0xf]
      %v978 = vld [vmem:[%s197 + $0x40] sm:$0xf]
      %v979 = vld [vmem:[%s197 + $0x44] sm:$0xf]
      %v980 = vld [vmem:[%s197 + $0x48] sm:$0xf]
      %v981 = vld [vmem:[%s197 + $0x4c] sm:$0xf]
      %v982 = vld [vmem:[%s197 + $0x50] sm:$0xf]
      %v983 = vld [vmem:[%s197 + $0x54] sm:$0xf]
      %v984 = vld [vmem:[%s197 + $0x58] sm:$0xf]
      %v985 = vld [vmem:[%s197 + $0x5c] sm:$0xf]
      %v986 = vld [vmem:[%s197 + $0x60] sm:$0xf]
      %v987 = vld [vmem:[%s197 + $0x64] sm:$0xf]
      %v988 = vld [vmem:[%s197 + $0x68] sm:$0xf]
      %v989 = vld [vmem:[%s197 + $0x6c] sm:$0xf]
      %v990 = vld [vmem:[%s197 + $0x70] sm:$0xf]
      %v991 = vld [vmem:[%s197 + $0x74] sm:$0x1]
      %v992 = vld [vmem:[%s197 + $0x18] sm:$0xe]
      %v1016 = vunpack.c.l.b16 %v968
      %v1017 = vunpack.c.l.b16 %v969
      %v1018 = vunpack.c.l.b16 %v970
      %v1019 = vunpack.c.l.b16 %v971
      %v1020 = vunpack.c.l.b16 %v972
      %v1021 = vunpack.c.l.b16 %v973
      %v1022 = vunpack.c.l.b16 %v974
      %v1023 = vunpack.c.l.b16 %v975
      %v1024 = vunpack.c.l.b16 %v976
      %v1025 = vunpack.c.l.b16 %v977
      %v1026 = vunpack.c.l.b16 %v978
      %v1027 = vunpack.c.l.b16 %v979
      %v1028 = vunpack.c.l.b16 %v980
      %v1029 = vunpack.c.l.b16 %v981
      %v1030 = vunpack.c.l.b16 %v982
      %v1031 = vunpack.c.l.b16 %v983
      %v1032 = vunpack.c.l.b16 %v984
      %v1033 = vunpack.c.l.b16 %v985
      %v1034 = vunpack.c.l.b16 %v986
      %v1035 = vunpack.c.l.b16 %v987
      %v1036 = vunpack.c.l.b16 %v988
      %v1037 = vunpack.c.l.b16 %v989
      %v1038 = vunpack.c.l.b16 %v990
      %v1039 = vpack.c.b16 %v1017, %v1016
      %v1040 = vpack.c.b16 %v1019, %v1018
      %v1041 = vpack.c.b16 %v1021, %v1020
      %v1042 = vpack.c.b16 %v1023, %v1022
      %v1043 = vpack.c.b16 %v1025, %v1024
      %v1044 = vpack.c.b16 %v1027, %v1026
      %v1045 = vpack.c.b16 %v1029, %v1028
      %v1046 = vpack.c.b16 %v1031, %v1030
      %v1047 = vpack.c.b16 %v1033, %v1032
      %v1048 = vpack.c.b16 %v1035, %v1034
      %v1049 = vpack.c.b16 %v1037, %v1036
      %v1050 = vpack.c.b16 %v1038, %v1038
      %v1052 = vunpack.c.l.b16 %v991
      %v1053 = vpack.c.b16 %v1052, %v1038
      %v1055 = vshrl.u32 %v1039, 16
      %v1057 = vshll.u32 %v1039, 16
      %v1059 = vrot.slane %v1057, 1
      %v1060 = vor.u32 %v1055, %v1059
      %v1062 = vshll.u32 %v1040, 16
      %v1064 = vrot.slane %v1062, 1
      %v1065 = vsel %vm295, %v1060, %v1064
      %v1066 = vshrl.u32 %v1040, 16
      %v1068 = vor.u32 %v1066, %v1064
      %v1070 = vshll.u32 %v1041, 16
      %v1072 = vrot.slane %v1070, 1
      %v1073 = vsel %vm295, %v1068, %v1072
      %v1074 = vshrl.u32 %v1041, 16
      %v1076 = vor.u32 %v1074, %v1072
      %v1078 = vshll.u32 %v1042, 16
      %v1080 = vrot.slane %v1078, 1
      %v1081 = vsel %vm295, %v1076, %v1080
      %v1082 = vshrl.u32 %v1042, 16
      %v1084 = vor.u32 %v1082, %v1080
      %v1086 = vshll.u32 %v1043, 16
      %v1088 = vrot.slane %v1086, 1
      %v1089 = vsel %vm295, %v1084, %v1088
      %v1090 = vshrl.u32 %v1043, 16
      %v1092 = vor.u32 %v1090, %v1088
      %v1094 = vshll.u32 %v1044, 16
      %v1096 = vrot.slane %v1094, 1
      %v1097 = vsel %vm295, %v1092, %v1096
      %v1098 = vshrl.u32 %v1044, 16
      %v1100 = vor.u32 %v1098, %v1096
      %v1102 = vshll.u32 %v1045, 16
      %v1104 = vrot.slane %v1102, 1
      %v1105 = vsel %vm295, %v1100, %v1104
      %v1106 = vshrl.u32 %v1045, 16
      %v1108 = vor.u32 %v1106, %v1104
      %v1110 = vshll.u32 %v1046, 16
      %v1112 = vrot.slane %v1110, 1
      %v1113 = vsel %vm295, %v1108, %v1112
      %v1114 = vshrl.u32 %v1046, 16
      %v1116 = vor.u32 %v1114, %v1112
      %v1118 = vshll.u32 %v1047, 16
      %v1120 = vrot.slane %v1118, 1
      %v1121 = vsel %vm295, %v1116, %v1120
      %v1122 = vshrl.u32 %v1047, 16
      %v1124 = vor.u32 %v1122, %v1120
      %v1126 = vshll.u32 %v1048, 16
      %v1128 = vrot.slane %v1126, 1
      %v1129 = vsel %vm295, %v1124, %v1128
      %v1130 = vshrl.u32 %v1048, 16
      %v1132 = vor.u32 %v1130, %v1128
      %v1134 = vshll.u32 %v1049, 16
      %v1136 = vrot.slane %v1134, 1
      %v1137 = vsel %vm295, %v1132, %v1136
      %v1138 = vshrl.u32 %v1049, 16
      %v1140 = vor.u32 %v1138, %v1136
      %v1142 = vshll.u32 %v1053, 16
      %v1144 = vrot.slane %v1142, 1
      %v1145 = vsel %vm295, %v1140, %v1144
      %v1146 = vshrl.u32 %v1053, 16
      %v1148 = vor.u32 %v1146, %v1144
      %1149 = vrot.lane.b32.xlu0 %v1065, 4
      %v1150 = vpop.permute.xlu0 %1149
      %1151 = vrot.lane.b32.xlu0 %v1073, 4
      %v1152 = vpop.permute.xlu0 %1151
      %1153 = vrot.lane.b32.xlu0 %v1081, 4
      %v1154 = vpop.permute.xlu0 %1153
      %1155 = vrot.lane.b32.xlu0 %v1089, 4
      %v1156 = vpop.permute.xlu0 %1155
      %1157 = vrot.lane.b32.xlu0 %v1097, 4
      %v1158 = vpop.permute.xlu0 %1157
      %1159 = vrot.lane.b32.xlu0 %v1105, 4
      %v1160 = vpop.permute.xlu0 %1159
      %1161 = vrot.lane.b32.xlu0 %v1113, 4
      %v1162 = vpop.permute.xlu0 %1161
      %1163 = vrot.lane.b32.xlu0 %v1121, 4
      %v1164 = vpop.permute.xlu0 %1163
      %1165 = vrot.lane.b32.xlu0 %v1129, 4
      %v1166 = vpop.permute.xlu0 %1165
      %1167 = vrot.lane.b32.xlu0 %v1137, 4
      %v1168 = vpop.permute.xlu0 %1167
      %1169 = vrot.lane.b32.xlu0 %v1145, 4
      %v1170 = vpop.permute.xlu0 %1169
      %1171 = vrot.lane.b32.xlu0 %v1148, 4
      %v1172 = vpop.permute.xlu0 %1171
      %v1174 = vunpack.c.l.b16 %v992
      %v1175 = vpack.c.b16 %v1017, %v1174
      %v1176 = vrot.slane %v1175, 1
      %v1177 = vrot.slane %v1040, 1
      %v1178 = vsel %vm418, %v1176, %v1177
      %v1179 = vrot.slane %v1041, 1
      %v1180 = vsel %vm418, %v1177, %v1179
      %v1181 = vrot.slane %v1042, 1
      %v1182 = vsel %vm418, %v1179, %v1181
      %v1183 = vrot.slane %v1043, 1
      %v1184 = vsel %vm418, %v1181, %v1183
      %v1185 = vrot.slane %v1044, 1
      %v1186 = vsel %vm418, %v1183, %v1185
      %v1187 = vrot.slane %v1045, 1
      %v1188 = vsel %vm418, %v1185, %v1187
      %v1189 = vrot.slane %v1046, 1
      %v1190 = vsel %vm418, %v1187, %v1189
      %v1191 = vrot.slane %v1047, 1
      %v1192 = vsel %vm418, %v1189, %v1191
      %v1193 = vrot.slane %v1048, 1
      %v1194 = vsel %vm418, %v1191, %v1193
      %v1195 = vrot.slane %v1049, 1
      %v1196 = vsel %vm418, %v1193, %v1195
      %v1197 = vrot.slane %v1053, 1
      %v1198 = vsel %vm418, %v1195, %v1197
      %1199 = vrot.lane.b32.xlu0 %v1178, 8
      %v1200 = vpop.permute.xlu0 %1199
      %1201 = vrot.lane.b32.xlu0 %v1180, 8
      %v1202 = vpop.permute.xlu0 %1201
      %1203 = vrot.lane.b32.xlu0 %v1182, 8
      %v1204 = vpop.permute.xlu0 %1203
      %1205 = vrot.lane.b32.xlu0 %v1184, 8
      %v1206 = vpop.permute.xlu0 %1205
      %1207 = vrot.lane.b32.xlu0 %v1186, 8
      %v1208 = vpop.permute.xlu0 %1207
      %1209 = vrot.lane.b32.xlu0 %v1188, 8
      %v1210 = vpop.permute.xlu0 %1209
      %1211 = vrot.lane.b32.xlu0 %v1190, 8
      %v1212 = vpop.permute.xlu0 %1211
      %1213 = vrot.lane.b32.xlu0 %v1192, 8
      %v1214 = vpop.permute.xlu0 %1213
      %1215 = vrot.lane.b32.xlu0 %v1194, 8
      %v1216 = vpop.permute.xlu0 %1215
      %1217 = vrot.lane.b32.xlu0 %v1196, 8
      %v1218 = vpop.permute.xlu0 %1217
      %1219 = vrot.lane.b32.xlu0 %v1198, 8
      %v1220 = vpop.permute.xlu0 %1219
      %1221 = vrot.lane.b32.xlu0 %v1197, 8
      %v1222 = vpop.permute.xlu0 %1221
      %v1224 = vsel %vm466, %v1039, %v1150
      %v1226 = vsel %vm466, %v1040, %v1152
      %v1228 = vsel %vm466, %v1041, %v1154
      %v1230 = vsel %vm466, %v1042, %v1156
      %v1232 = vsel %vm466, %v1043, %v1158
      %v1234 = vsel %vm466, %v1044, %v1160
      %v1236 = vsel %vm466, %v1045, %v1162
      %v1238 = vsel %vm466, %v1046, %v1164
      %v1240 = vsel %vm466, %v1047, %v1166
      %v1242 = vsel %vm466, %v1048, %v1168
      %v1244 = vsel %vm466, %v1049, %v1170
      %v1247 = vsel %vm466, %v1050, %v1172
      %v1249 = vsel %vm492, %v1224, %v1200
      %v1251 = vsel %vm492, %v1226, %v1202
      %v1253 = vsel %vm492, %v1228, %v1204
      %v1255 = vsel %vm492, %v1230, %v1206
      %v1257 = vsel %vm492, %v1232, %v1208
      %v1259 = vsel %vm492, %v1234, %v1210
      %v1261 = vsel %vm492, %v1236, %v1212
      %v1263 = vsel %vm492, %v1238, %v1214
      %v1265 = vsel %vm492, %v1240, %v1216
      %v1267 = vsel %vm492, %v1242, %v1218
      %v1269 = vsel %vm492, %v1244, %v1220
      %v1271 = vsel %vm492, %v1247, %v1222
      %v1272 = vld [vmem:[%s1 + $0xc] sm:$0xf]
      %v1273 = vld [vmem:[%s1 + $0x10] sm:$0x3]
      %v1276 = vunpack.c.l.b16 %v1272
      %v1277 = vunpack.c.l.b16 %v1273
      %v1278 = vpack.c.b16 %v1277, %v1276
      %v1279 = vsel %vm771, %v1249, 0
      %v1281 = vsel %vm771, %v1251, 0
      %v1283 = vsel %vm771, %v1253, 0
      %v1285 = vsel %vm771, %v1255, 0
      %v1287 = vsel %vm771, %v1257, 0
      %v1289 = vsel %vm771, %v1259, 0
      %v1291 = vsel %vm771, %v1261, 0
      %v1293 = vsel %vm771, %v1263, 0
      %v1295 = vsel %vm771, %v1265, 0
      %v1297 = vsel %vm771, %v1267, 0
      %v1299 = vsel %vm771, %v1269, 0
      %v1301 = vsel %vm771, %v1271, 0
      %v1304 = vsel %vm796, %v1278, 0
      %1306 = vmatpush.bf16.msra.mxu0 0
      %1307 = vmatpush.bf16.msra.mxu0 0
      %1308 = vmatpush.bf16.msra.mxu0 0
      %1309 = vmatpush.bf16.msra.mxu0 0
      %1310 = vmatpush.bf16.msra.mxu0 0
      %1311 = vmatpush.bf16.msra.mxu0 0
      %1312 = vmatpush.bf16.msra.mxu0 0
      %1313 = vmatpush.bf16.msra.mxu0 %v1304
      %1314 = vmatmul.bf16.gmra.mxu0 %v1279
      %v1315 = vpop.f32.mrf.mxu0
      %v1316 = vadd.f32 0.0, %v1315
      %v1317 = vpop.f32.mrf.mxu0
      %v1318 = vadd.f32 0.0, %v1317
      %1319 = vmatmul.bf16.gmra.mxu0 %v1281
      %v1320 = vpop.f32.mrf.mxu0
      %v1321 = vadd.f32 0.0, %v1320
      %v1322 = vpop.f32.mrf.mxu0
      %v1323 = vadd.f32 0.0, %v1322
      %1324 = vmatmul.bf16.gmra.mxu0 %v1283
      %v1325 = vpop.f32.mrf.mxu0
      %v1326 = vadd.f32 0.0, %v1325
      %v1327 = vpop.f32.mrf.mxu0
      %v1328 = vadd.f32 0.0, %v1327
      %1329 = vmatmul.bf16.gmra.mxu0 %v1285
      %v1330 = vpop.f32.mrf.mxu0
      %v1331 = vadd.f32 0.0, %v1330
      %v1332 = vpop.f32.mrf.mxu0
      %v1333 = vadd.f32 0.0, %v1332
      %1334 = vmatmul.bf16.gmra.mxu0 %v1287
      %v1335 = vpop.f32.mrf.mxu0
      %v1336 = vadd.f32 0.0, %v1335
      %v1337 = vpop.f32.mrf.mxu0
      %v1338 = vadd.f32 0.0, %v1337
      %1339 = vmatmul.bf16.gmra.mxu0 %v1289
      %v1340 = vpop.f32.mrf.mxu0
      %v1341 = vadd.f32 0.0, %v1340
      %v1342 = vpop.f32.mrf.mxu0
      %v1343 = vadd.f32 0.0, %v1342
      %1344 = vmatmul.bf16.gmra.mxu0 %v1291
      %v1345 = vpop.f32.mrf.mxu0
      %v1346 = vadd.f32 0.0, %v1345
      %v1347 = vpop.f32.mrf.mxu0
      %v1348 = vadd.f32 0.0, %v1347
      %1349 = vmatmul.bf16.gmra.mxu0 %v1293
      %v1350 = vpop.f32.mrf.mxu0
      %v1351 = vadd.f32 0.0, %v1350
      %v1352 = vpop.f32.mrf.mxu0
      %v1353 = vadd.f32 0.0, %v1352
      %1354 = vmatmul.bf16.gmra.mxu0 %v1295
      %v1355 = vpop.f32.mrf.mxu0
      %v1356 = vadd.f32 0.0, %v1355
      %v1357 = vpop.f32.mrf.mxu0
      %v1358 = vadd.f32 0.0, %v1357
      %1359 = vmatmul.bf16.gmra.mxu0 %v1297
      %v1360 = vpop.f32.mrf.mxu0
      %v1361 = vadd.f32 0.0, %v1360
      %v1362 = vpop.f32.mrf.mxu0
      %v1363 = vadd.f32 0.0, %v1362
      %1364 = vmatmul.bf16.gmra.mxu0 %v1299
      %v1365 = vpop.f32.mrf.mxu0
      %v1366 = vadd.f32 0.0, %v1365
      %v1367 = vpop.f32.mrf.mxu0
      %v1368 = vadd.f32 0.0, %v1367
      %1369 = vmatmul.bf16.gmra.mxu0 %v1301
      %v1370 = vpop.f32.mrf.mxu0
      %v1371 = vadd.f32 0.0, %v1370
      %v1372 = vpop.f32.mrf.mxu0
      %1373 = vdwg.mxu0
      %v1374 = vadd.f32 %v910, %v1316
      %v1375 = vadd.f32 %v912, %v1318
      %v1376 = vadd.f32 %v915, %v1321
      %v1377 = vadd.f32 %v917, %v1323
      %v1378 = vadd.f32 %v920, %v1326
      %v1379 = vadd.f32 %v922, %v1328
      %v1380 = vadd.f32 %v925, %v1331
      %v1381 = vadd.f32 %v927, %v1333
      %v1382 = vadd.f32 %v930, %v1336
      %v1383 = vadd.f32 %v932, %v1338
      %v1384 = vadd.f32 %v935, %v1341
      %v1385 = vadd.f32 %v937, %v1343
      %v1386 = vadd.f32 %v940, %v1346
      %v1387 = vadd.f32 %v942, %v1348
      %v1388 = vadd.f32 %v945, %v1351
      %v1389 = vadd.f32 %v947, %v1353
      %v1390 = vadd.f32 %v950, %v1356
      %v1391 = vadd.f32 %v952, %v1358
      %v1392 = vadd.f32 %v955, %v1361
      %v1393 = vadd.f32 %v957, %v1363
      %v1394 = vadd.f32 %v960, %v1366
      %v1395 = vadd.f32 %v962, %v1368
      %v1396 = vadd.f32 %v965, %v1371
      %v1397 = vld [vmem:[%s2] sm:$0x1]
      %v1399 = vperm.slane %v1397, 0
      %v1401 = vadd.f32 %v1374, %v1399
      %v1402 = vadd.f32 %v1375, %v1399
      %v1403 = vadd.f32 %v1376, %v1399
      %v1404 = vadd.f32 %v1377, %v1399
      %v1405 = vadd.f32 %v1378, %v1399
      %v1406 = vadd.f32 %v1379, %v1399
      %v1407 = vadd.f32 %v1380, %v1399
      %v1408 = vadd.f32 %v1381, %v1399
      %v1409 = vadd.f32 %v1382, %v1399
      %v1410 = vadd.f32 %v1383, %v1399
      %v1411 = vadd.f32 %v1384, %v1399
      %v1412 = vadd.f32 %v1385, %v1399
      %v1413 = vadd.f32 %v1386, %v1399
      %v1414 = vadd.f32 %v1387, %v1399
      %v1415 = vadd.f32 %v1388, %v1399
      %v1416 = vadd.f32 %v1389, %v1399
      %v1417 = vadd.f32 %v1390, %v1399
      %v1418 = vadd.f32 %v1391, %v1399
      %v1419 = vadd.f32 %v1392, %v1399
      %v1420 = vadd.f32 %v1393, %v1399
      %v1421 = vadd.f32 %v1394, %v1399
      %v1422 = vadd.f32 %v1395, %v1399
      %v1423 = vadd.f32 %v1396, %v1399
      %v1424 = vmax.f32 %v1401, 0.0
      %v1425 = vmax.f32 %v1402, 0.0
      %v1426 = vmax.f32 %v1403, 0.0
      %v1427 = vmax.f32 %v1404, 0.0
      %v1428 = vmax.f32 %v1405, 0.0
      %v1429 = vmax.f32 %v1406, 0.0
      %v1430 = vmax.f32 %v1407, 0.0
      %v1431 = vmax.f32 %v1408, 0.0
      %v1432 = vmax.f32 %v1409, 0.0
      %v1433 = vmax.f32 %v1410, 0.0
      %v1434 = vmax.f32 %v1411, 0.0
      %v1435 = vmax.f32 %v1412, 0.0
      %v1436 = vmax.f32 %v1413, 0.0
      %v1437 = vmax.f32 %v1414, 0.0
      %v1438 = vmax.f32 %v1415, 0.0
      %v1439 = vmax.f32 %v1416, 0.0
      %v1440 = vmax.f32 %v1417, 0.0
      %v1441 = vmax.f32 %v1418, 0.0
      %v1442 = vmax.f32 %v1419, 0.0
      %v1443 = vmax.f32 %v1420, 0.0
      %v1444 = vmax.f32 %v1421, 0.0
      %v1445 = vmax.f32 %v1422, 0.0
      %v1446 = vmax.f32 %v1423, 0.0
      %1447 = vst.msk [vmem:[#allocation2] sm:$0xff] %vm492, %v1424
      %1448 = vst.msk [vmem:[#allocation2 + $0x8] sm:$0xff] %vm492, %v1425
      %1449 = vst.msk [vmem:[#allocation2 + $0x10] sm:$0xff] %vm492, %v1426
      %1450 = vst.msk [vmem:[#allocation2 + $0x18] sm:$0xff] %vm492, %v1427
      %1451 = vst.msk [vmem:[#allocation2 + $0x20] sm:$0xff] %vm492, %v1428
      %1452 = vst.msk [vmem:[#allocation2 + $0x28] sm:$0xff] %vm492, %v1429
      %1453 = vst.msk [vmem:[#allocation2 + $0x30] sm:$0xff] %vm492, %v1430
      %1454 = vst.msk [vmem:[#allocation2 + $0x38] sm:$0xff] %vm492, %v1431
      %1455 = vst.msk [vmem:[#allocation2 + $0x40] sm:$0xff] %vm492, %v1432
      %1456 = vst.msk [vmem:[#allocation2 + $0x48] sm:$0xff] %vm492, %v1433
      %1457 = vst.msk [vmem:[#allocation2 + $0x50] sm:$0xff] %vm492, %v1434
      %1458 = vst.msk [vmem:[#allocation2 + $0x58] sm:$0xff] %vm492, %v1435
      %1459 = vst.msk [vmem:[#allocation2 + $0x60] sm:$0xff] %vm492, %v1436
      %1460 = vst.msk [vmem:[#allocation2 + $0x68] sm:$0xff] %vm492, %v1437
      %1461 = vst.msk [vmem:[#allocation2 + $0x70] sm:$0xff] %vm492, %v1438
      %1462 = vst.msk [vmem:[#allocation2 + $0x78] sm:$0xff] %vm492, %v1439
      %1463 = vst.msk [vmem:[#allocation2 + $0x80] sm:$0xff] %vm492, %v1440
      %1464 = vst.msk [vmem:[#allocation2 + $0x88] sm:$0xff] %vm492, %v1441
      %1465 = vst.msk [vmem:[#allocation2 + $0x90] sm:$0xff] %vm492, %v1442
      %1466 = vst.msk [vmem:[#allocation2 + $0x98] sm:$0xff] %vm492, %v1443
      %1467 = vst.msk [vmem:[#allocation2 + $0xa0] sm:$0xff] %vm492, %v1444
      %1468 = vst.msk [vmem:[#allocation2 + $0xa8] sm:$0xff] %vm492, %v1445
      %1469 = vst.msk [vmem:[#allocation2 + $0xb0] sm:$0xff] %vm492, %v1446
      %v1470 = vld [vmem:[#allocation2] sm:$0xff]
      %v1471 = vld [vmem:[#allocation2 + $0x8] sm:$0xff]
      %v1472 = vpack.c.bf16 %v1470, %v1470
      %v1473 = vpack.c.bf16 %v1471, %v1471
      %vm1474 = vcmask 60416
      %1475 = vst.msk [vmem:[%s206] sm:$0xf] %vm1474, %v1472
      %1476 = vst.msk [vmem:[%s206 + $0x4] sm:$0xf] %vm1474, %v1473
      %v1477 = vld [vmem:[#allocation2 + $0x18] sm:$0xff]
      %v1478 = vld [vmem:[#allocation2 + $0x20] sm:$0xff]
      %v1479 = vpack.c.bf16 %v1477, %v1477
      %v1480 = vpack.c.bf16 %v1478, %v1478
      %1481 = vst.msk [vmem:[%s206 + $0x8] sm:$0xf] %vm1474, %v1479
      %1482 = vst.msk [vmem:[%s206 + $0xc] sm:$0xf] %vm1474, %v1480
      %v1483 = vld [vmem:[#allocation2 + $0x30] sm:$0xff]
      %v1484 = vld [vmem:[#allocation2 + $0x38] sm:$0xff]
      %v1485 = vpack.c.bf16 %v1483, %v1483
      %v1486 = vpack.c.bf16 %v1484, %v1484
      %1487 = vst.msk [vmem:[%s206 + $0x10] sm:$0xf] %vm1474, %v1485
      %1488 = vst.msk [vmem:[%s206 + $0x14] sm:$0xf] %vm1474, %v1486
      %v1489 = vld [vmem:[#allocation2 + $0x48] sm:$0xff]
      %v1490 = vld [vmem:[#allocation2 + $0x50] sm:$0xff]
      %v1491 = vpack.c.bf16 %v1489, %v1489
      %v1492 = vpack.c.bf16 %v1490, %v1490
      %1493 = vst.msk [vmem:[%s206 + $0x18] sm:$0xf] %vm1474, %v1491
      %1494 = vst.msk [vmem:[%s206 + $0x1c] sm:$0xf] %vm1474, %v1492
      %v1495 = vld [vmem:[#allocation2 + $0x60] sm:$0xff]
      %v1496 = vld [vmem:[#allocation2 + $0x68] sm:$0xff]
      %v1497 = vpack.c.bf16 %v1495, %v1495
      %v1498 = vpack.c.bf16 %v1496, %v1496
      %1499 = vst.msk [vmem:[%s206 + $0x20] sm:$0xf] %vm1474, %v1497
      %1500 = vst.msk [vmem:[%s206 + $0x24] sm:$0xf] %vm1474, %v1498
      %v1501 = vld [vmem:[#allocation2 + $0x78] sm:$0xff]
      %v1502 = vld [vmem:[#allocation2 + $0x80] sm:$0xff]
      %v1503 = vpack.c.bf16 %v1501, %v1501
      %v1504 = vpack.c.bf16 %v1502, %v1502
      %1505 = vst.msk [vmem:[%s206 + $0x28] sm:$0xf] %vm1474, %v1503
      %1506 = vst.msk [vmem:[%s206 + $0x2c] sm:$0xf] %vm1474, %v1504
      %v1507 = vld [vmem:[#allocation2 + $0x90] sm:$0xff]
      %v1508 = vld [vmem:[#allocation2 + $0x98] sm:$0xff]
      %v1509 = vpack.c.bf16 %v1507, %v1507
      %v1510 = vpack.c.bf16 %v1508, %v1508
      %1511 = vst.msk [vmem:[%s206 + $0x30] sm:$0xf] %vm1474, %v1509
      %1512 = vst.msk [vmem:[%s206 + $0x34] sm:$0xf] %vm1474, %v1510
      %v1513 = vld [vmem:[#allocation2 + $0xa8] sm:$0xff]
      %v1514 = vld [vmem:[#allocation2 + $0xb0] sm:$0xff]
      %v1515 = vpack.c.bf16 %v1513, %v1513
      %v1516 = vpack.c.bf16 %v1514, %v1514
      %1517 = vst.msk [vmem:[%s206 + $0x38] sm:$0xf] %vm1474, %v1515
      %1518 = vst.msk [vmem:[%s206 + $0x3c] sm:$0xf] %vm1474, %v1516
      %s1519 = smul.u32 16, %s19
      %p1520 = scmp.lt.s32.totalorder %s18, 1
      %s1521 = scalar_select %p1520, %s18, 1
      %p1522 = scmp.lt.s32.totalorder %s1519, 31
      %s1523 = scalar_select %p1522, %s1519, 31
      %s1524 = smul.addr %s1521, 32
      %s1525 = sadd.s32 %s1523, %s1524
      %s1526 = smul.addr %s1525, 4
      %s1527 = scalar_lea.vmem %s3, %s1526
      // Predicated region
      $region33: #{mtan_down_pallas.4} parent=31 // pred_check
        %p1528 = pneg %p116
      $region34: #{mtan_down_pallas.4} parent=31 // pred_check_branch
        %1530 = sbr.rel (%p1528) target = $region36
      $region35: #{mtan_down_pallas.4} parent=31 // pred_region
        %s1531 = smul.u32 16, %s19
      $region36: #{mtan_down_pallas.4} parent=31 // pred_fallthru
        _
    $region32: #{mtan_down_pallas.4} parent=5 // pred_fallthru
      _
    %p1532 = scmp.le.s32.totalorder 2, %s9
    // Predicated region
    $region37: #{mtan_down_pallas.4} parent=5 // pred_check
      %p1533 = pneg %p1532
    $region38: #{mtan_down_pallas.4} parent=5 // pred_check_branch
      %1535 = sbr.rel (%p1533) target = $region40
    $region39: #{mtan_down_pallas.4} parent=5 // pred_region
      %s1536 = ssub.s32 %s9, 2
      // Predicated region
      $region41: #{mtan_down_pallas.4} parent=39 // pred_check
        %p1537 = pneg %p122
      $region42: #{mtan_down_pallas.4} parent=39 // pred_check_branch
        %1539 = sbr.rel (%p1537) target = $region44
      $region43: #{mtan_down_pallas.4} parent=39 // pred_region
        %s1540 = smul.u32 16, %s21
        %p1541 = scmp.lt.s32.totalorder %s20, 1
        %s1542 = scalar_select %p1541, %s20, 1
        %p1543 = scmp.lt.s32.totalorder %s1540, 31
        %s1544 = scalar_select %p1543, %s1540, 31
        %s1545 = smul.addr %s1542, 32
        %s1546 = sadd.s32 %s1544, %s1545
        %s1547 = smul.addr %s1546, 4
        %s1548 = scalar_lea.vmem %s3, %s1547
      $region44: #{mtan_down_pallas.4} parent=39 // pred_fallthru
        _
    $region40: #{mtan_down_pallas.4} parent=5 // pred_fallthru
      _
  $region6: #{mtan_down_pallas.4} parent=0 // loop_footer
    %s13 = sadd.s32 1, %s9
  $region7: #{mtan_down_pallas.4} parent=0 // loop_footer_branch
    %8 = sbr.rel target = $region3
  $region8: #{mtan_down_pallas.4} parent=0 // loop_exit
    _

// kernel: mtan_down_pallas.6
$region0: #{mtan_down_pallas.6}
  #allocation0 [shape = 'u32[]', space=smem, size = 0x4, offset = 0x4, fixed_abs, tag = 'smem constant byte address 0x4 - core index']
  #allocation1 [shape = 'u32[72,128]{1,0:T(1,128)}', space=vmem, size = 0x9000, scoped, tag = 'internal scratch']
  %s0 = inlined_call_operand.vmem [shape: bf16[512,4], index: 0, kind: input, shape index: {}]
  %s1 = inlined_call_operand.vmem [shape: bf16[512,8], index: 1, kind: input, shape index: {}]
  %s2 = inlined_call_operand.vmem [shape: bf16[4,64], index: 2, kind: input, shape index: {}]
  %s3 = inlined_call_operand.vmem [shape: f32[1,64], index: 3, kind: input, shape index: {}]
  %s4 = inlined_call_operand.vmem [shape: bf16[64,16], index: 4, kind: input, shape index: {}]
  %s5 = inlined_call_operand.vmem [shape: f32[1,16], index: 5, kind: input, shape index: {}]
  %s6 = inlined_call_operand.vmem [shape: bf16[512,16], index: 6, kind: output, shape index: {}]
  %s7 = sld [smem:[#allocation0]]
  $region57: #{mtan_down_pallas.6} parent=0
    _
  %s9 = ssub.s32 1, %s7
  %s10 = scalar_select 0, %s9, %s7
  loop: start=0, step=1, limit=6
  $region2: #{mtan_down_pallas.6} parent=0 // loop_pre_header
    _
  $region3: #{mtan_down_pallas.6} parent=0 // loop_header
    %s12 = sphi 0, %s16
    %p13 = scmp.ge.s32.totalorder %s12, 6
    %s22 = sphi 0, %s24
    %s25 = sphi 0, %s22
    %s26 = sphi 0, %s25
    %s42 = sphi 0, %s26
    %s48 = sphi 0, %s50
    %s51 = sphi 0, %s48
    %s52 = sphi 0, %s51
    %s68 = sphi 0, %s52
    %s72 = sphi 0, %s72
    %s74 = sphi 0, %s72
    %s75 = sphi 0, %s74
    %s89 = sphi 0, %s75
    %s93 = sphi 0, %s93
    %s95 = sphi 0, %s93
    %s96 = sphi 0, %s95
    %s110 = sphi 0, %s96
    %s114 = sphi 0, %s114
    %s116 = sphi 0, %s114
    %s117 = sphi 0, %s116
    %s131 = sphi 0, %s117
    %s135 = sphi 0, %s135
    %s137 = sphi 0, %s135
    %s138 = sphi 0, %s137
    %s152 = sphi 0, %s138
    %s158 = sphi 0, %s160
    %s161 = sphi 0, %s158
    %s162 = sphi 0, %s161
    %s178 = sphi 0, %s162
  $region4: #{mtan_down_pallas.6} parent=0 // loop_header_branch
    %15 = sbr.rel (%p13) target = $region8
  $region5: #{mtan_down_pallas.6} parent=0 // loop_body
    %s17 = ssub.s32 %s12, 1
    %s18 = ssub.s32 %s12, 2
    %s19 = sadd.s32 %s12, 1
    %s20 = ssub.s32 %s12, %s19
    %p21 = scmp.eq.s32.totalorder %s20, 0
    %s23 = sadd.s32 %s22, 1
    %s24 = scalar_select %p21, %s22, %s23
    %p27 = pneg %p21
    %p28 = scmp.eq.s32.totalorder %s12, 3
    %p29 = por %p27, %p28
    %p30 = scmp.ne.s32.totalorder %s22, %s25
    %p31 = scmp.eq.s32.totalorder %s12, 0
    %p32 = por %p30, %p31
    %p33 = scmp.ne.s32.totalorder %s22, %s25
    %p34 = scmp.eq.s32.totalorder %s17, 3
    %p35 = por %p33, %p34
    %p36 = scmp.ne.s32.totalorder %s25, %s26
    %p37 = scmp.eq.s32.totalorder %s17, 0
    %p38 = por %p36, %p37
    %p39 = scmp.ne.s32.totalorder %s25, %s26
    %p40 = scmp.eq.s32.totalorder %s18, 3
    %p41 = por %p39, %p40
    %p43 = scmp.ne.s32.totalorder %s26, %s42
    %p44 = scmp.eq.s32.totalorder %s18, 0
    %p45 = por %p43, %p44
    %s46 = ssub.s32 %s12, %s19
    %p47 = scmp.eq.s32.totalorder %s46, 0
    %s49 = sadd.s32 %s48, 1
    %s50 = scalar_select %p47, %s48, %s49
    %p53 = pneg %p47
    %p54 = scmp.eq.s32.totalorder %s12, 3
    %p55 = por %p53, %p54
    %p56 = scmp.ne.s32.totalorder %s48, %s51
    %p57 = scmp.eq.s32.totalorder %s12, 0
    %p58 = por %p56, %p57
    %p59 = scmp.ne.s32.totalorder %s48, %s51
    %p60 = scmp.eq.s32.totalorder %s17, 3
    %p61 = por %p59, %p60
    %p62 = scmp.ne.s32.totalorder %s51, %s52
    %p63 = scmp.eq.s32.totalorder %s17, 0
    %p64 = por %p62, %p63
    %p65 = scmp.ne.s32.totalorder %s51, %s52
    %p66 = scmp.eq.s32.totalorder %s18, 3
    %p67 = por %p65, %p66
    %p69 = scmp.ne.s32.totalorder %s52, %s68
    %p70 = scmp.eq.s32.totalorder %s18, 0
    %p71 = por %p69, %p70
    %s73 = sadd.s32 %s72, 1
    %p76 = scmp.eq.s32.totalorder %s12, 3
    %p77 = scmp.ne.s32.totalorder %s72, %s74
    %p78 = scmp.eq.s32.totalorder %s12, 0
    %p79 = por %p77, %p78
    %p80 = scmp.ne.s32.totalorder %s72, %s74
    %p81 = scmp.eq.s32.totalorder %s17, 3
    %p82 = por %p80, %p81
    %p83 = scmp.ne.s32.totalorder %s74, %s75
    %p84 = scmp.eq.s32.totalorder %s17, 0
    %p85 = por %p83, %p84
    %p86 = scmp.ne.s32.totalorder %s74, %s75
    %p87 = scmp.eq.s32.totalorder %s18, 3
    %p88 = por %p86, %p87
    %p90 = scmp.ne.s32.totalorder %s75, %s89
    %p91 = scmp.eq.s32.totalorder %s18, 0
    %p92 = por %p90, %p91
    %s94 = sadd.s32 %s93, 1
    %p97 = scmp.eq.s32.totalorder %s12, 3
    %p98 = scmp.ne.s32.totalorder %s93, %s95
    %p99 = scmp.eq.s32.totalorder %s12, 0
    %p100 = por %p98, %p99
    %p101 = scmp.ne.s32.totalorder %s93, %s95
    %p102 = scmp.eq.s32.totalorder %s17, 3
    %p103 = por %p101, %p102
    %p104 = scmp.ne.s32.totalorder %s95, %s96
    %p105 = scmp.eq.s32.totalorder %s17, 0
    %p106 = por %p104, %p105
    %p107 = scmp.ne.s32.totalorder %s95, %s96
    %p108 = scmp.eq.s32.totalorder %s18, 3
    %p109 = por %p107, %p108
    %p111 = scmp.ne.s32.totalorder %s96, %s110
    %p112 = scmp.eq.s32.totalorder %s18, 0
    %p113 = por %p111, %p112
    %s115 = sadd.s32 %s114, 1
    %p118 = scmp.eq.s32.totalorder %s12, 3
    %p119 = scmp.ne.s32.totalorder %s114, %s116
    %p120 = scmp.eq.s32.totalorder %s12, 0
    %p121 = por %p119, %p120
    %p122 = scmp.ne.s32.totalorder %s114, %s116
    %p123 = scmp.eq.s32.totalorder %s17, 3
    %p124 = por %p122, %p123
    %p125 = scmp.ne.s32.totalorder %s116, %s117
    %p126 = scmp.eq.s32.totalorder %s17, 0
    %p127 = por %p125, %p126
    %p128 = scmp.ne.s32.totalorder %s116, %s117
    %p129 = scmp.eq.s32.totalorder %s18, 3
    %p130 = por %p128, %p129
    %p132 = scmp.ne.s32.totalorder %s117, %s131
    %p133 = scmp.eq.s32.totalorder %s18, 0
    %p134 = por %p132, %p133
    %s136 = sadd.s32 %s135, 1
    %p139 = scmp.eq.s32.totalorder %s12, 3
    %p140 = scmp.ne.s32.totalorder %s135, %s137
    %p141 = scmp.eq.s32.totalorder %s12, 0
    %p142 = por %p140, %p141
    %p143 = scmp.ne.s32.totalorder %s135, %s137
    %p144 = scmp.eq.s32.totalorder %s17, 3
    %p145 = por %p143, %p144
    %p146 = scmp.ne.s32.totalorder %s137, %s138
    %p147 = scmp.eq.s32.totalorder %s17, 0
    %p148 = por %p146, %p147
    %p149 = scmp.ne.s32.totalorder %s137, %s138
    %p150 = scmp.eq.s32.totalorder %s18, 3
    %p151 = por %p149, %p150
    %p153 = scmp.ne.s32.totalorder %s138, %s152
    %p154 = scmp.eq.s32.totalorder %s18, 0
    %p155 = por %p153, %p154
    %s156 = ssub.s32 %s12, %s19
    %p157 = scmp.eq.s32.totalorder %s156, 0
    %s159 = sadd.s32 %s158, 1
    %s160 = scalar_select %p157, %s158, %s159
    %p163 = pneg %p157
    %p164 = scmp.eq.s32.totalorder %s12, 3
    %p165 = por %p163, %p164
    %p166 = scmp.ne.s32.totalorder %s158, %s161
    %p167 = scmp.eq.s32.totalorder %s12, 0
    %p168 = por %p166, %p167
    %p169 = scmp.ne.s32.totalorder %s158, %s161
    %p170 = scmp.eq.s32.totalorder %s17, 3
    %p171 = por %p169, %p170
    %p172 = scmp.ne.s32.totalorder %s161, %s162
    %p173 = scmp.eq.s32.totalorder %s17, 0
    %p174 = por %p172, %p173
    %p175 = scmp.ne.s32.totalorder %s161, %s162
    %p176 = scmp.eq.s32.totalorder %s18, 3
    %p177 = por %p175, %p176
    %p179 = scmp.ne.s32.totalorder %s162, %s178
    %p180 = scmp.eq.s32.totalorder %s18, 0
    %p181 = por %p179, %p180
    %p182 = scmp.le.s32.totalorder 1, %s12
    %p183 = scmp.lt.s32.totalorder %s12, 5
    %p184 = pnand %p182, %p183
    %p185 = pneg %p184
    // Predicated region
    $region9: #{mtan_down_pallas.6} parent=5 // pred_check
      _
    $region10: #{mtan_down_pallas.6} parent=5 // pred_check_branch
      %187 = sbr.rel (%p184) target = $region12
    $region11: #{mtan_down_pallas.6} parent=5 // pred_region
      %s188 = ssub.s32 %s12, 1
      // Predicated region
      $region13: #{mtan_down_pallas.6} parent=11 // pred_check
        %p189 = pneg %p85
      $region14: #{mtan_down_pallas.6} parent=11 // pred_check_branch
        %191 = sbr.rel (%p189) target = $region16
      $region15: #{mtan_down_pallas.6} parent=11 // pred_region
        _
      $region16: #{mtan_down_pallas.6} parent=11 // pred_fallthru
        _
      // Predicated region
      $region17: #{mtan_down_pallas.6} parent=11 // pred_check
        %p192 = pneg %p106
      $region18: #{mtan_down_pallas.6} parent=11 // pred_check_branch
        %194 = sbr.rel (%p192) target = $region20
      $region19: #{mtan_down_pallas.6} parent=11 // pred_region
        _
      $region20: #{mtan_down_pallas.6} parent=11 // pred_fallthru
        _
      // Predicated region
      $region21: #{mtan_down_pallas.6} parent=11 // pred_check
        %p195 = pneg %p127
      $region22: #{mtan_down_pallas.6} parent=11 // pred_check_branch
        %197 = sbr.rel (%p195) target = $region24
      $region23: #{mtan_down_pallas.6} parent=11 // pred_region
        _
      $region24: #{mtan_down_pallas.6} parent=11 // pred_fallthru
        _
      // Predicated region
      $region25: #{mtan_down_pallas.6} parent=11 // pred_check
        %p198 = pneg %p148
      $region26: #{mtan_down_pallas.6} parent=11 // pred_check_branch
        %200 = sbr.rel (%p198) target = $region28
      $region27: #{mtan_down_pallas.6} parent=11 // pred_region
        _
      $region28: #{mtan_down_pallas.6} parent=11 // pred_fallthru
        _
    $region12: #{mtan_down_pallas.6} parent=5 // pred_fallthru
      _
    %p201 = scmp.lt.s32.totalorder %s12, 4
    // Predicated region
    $region29: #{mtan_down_pallas.6} parent=5 // pred_check
      %p202 = pneg %p201
    $region30: #{mtan_down_pallas.6} parent=5 // pred_check_branch
      %204 = sbr.rel (%p202) target = $region32
    $region31: #{mtan_down_pallas.6} parent=5 // pred_region
      // Predicated region
      $region33: #{mtan_down_pallas.6} parent=31 // pred_check
        %p205 = pneg %p32
      $region34: #{mtan_down_pallas.6} parent=31 // pred_check_branch
        %207 = sbr.rel (%p205) target = $region36
      $region35: #{mtan_down_pallas.6} parent=31 // pred_region
        %s208 = smul.u32 16, %s12
        %p209 = scmp.lt.s32.totalorder %s208, 63
        %s210 = scalar_select %p209, %s208, 63
        %s211 = smul.addr %s210, 4
        %s212 = scalar_lea.vmem %s0, %s211
        %s213 = smul.u32 16, %s12
      $region36: #{mtan_down_pallas.6} parent=31 // pred_fallthru
        _
      // Predicated region
      $region37: #{mtan_down_pallas.6} parent=31 // pred_check
        %p214 = pneg %p58
      $region38: #{mtan_down_pallas.6} parent=31 // pred_check_branch
        %216 = sbr.rel (%p214) target = $region40
      $region39: #{mtan_down_pallas.6} parent=31 // pred_region
        %s217 = smul.u32 16, %s12
        %p218 = scmp.lt.s32.totalorder %s217, 63
        %s219 = scalar_select %p218, %s217, 63
        %s220 = smul.addr %s219, 4
        %s221 = scalar_lea.vmem %s1, %s220
        %s222 = smul.u32 16, %s12
      $region40: #{mtan_down_pallas.6} parent=31 // pred_fallthru
        _
    $region32: #{mtan_down_pallas.6} parent=5 // pred_fallthru
      _
    %p223 = scmp.le.s32.totalorder 1, %s12
    %p224 = scmp.lt.s32.totalorder %s12, 5
    %p225 = pnand %p223, %p224
    %p226 = pneg %p225
    // Predicated region
    $region41: #{mtan_down_pallas.6} parent=5 // pred_check
      _
    $region42: #{mtan_down_pallas.6} parent=5 // pred_check_branch
      %228 = sbr.rel (%p225) target = $region44
    $region43: #{mtan_down_pallas.6} parent=5 // pred_region
      %s229 = ssub.s32 %s12, 1
      %s230 = smul.u32 16, %s17
      %p231 = scmp.lt.s32.totalorder %s230, 63
      %s232 = scalar_select %p231, %s230, 63
      %s233 = smul.addr %s232, 4
      %s234 = scalar_lea.vmem %s0, %s233
      %p235 = pneg %p38
      %p236 = pneg %p35
      %s237 = smul.u32 16, %s17
      %p238 = scmp.lt.s32.totalorder %s237, 63
      %s239 = scalar_select %p238, %s237, 63
      %s240 = smul.addr %s239, 4
      %s241 = scalar_lea.vmem %s1, %s240
      %p242 = pneg %p64
      %p243 = pneg %p61
      %p244 = pneg %p85
      %p245 = pneg %p82
      %p246 = pneg %p106
      %p247 = pneg %p103
      %p248 = pneg %p127
      %p249 = pneg %p124
      %p250 = pneg %p148
      %p251 = pneg %p145
      %p252 = pneg %p174
      %p253 = pneg %p171
      %s254 = smul.u32 16, %s17
      %p255 = scmp.lt.s32.totalorder %s254, 63
      %s256 = scalar_select %p255, %s254, 63
      %s257 = smul.addr %s256, 4
      %s258 = scalar_lea.vmem %s6, %s257
      %s259 = smul.u32 16, %s17
      %p260 = scmp.lt.s32.totalorder %s259, 63
      %s261 = scalar_select %p260, %s259, 63
      %s262 = smul.addr %s261, 4
      %s263 = scalar_lea.vmem %s0, %s262
      %s264 = smul.u32 16, %s17
      %s265 = smul.u32 16, %s17
      %p266 = scmp.lt.s32.totalorder %s265, 63
      %s267 = scalar_select %p266, %s265, 63
      %s268 = smul.addr %s267, 4
      %s269 = scalar_lea.vmem %s1, %s268
      %s270 = smul.u32 16, %s17
      %s271 = smul.u32 16, %s17
      %p272 = scmp.lt.s32.totalorder %s271, 63
      %s273 = scalar_select %p272, %s271, 63
      %s274 = smul.addr %s273, 4
      %s275 = scalar_lea.vmem %s6, %s274
      %s276 = smul.u32 16, %s17
      %v278 = vld [vmem:[%s263] sm:$0xf]
      %v279 = vld [vmem:[%s263 + $0x4] sm:$0xf]
      %v280 = vld [vmem:[%s263 + $0x8] sm:$0xf]
      %v281 = vld [vmem:[%s263 + $0xc] sm:$0xf]
      %v282 = vld [vmem:[%s263 + $0x10] sm:$0xf]
      %v283 = vld [vmem:[%s263 + $0x14] sm:$0xf]
      %v284 = vld [vmem:[%s263 + $0x18] sm:$0xf]
      %v285 = vld [vmem:[%s263 + $0x1c] sm:$0xf]
      %v286 = vld [vmem:[%s263 + $0x20] sm:$0xf]
      %v287 = vld [vmem:[%s263 + $0x24] sm:$0xf]
      %v288 = vld [vmem:[%s263 + $0x28] sm:$0xf]
      %v289 = vld [vmem:[%s263 + $0x2c] sm:$0xf]
      %v290 = vld [vmem:[%s263 + $0x30] sm:$0xf]
      %v291 = vld [vmem:[%s263 + $0x34] sm:$0xf]
      %v292 = vld [vmem:[%s263 + $0x38] sm:$0xf]
      %v293 = vld [vmem:[%s263 + $0x3c] sm:$0xf]
      %v294 = vld [vmem:[%s2] sm:$0x3]
      %v295 = vld [vmem:[%s3] sm:$0x1]
      %v297 = vperm.slane %v295, 0
      %v315 = vunpack.c.l.b16 %v278
      %v316 = vunpack.c.l.b16 %v279
      %v317 = vunpack.c.l.b16 %v280
      %v318 = vunpack.c.l.b16 %v281
      %v319 = vunpack.c.l.b16 %v282
      %v320 = vunpack.c.l.b16 %v283
      %v321 = vunpack.c.l.b16 %v284
      %v322 = vunpack.c.l.b16 %v285
      %v323 = vunpack.c.l.b16 %v286
      %v324 = vunpack.c.l.b16 %v287
      %v325 = vunpack.c.l.b16 %v288
      %v326 = vunpack.c.l.b16 %v289
      %v327 = vunpack.c.l.b16 %v290
      %v328 = vunpack.c.l.b16 %v291
      %v329 = vunpack.c.l.b16 %v292
      %v330 = vunpack.c.l.b16 %v293
      %v331 = vpack.c.b16 %v316, %v315
      %v332 = vpack.c.b16 %v318, %v317
      %v333 = vpack.c.b16 %v320, %v319
      %v334 = vpack.c.b16 %v322, %v321
      %v335 = vpack.c.b16 %v324, %v323
      %v336 = vpack.c.b16 %v326, %v325
      %v337 = vpack.c.b16 %v328, %v327
      %v338 = vpack.c.b16 %v330, %v329
      %vm339 = vcmask 31744
      %v341 = vsel %vm339, %v331, 0
      %v344 = vsel %vm339, %v332, 0
      %v347 = vsel %vm339, %v333, 0
      %v350 = vsel %vm339, %v334, 0
      %v353 = vsel %vm339, %v335, 0
      %v356 = vsel %vm339, %v336, 0
      %v359 = vsel %vm339, %v337, 0
      %v362 = vsel %vm339, %v338, 0
      %vm364 = vcmask 1041408
      %v366 = vsel %vm364, %v294, 0
      %368 = vmatpush.bf16.msra.mxu0 0
      %369 = vmatpush.bf16.msra.mxu0 0
      %370 = vmatpush.bf16.msra.mxu0 0
      %371 = vmatpush.bf16.msra.mxu0 0
      %372 = vmatpush.bf16.msra.mxu0 0
      %373 = vmatpush.bf16.msra.mxu0 0
      %374 = vmatpush.bf16.msra.mxu0 0
      %375 = vmatpush.bf16.msra.mxu0 %v366
      %376 = vmatmul.bf16.gmra.mxu0 %v341
      %v377 = vpop.f32.mrf.mxu0
      %v378 = vadd.f32 %v297, %v377
      %v379 = vpop.f32.mrf.mxu0
      %v380 = vadd.f32 %v297, %v379
      %381 = vmatmul.bf16.gmra.mxu0 %v344
      %v382 = vpop.f32.mrf.mxu0
      %v383 = vadd.f32 %v297, %v382
      %v384 = vpop.f32.mrf.mxu0
      %v385 = vadd.f32 %v297, %v384
      %386 = vmatmul.bf16.gmra.mxu0 %v347
      %v387 = vpop.f32.mrf.mxu0
      %v388 = vadd.f32 %v297, %v387
      %v389 = vpop.f32.mrf.mxu0
      %v390 = vadd.f32 %v297, %v389
      %391 = vmatmul.bf16.gmra.mxu0 %v350
      %v392 = vpop.f32.mrf.mxu0
      %v393 = vadd.f32 %v297, %v392
      %v394 = vpop.f32.mrf.mxu0
      %v395 = vadd.f32 %v297, %v394
      %396 = vmatmul.bf16.gmra.mxu0 %v353
      %v397 = vpop.f32.mrf.mxu0
      %v398 = vadd.f32 %v297, %v397
      %v399 = vpop.f32.mrf.mxu0
      %v400 = vadd.f32 %v297, %v399
      %401 = vmatmul.bf16.gmra.mxu0 %v356
      %v402 = vpop.f32.mrf.mxu0
      %v403 = vadd.f32 %v297, %v402
      %v404 = vpop.f32.mrf.mxu0
      %v405 = vadd.f32 %v297, %v404
      %406 = vmatmul.bf16.gmra.mxu0 %v359
      %v407 = vpop.f32.mrf.mxu0
      %v408 = vadd.f32 %v297, %v407
      %v409 = vpop.f32.mrf.mxu0
      %v410 = vadd.f32 %v297, %v409
      %411 = vmatmul.bf16.gmra.mxu0 %v362
      %v412 = vpop.f32.mrf.mxu0
      %v413 = vadd.f32 %v297, %v412
      %v414 = vpop.f32.mrf.mxu0
      %v415 = vadd.f32 %v297, %v414
      %416 = vdwg.mxu0
      %v417 = vmax.f32 %v378, 0.0
      %v418 = vmax.f32 %v380, 0.0
      %v419 = vmax.f32 %v383, 0.0
      %v420 = vmax.f32 %v385, 0.0
      %v421 = vmax.f32 %v388, 0.0
      %v422 = vmax.f32 %v390, 0.0
      %v423 = vmax.f32 %v393, 0.0
      %v424 = vmax.f32 %v395, 0.0
      %v425 = vmax.f32 %v398, 0.0
      %v426 = vmax.f32 %v400, 0.0
      %v427 = vmax.f32 %v403, 0.0
      %v428 = vmax.f32 %v405, 0.0
      %v429 = vmax.f32 %v408, 0.0
      %v430 = vmax.f32 %v410, 0.0
      %v431 = vmax.f32 %v413, 0.0
      %v432 = vmax.f32 %v415, 0.0
      %v433 = vpack.c.bf16 %v418, %v417
      %v434 = vpack.c.bf16 %v420, %v419
      %v435 = vpack.c.bf16 %v422, %v421
      %v436 = vpack.c.bf16 %v424, %v423
      %v437 = vpack.c.bf16 %v426, %v425
      %v438 = vpack.c.bf16 %v428, %v427
      %v439 = vpack.c.bf16 %v430, %v429
      %v440 = vpack.c.bf16 %v432, %v431
      %v441 = vld [vmem:[%s4] sm:$0xf]
      %v442 = vld [vmem:[%s4 + $0x4] sm:$0xf]
      %v443 = vld [vmem:[%s4 + $0x8] sm:$0xf]
      %v444 = vld [vmem:[%s4 + $0xc] sm:$0xf]
      %v445 = vld [vmem:[%s4 + $0x10] sm:$0xf]
      %v446 = vld [vmem:[%s4 + $0x14] sm:$0xf]
      %v447 = vld [vmem:[%s4 + $0x18] sm:$0xf]
      %v448 = vld [vmem:[%s4 + $0x1c] sm:$0xf]
      %v449 = vld [vmem:[%s5] sm:$0x1]
      %v451 = vperm.slane %v449, 0
      %v461 = vunpack.c.l.b16 %v441
      %v462 = vunpack.c.l.b16 %v442
      %v463 = vunpack.c.l.b16 %v443
      %v464 = vunpack.c.l.b16 %v444
      %v465 = vunpack.c.l.b16 %v445
      %v466 = vunpack.c.l.b16 %v446
      %v467 = vunpack.c.l.b16 %v447
      %v468 = vunpack.c.l.b16 %v448
      %v469 = vpack.c.b16 %v462, %v461
      %v470 = vpack.c.b16 %v464, %v463
      %v471 = vpack.c.b16 %v466, %v465
      %v472 = vpack.c.b16 %v468, %v467
      %vm477 = vcmask 523264
      %v479 = vsel %vm477, %v433, 0
      %v482 = vsel %vm477, %v434, 0
      %v485 = vsel %vm477, %v435, 0
      %v488 = vsel %vm477, %v436, 0
      %v491 = vsel %vm477, %v437, 0
      %v494 = vsel %vm477, %v438, 0
      %v497 = vsel %vm477, %v439, 0
      %v500 = vsel %vm477, %v440, 0
      %502 = vmatpush.bf16.msra.mxu0 0
      %503 = vmatpush.bf16.msra.mxu0 0
      %504 = vmatpush.bf16.msra.mxu0 0
      %505 = vmatpush.bf16.msra.mxu0 0
      %506 = vmatpush.bf16.msra.mxu0 %v472
      %507 = vmatpush.bf16.msra.mxu0 %v471
      %508 = vmatpush.bf16.msra.mxu0 %v470
      %509 = vmatpush.bf16.msra.mxu0 %v469
      %510 = vmatmul.bf16.gmra.mxu0 %v479
      %v511 = vpop.f32.mrf.mxu0
      %v512 = vadd.f32 %v451, %v511
      %v513 = vpop.f32.mrf.mxu0
      %v514 = vadd.f32 %v451, %v513
      %515 = vmatmul.bf16.gmra.mxu0 %v482
      %v516 = vpop.f32.mrf.mxu0
      %v517 = vadd.f32 %v451, %v516
      %v518 = vpop.f32.mrf.mxu0
      %v519 = vadd.f32 %v451, %v518
      %520 = vmatmul.bf16.gmra.mxu0 %v485
      %v521 = vpop.f32.mrf.mxu0
      %v522 = vadd.f32 %v451, %v521
      %v523 = vpop.f32.mrf.mxu0
      %v524 = vadd.f32 %v451, %v523
      %525 = vmatmul.bf16.gmra.mxu0 %v488
      %v526 = vpop.f32.mrf.mxu0
      %v527 = vadd.f32 %v451, %v526
      %v528 = vpop.f32.mrf.mxu0
      %v529 = vadd.f32 %v451, %v528
      %530 = vmatmul.bf16.gmra.mxu0 %v491
      %v531 = vpop.f32.mrf.mxu0
      %v532 = vadd.f32 %v451, %v531
      %v533 = vpop.f32.mrf.mxu0
      %v534 = vadd.f32 %v451, %v533
      %535 = vmatmul.bf16.gmra.mxu0 %v494
      %v536 = vpop.f32.mrf.mxu0
      %v537 = vadd.f32 %v451, %v536
      %v538 = vpop.f32.mrf.mxu0
      %v539 = vadd.f32 %v451, %v538
      %540 = vmatmul.bf16.gmra.mxu0 %v497
      %v541 = vpop.f32.mrf.mxu0
      %v542 = vadd.f32 %v451, %v541
      %v543 = vpop.f32.mrf.mxu0
      %v544 = vadd.f32 %v451, %v543
      %545 = vmatmul.bf16.gmra.mxu0 %v500
      %v546 = vpop.f32.mrf.mxu0
      %v547 = vadd.f32 %v451, %v546
      %v548 = vpop.f32.mrf.mxu0
      %v549 = vadd.f32 %v451, %v548
      %550 = vdwg.mxu0
      %v551 = vxor.u32 %v512, 2147483648
      %v552 = vxor.u32 %v514, 2147483648
      %v553 = vxor.u32 %v517, 2147483648
      %v554 = vxor.u32 %v519, 2147483648
      %v555 = vxor.u32 %v522, 2147483648
      %v556 = vxor.u32 %v524, 2147483648
      %v557 = vxor.u32 %v527, 2147483648
      %v558 = vxor.u32 %v529, 2147483648
      %v559 = vxor.u32 %v532, 2147483648
      %v560 = vxor.u32 %v534, 2147483648
      %v561 = vxor.u32 %v537, 2147483648
      %v562 = vxor.u32 %v539, 2147483648
      %v563 = vxor.u32 %v542, 2147483648
      %v564 = vxor.u32 %v544, 2147483648
      %v565 = vxor.u32 %v547, 2147483648
      %v566 = vxor.u32 %v549, 2147483648
      %v567 = vmul.f32 %v551, 1.442695
      %v568 = vpow.pop %v567
      %v569 = vmul.f32 %v552, 1.442695
      %v570 = vpow.pop %v569
      %v571 = vmul.f32 %v553, 1.442695
      %v572 = vpow.pop %v571
      %v573 = vmul.f32 %v554, 1.442695
      %v574 = vpow.pop %v573
      %v575 = vmul.f32 %v555, 1.442695
      %v576 = vpow.pop %v575
      %v577 = vmul.f32 %v556, 1.442695
      %v578 = vpow.pop %v577
      %v579 = vmul.f32 %v557, 1.442695
      %v580 = vpow.pop %v579
      %v581 = vmul.f32 %v558, 1.442695
      %v582 = vpow.pop %v581
      %v583 = vmul.f32 %v559, 1.442695
      %v584 = vpow.pop %v583
      %v585 = vmul.f32 %v560, 1.442695
      %v586 = vpow.pop %v585
      %v587 = vmul.f32 %v561, 1.442695
      %v588 = vpow.pop %v587
      %v589 = vmul.f32 %v562, 1.442695
      %v590 = vpow.pop %v589
      %v591 = vmul.f32 %v563, 1.442695
      %v592 = vpow.pop %v591
      %v593 = vmul.f32 %v564, 1.442695
      %v594 = vpow.pop %v593
      %v595 = vmul.f32 %v565, 1.442695
      %v596 = vpow.pop %v595
      %v597 = vmul.f32 %v566, 1.442695
      %v598 = vpow.pop %v597
      %v599 = vadd.f32 %v568, 1.0
      %v600 = vadd.f32 %v570, 1.0
      %v601 = vadd.f32 %v572, 1.0
      %v602 = vadd.f32 %v574, 1.0
      %v603 = vadd.f32 %v576, 1.0
      %v604 = vadd.f32 %v578, 1.0
      %v605 = vadd.f32 %v580, 1.0
      %v606 = vadd.f32 %v582, 1.0
      %v607 = vadd.f32 %v584, 1.0
      %v608 = vadd.f32 %v586, 1.0
      %v609 = vadd.f32 %v588, 1.0
      %v610 = vadd.f32 %v590, 1.0
      %v611 = vadd.f32 %v592, 1.0
      %v612 = vadd.f32 %v594, 1.0
      %v613 = vadd.f32 %v596, 1.0
      %v614 = vadd.f32 %v598, 1.0
      %v615 = vrcp.pop %v599
      %v616 = vmul.f32 %v599, %v615
      %v617 = vsub.f32 1.0, %v616
      %v618 = vmul.f32 %v615, %v617
      %v619 = vadd.f32 %v615, %v618
      %vm620 = vweird.f32 %v599
      %vm621 = vweird.f32 %v615
      %vm622 = vmor %vm620, %vm621
      %v623 = vsel %vm622, %v615, %v619
      %v624 = vand.u32 2147483647, %v599
      %vm625 = vcmp.eq.f32.partialorder %v624, 8.507059e+37
      %v626 = vand.u32 %v599, 2147483648
      %v627 = vor.u32 1.1754944e-38, %v626
      %v628 = vsel %vm625, %v627, %v623
      %v629 = vmul.f32 1.0, %v628
      %v630 = vrcp.pop %v600
      %v631 = vmul.f32 %v600, %v630
      %v632 = vsub.f32 1.0, %v631
      %v633 = vmul.f32 %v630, %v632
      %v634 = vadd.f32 %v630, %v633
      %vm635 = vweird.f32 %v600
      %vm636 = vweird.f32 %v630
      %vm637 = vmor %vm635, %vm636
      %v638 = vsel %vm637, %v630, %v634
      %v639 = vand.u32 2147483647, %v600
      %vm640 = vcmp.eq.f32.partialorder %v639, 8.507059e+37
      %v641 = vand.u32 %v600, 2147483648
      %v642 = vor.u32 1.1754944e-38, %v641
      %v643 = vsel %vm640, %v642, %v638
      %v644 = vmul.f32 1.0, %v643
      %v645 = vrcp.pop %v601
      %v646 = vmul.f32 %v601, %v645
      %v647 = vsub.f32 1.0, %v646
      %v648 = vmul.f32 %v645, %v647
      %v649 = vadd.f32 %v645, %v648
      %vm650 = vweird.f32 %v601
      %vm651 = vweird.f32 %v645
      %vm652 = vmor %vm650, %vm651
      %v653 = vsel %vm652, %v645, %v649
      %v654 = vand.u32 2147483647, %v601
      %vm655 = vcmp.eq.f32.partialorder %v654, 8.507059e+37
      %v656 = vand.u32 %v601, 2147483648
      %v657 = vor.u32 1.1754944e-38, %v656
      %v658 = vsel %vm655, %v657, %v653
      %v659 = vmul.f32 1.0, %v658
      %v660 = vrcp.pop %v602
      %v661 = vmul.f32 %v602, %v660
      %v662 = vsub.f32 1.0, %v661
      %v663 = vmul.f32 %v660, %v662
      %v664 = vadd.f32 %v660, %v663
      %vm665 = vweird.f32 %v602
      %vm666 = vweird.f32 %v660
      %vm667 = vmor %vm665, %vm666
      %v668 = vsel %vm667, %v660, %v664
      %v669 = vand.u32 2147483647, %v602
      %vm670 = vcmp.eq.f32.partialorder %v669, 8.507059e+37
      %v671 = vand.u32 %v602, 2147483648
      %v672 = vor.u32 1.1754944e-38, %v671
      %v673 = vsel %vm670, %v672, %v668
      %v674 = vmul.f32 1.0, %v673
      %v675 = vrcp.pop %v603
      %v676 = vmul.f32 %v603, %v675
      %v677 = vsub.f32 1.0, %v676
      %v678 = vmul.f32 %v675, %v677
      %v679 = vadd.f32 %v675, %v678
      %vm680 = vweird.f32 %v603
      %vm681 = vweird.f32 %v675
      %vm682 = vmor %vm680, %vm681
      %v683 = vsel %vm682, %v675, %v679
      %v684 = vand.u32 2147483647, %v603
      %vm685 = vcmp.eq.f32.partialorder %v684, 8.507059e+37
      %v686 = vand.u32 %v603, 2147483648
      %v687 = vor.u32 1.1754944e-38, %v686
      %v688 = vsel %vm685, %v687, %v683
      %v689 = vmul.f32 1.0, %v688
      %v690 = vrcp.pop %v604
      %v691 = vmul.f32 %v604, %v690
      %v692 = vsub.f32 1.0, %v691
      %v693 = vmul.f32 %v690, %v692
      %v694 = vadd.f32 %v690, %v693
      %vm695 = vweird.f32 %v604
      %vm696 = vweird.f32 %v690
      %vm697 = vmor %vm695, %vm696
      %v698 = vsel %vm697, %v690, %v694
      %v699 = vand.u32 2147483647, %v604
      %vm700 = vcmp.eq.f32.partialorder %v699, 8.507059e+37
      %v701 = vand.u32 %v604, 2147483648
      %v702 = vor.u32 1.1754944e-38, %v701
      %v703 = vsel %vm700, %v702, %v698
      %v704 = vmul.f32 1.0, %v703
      %v705 = vrcp.pop %v605
      %v706 = vmul.f32 %v605, %v705
      %v707 = vsub.f32 1.0, %v706
      %v708 = vmul.f32 %v705, %v707
      %v709 = vadd.f32 %v705, %v708
      %vm710 = vweird.f32 %v605
      %vm711 = vweird.f32 %v705
      %vm712 = vmor %vm710, %vm711
      %v713 = vsel %vm712, %v705, %v709
      %v714 = vand.u32 2147483647, %v605
      %vm715 = vcmp.eq.f32.partialorder %v714, 8.507059e+37
      %v716 = vand.u32 %v605, 2147483648
      %v717 = vor.u32 1.1754944e-38, %v716
      %v718 = vsel %vm715, %v717, %v713
      %v719 = vmul.f32 1.0, %v718
      %v720 = vrcp.pop %v606
      %v721 = vmul.f32 %v606, %v720
      %v722 = vsub.f32 1.0, %v721
      %v723 = vmul.f32 %v720, %v722
      %v724 = vadd.f32 %v720, %v723
      %vm725 = vweird.f32 %v606
      %vm726 = vweird.f32 %v720
      %vm727 = vmor %vm725, %vm726
      %v728 = vsel %vm727, %v720, %v724
      %v729 = vand.u32 2147483647, %v606
      %vm730 = vcmp.eq.f32.partialorder %v729, 8.507059e+37
      %v731 = vand.u32 %v606, 2147483648
      %v732 = vor.u32 1.1754944e-38, %v731
      %v733 = vsel %vm730, %v732, %v728
      %v734 = vmul.f32 1.0, %v733
      %v735 = vrcp.pop %v607
      %v736 = vmul.f32 %v607, %v735
      %v737 = vsub.f32 1.0, %v736
      %v738 = vmul.f32 %v735, %v737
      %v739 = vadd.f32 %v735, %v738
      %vm740 = vweird.f32 %v607
      %vm741 = vweird.f32 %v735
      %vm742 = vmor %vm740, %vm741
      %v743 = vsel %vm742, %v735, %v739
      %v744 = vand.u32 2147483647, %v607
      %vm745 = vcmp.eq.f32.partialorder %v744, 8.507059e+37
      %v746 = vand.u32 %v607, 2147483648
      %v747 = vor.u32 1.1754944e-38, %v746
      %v748 = vsel %vm745, %v747, %v743
      %v749 = vmul.f32 1.0, %v748
      %v750 = vrcp.pop %v608
      %v751 = vmul.f32 %v608, %v750
      %v752 = vsub.f32 1.0, %v751
      %v753 = vmul.f32 %v750, %v752
      %v754 = vadd.f32 %v750, %v753
      %vm755 = vweird.f32 %v608
      %vm756 = vweird.f32 %v750
      %vm757 = vmor %vm755, %vm756
      %v758 = vsel %vm757, %v750, %v754
      %v759 = vand.u32 2147483647, %v608
      %vm760 = vcmp.eq.f32.partialorder %v759, 8.507059e+37
      %v761 = vand.u32 %v608, 2147483648
      %v762 = vor.u32 1.1754944e-38, %v761
      %v763 = vsel %vm760, %v762, %v758
      %v764 = vmul.f32 1.0, %v763
      %v765 = vrcp.pop %v609
      %v766 = vmul.f32 %v609, %v765
      %v767 = vsub.f32 1.0, %v766
      %v768 = vmul.f32 %v765, %v767
      %v769 = vadd.f32 %v765, %v768
      %vm770 = vweird.f32 %v609
      %vm771 = vweird.f32 %v765
      %vm772 = vmor %vm770, %vm771
      %v773 = vsel %vm772, %v765, %v769
      %v774 = vand.u32 2147483647, %v609
      %vm775 = vcmp.eq.f32.partialorder %v774, 8.507059e+37
      %v776 = vand.u32 %v609, 2147483648
      %v777 = vor.u32 1.1754944e-38, %v776
      %v778 = vsel %vm775, %v777, %v773
      %v779 = vmul.f32 1.0, %v778
      %v780 = vrcp.pop %v610
      %v781 = vmul.f32 %v610, %v780
      %v782 = vsub.f32 1.0, %v781
      %v783 = vmul.f32 %v780, %v782
      %v784 = vadd.f32 %v780, %v783
      %vm785 = vweird.f32 %v610
      %vm786 = vweird.f32 %v780
      %vm787 = vmor %vm785, %vm786
      %v788 = vsel %vm787, %v780, %v784
      %v789 = vand.u32 2147483647, %v610
      %vm790 = vcmp.eq.f32.partialorder %v789, 8.507059e+37
      %v791 = vand.u32 %v610, 2147483648
      %v792 = vor.u32 1.1754944e-38, %v791
      %v793 = vsel %vm790, %v792, %v788
      %v794 = vmul.f32 1.0, %v793
      %v795 = vrcp.pop %v611
      %v796 = vmul.f32 %v611, %v795
      %v797 = vsub.f32 1.0, %v796
      %v798 = vmul.f32 %v795, %v797
      %v799 = vadd.f32 %v795, %v798
      %vm800 = vweird.f32 %v611
      %vm801 = vweird.f32 %v795
      %vm802 = vmor %vm800, %vm801
      %v803 = vsel %vm802, %v795, %v799
      %v804 = vand.u32 2147483647, %v611
      %vm805 = vcmp.eq.f32.partialorder %v804, 8.507059e+37
      %v806 = vand.u32 %v611, 2147483648
      %v807 = vor.u32 1.1754944e-38, %v806
      %v808 = vsel %vm805, %v807, %v803
      %v809 = vmul.f32 1.0, %v808
      %v810 = vrcp.pop %v612
      %v811 = vmul.f32 %v612, %v810
      %v812 = vsub.f32 1.0, %v811
      %v813 = vmul.f32 %v810, %v812
      %v814 = vadd.f32 %v810, %v813
      %vm815 = vweird.f32 %v612
      %vm816 = vweird.f32 %v810
      %vm817 = vmor %vm815, %vm816
      %v818 = vsel %vm817, %v810, %v814
      %v819 = vand.u32 2147483647, %v612
      %vm820 = vcmp.eq.f32.partialorder %v819, 8.507059e+37
      %v821 = vand.u32 %v612, 2147483648
      %v822 = vor.u32 1.1754944e-38, %v821
      %v823 = vsel %vm820, %v822, %v818
      %v824 = vmul.f32 1.0, %v823
      %v825 = vrcp.pop %v613
      %v826 = vmul.f32 %v613, %v825
      %v827 = vsub.f32 1.0, %v826
      %v828 = vmul.f32 %v825, %v827
      %v829 = vadd.f32 %v825, %v828
      %vm830 = vweird.f32 %v613
      %vm831 = vweird.f32 %v825
      %vm832 = vmor %vm830, %vm831
      %v833 = vsel %vm832, %v825, %v829
      %v834 = vand.u32 2147483647, %v613
      %vm835 = vcmp.eq.f32.partialorder %v834, 8.507059e+37
      %v836 = vand.u32 %v613, 2147483648
      %v837 = vor.u32 1.1754944e-38, %v836
      %v838 = vsel %vm835, %v837, %v833
      %v839 = vmul.f32 1.0, %v838
      %v840 = vrcp.pop %v614
      %v841 = vmul.f32 %v614, %v840
      %v842 = vsub.f32 1.0, %v841
      %v843 = vmul.f32 %v840, %v842
      %v844 = vadd.f32 %v840, %v843
      %vm845 = vweird.f32 %v614
      %vm846 = vweird.f32 %v840
      %vm847 = vmor %vm845, %vm846
      %v848 = vsel %vm847, %v840, %v844
      %v849 = vand.u32 2147483647, %v614
      %vm850 = vcmp.eq.f32.partialorder %v849, 8.507059e+37
      %v851 = vand.u32 %v614, 2147483648
      %v852 = vor.u32 1.1754944e-38, %v851
      %v853 = vsel %vm850, %v852, %v848
      %v854 = vmul.f32 1.0, %v853
      %v855 = vld [vmem:[%s269] sm:$0xf]
      %v856 = vld [vmem:[%s269 + $0x4] sm:$0xf]
      %v857 = vld [vmem:[%s269 + $0x8] sm:$0xf]
      %v858 = vld [vmem:[%s269 + $0xc] sm:$0xf]
      %v859 = vld [vmem:[%s269 + $0x10] sm:$0xf]
      %v860 = vld [vmem:[%s269 + $0x14] sm:$0xf]
      %v861 = vld [vmem:[%s269 + $0x18] sm:$0xf]
      %v862 = vld [vmem:[%s269 + $0x1c] sm:$0xf]
      %v863 = vld [vmem:[%s269 + $0x20] sm:$0xf]
      %v864 = vld [vmem:[%s269 + $0x24] sm:$0xf]
      %v865 = vld [vmem:[%s269 + $0x28] sm:$0xf]
      %v866 = vld [vmem:[%s269 + $0x2c] sm:$0xf]
      %v867 = vld [vmem:[%s269 + $0x30] sm:$0xf]
      %v868 = vld [vmem:[%s269 + $0x34] sm:$0xf]
      %v869 = vld [vmem:[%s269 + $0x38] sm:$0xf]
      %v870 = vld [vmem:[%s269 + $0x3c] sm:$0xf]
      %v871 = vunpack.c.l.bf16 %v855
      %v872 = vunpack.c.l.bf16 %v856
      %v873 = vunpack.c.l.bf16 %v857
      %v874 = vunpack.c.l.bf16 %v858
      %v875 = vunpack.c.l.bf16 %v859
      %v876 = vunpack.c.l.bf16 %v860
      %v877 = vunpack.c.l.bf16 %v861
      %v878 = vunpack.c.l.bf16 %v862
      %v879 = vunpack.c.l.bf16 %v863
      %v880 = vunpack.c.l.bf16 %v864
      %v881 = vunpack.c.l.bf16 %v865
      %v882 = vunpack.c.l.bf16 %v866
      %v883 = vunpack.c.l.bf16 %v867
      %v884 = vunpack.c.l.bf16 %v868
      %v885 = vunpack.c.l.bf16 %v869
      %v886 = vunpack.c.l.bf16 %v870
      %903 = vrot.lane.b32.xlu0 %v871, 8
      %v904 = vpop.permute.xlu0 %903
      %905 = vrot.lane.b32.xlu0 %v872, 8
      %v906 = vpop.permute.xlu0 %905
      %907 = vrot.lane.b32.xlu0 %v873, 8
      %v908 = vpop.permute.xlu0 %907
      %909 = vrot.lane.b32.xlu0 %v874, 8
      %v910 = vpop.permute.xlu0 %909
      %911 = vrot.lane.b32.xlu0 %v875, 8
      %v912 = vpop.permute.xlu0 %911
      %913 = vrot.lane.b32.xlu0 %v876, 8
      %v914 = vpop.permute.xlu0 %913
      %915 = vrot.lane.b32.xlu0 %v877, 8
      %v916 = vpop.permute.xlu0 %915
      %917 = vrot.lane.b32.xlu0 %v878, 8
      %v918 = vpop.permute.xlu0 %917
      %919 = vrot.lane.b32.xlu0 %v879, 8
      %v920 = vpop.permute.xlu0 %919
      %921 = vrot.lane.b32.xlu0 %v880, 8
      %v922 = vpop.permute.xlu0 %921
      %923 = vrot.lane.b32.xlu0 %v881, 8
      %v924 = vpop.permute.xlu0 %923
      %925 = vrot.lane.b32.xlu0 %v882, 8
      %v926 = vpop.permute.xlu0 %925
      %927 = vrot.lane.b32.xlu0 %v883, 8
      %v928 = vpop.permute.xlu0 %927
      %929 = vrot.lane.b32.xlu0 %v884, 8
      %v930 = vpop.permute.xlu0 %929
      %931 = vrot.lane.b32.xlu0 %v885, 8
      %v932 = vpop.permute.xlu0 %931
      %933 = vrot.lane.b32.xlu0 %v886, 8
      %v934 = vpop.permute.xlu0 %933
      %vm951 = vcmask 64512
      %v952 = vsel %vm951, %v871, %v904
      %v953 = vsel %vm951, %v872, %v906
      %v954 = vsel %vm951, %v873, %v908
      %v955 = vsel %vm951, %v874, %v910
      %v956 = vsel %vm951, %v875, %v912
      %v957 = vsel %vm951, %v876, %v914
      %v958 = vsel %vm951, %v877, %v916
      %v959 = vsel %vm951, %v878, %v918
      %v960 = vsel %vm951, %v879, %v920
      %v961 = vsel %vm951, %v880, %v922
      %v962 = vsel %vm951, %v881, %v924
      %v963 = vsel %vm951, %v882, %v926
      %v964 = vsel %vm951, %v883, %v928
      %v965 = vsel %vm951, %v884, %v930
      %v966 = vsel %vm951, %v885, %v932
      %v967 = vsel %vm951, %v886, %v934
      %v968 = vmul.f32 %v952, %v629
      %v969 = vmul.f32 %v953, %v644
      %v970 = vmul.f32 %v954, %v659
      %v971 = vmul.f32 %v955, %v674
      %v972 = vmul.f32 %v956, %v689
      %v973 = vmul.f32 %v957, %v704
      %v974 = vmul.f32 %v958, %v719
      %v975 = vmul.f32 %v959, %v734
      %v976 = vmul.f32 %v960, %v749
      %v977 = vmul.f32 %v961, %v764
      %v978 = vmul.f32 %v962, %v779
      %v979 = vmul.f32 %v963, %v794
      %v980 = vmul.f32 %v964, %v809
      %v981 = vmul.f32 %v965, %v824
      %v982 = vmul.f32 %v966, %v839
      %v983 = vmul.f32 %v967, %v854
      %v984 = vpack.c.bf16 %v968, %v968
      %v985 = vpack.c.bf16 %v969, %v969
      %v986 = vpack.c.bf16 %v970, %v970
      %v987 = vpack.c.bf16 %v971, %v971
      %v988 = vpack.c.bf16 %v972, %v972
      %v989 = vpack.c.bf16 %v973, %v973
      %v990 = vpack.c.bf16 %v974, %v974
      %v991 = vpack.c.bf16 %v975, %v975
      %v992 = vpack.c.bf16 %v976, %v976
      %v993 = vpack.c.bf16 %v977, %v977
      %v994 = vpack.c.bf16 %v978, %v978
      %v995 = vpack.c.bf16 %v979, %v979
      %v996 = vpack.c.bf16 %v980, %v980
      %v997 = vpack.c.bf16 %v981, %v981
      %v998 = vpack.c.bf16 %v982, %v982
      %v999 = vpack.c.bf16 %v983, %v983
      %vm1000 = vcmask 125952
      %1001 = vst.msk [vmem:[%s275] sm:$0xf] %vm1000, %v984
      %1002 = vst.msk [vmem:[%s275 + $0x4] sm:$0xf] %vm1000, %v985
      %1003 = vst.msk [vmem:[%s275 + $0x8] sm:$0xf] %vm1000, %v986
      %1004 = vst.msk [vmem:[%s275 + $0xc] sm:$0xf] %vm1000, %v987
      %1005 = vst.msk [vmem:[%s275 + $0x10] sm:$0xf] %vm1000, %v988
      %1006 = vst.msk [vmem:[%s275 + $0x14] sm:$0xf] %vm1000, %v989
      %1007 = vst.msk [vmem:[%s275 + $0x18] sm:$0xf] %vm1000, %v990
      %1008 = vst.msk [vmem:[%s275 + $0x1c] sm:$0xf] %vm1000, %v991
      %1009 = vst.msk [vmem:[%s275 + $0x20] sm:$0xf] %vm1000, %v992
      %1010 = vst.msk [vmem:[%s275 + $0x24] sm:$0xf] %vm1000, %v993
      %1011 = vst.msk [vmem:[%s275 + $0x28] sm:$0xf] %vm1000, %v994
      %1012 = vst.msk [vmem:[%s275 + $0x2c] sm:$0xf] %vm1000, %v995
      %1013 = vst.msk [vmem:[%s275 + $0x30] sm:$0xf] %vm1000, %v996
      %1014 = vst.msk [vmem:[%s275 + $0x34] sm:$0xf] %vm1000, %v997
      %1015 = vst.msk [vmem:[%s275 + $0x38] sm:$0xf] %vm1000, %v998
      %1016 = vst.msk [vmem:[%s275 + $0x3c] sm:$0xf] %vm1000, %v999
      %s1017 = smul.u32 16, %s17
      %p1018 = scmp.lt.s32.totalorder %s1017, 63
      %s1019 = scalar_select %p1018, %s1017, 63
      %s1020 = smul.addr %s1019, 4
      %s1021 = scalar_lea.vmem %s6, %s1020
      // Predicated region
      $region45: #{mtan_down_pallas.6} parent=43 // pred_check
        %p1022 = pneg %p171
      $region46: #{mtan_down_pallas.6} parent=43 // pred_check_branch
        %1024 = sbr.rel (%p1022) target = $region48
      $region47: #{mtan_down_pallas.6} parent=43 // pred_region
        %s1025 = smul.u32 16, %s17
      $region48: #{mtan_down_pallas.6} parent=43 // pred_fallthru
        _
    $region44: #{mtan_down_pallas.6} parent=5 // pred_fallthru
      _
    %p1026 = scmp.le.s32.totalorder 2, %s12
    // Predicated region
    $region49: #{mtan_down_pallas.6} parent=5 // pred_check
      %p1027 = pneg %p1026
    $region50: #{mtan_down_pallas.6} parent=5 // pred_check_branch
      %1029 = sbr.rel (%p1027) target = $region52
    $region51: #{mtan_down_pallas.6} parent=5 // pred_region
      %s1030 = ssub.s32 %s12, 2
      // Predicated region
      $region53: #{mtan_down_pallas.6} parent=51 // pred_check
        %p1031 = pneg %p177
      $region54: #{mtan_down_pallas.6} parent=51 // pred_check_branch
        %1033 = sbr.rel (%p1031) target = $region56
      $region55: #{mtan_down_pallas.6} parent=51 // pred_region
        %s1034 = smul.u32 16, %s18
        %p1035 = scmp.lt.s32.totalorder %s1034, 63
        %s1036 = scalar_select %p1035, %s1034, 63
        %s1037 = smul.addr %s1036, 4
        %s1038 = scalar_lea.vmem %s6, %s1037
      $region56: #{mtan_down_pallas.6} parent=51 // pred_fallthru
        _
    $region52: #{mtan_down_pallas.6} parent=5 // pred_fallthru
      _
  $region6: #{mtan_down_pallas.6} parent=0 // loop_footer
    %s16 = sadd.s32 1, %s12
  $region7: #{mtan_down_pallas.6} parent=0 // loop_footer_branch
    %11 = sbr.rel target = $region3
  $region8: #{mtan_down_pallas.6} parent=0 // loop_exit
    _

// kernel: mtan_down_pallas.5
$region0: #{mtan_down_pallas.5}
  #allocation0 [shape = 'u32[]', space=smem, size = 0x4, offset = 0x4, fixed_abs, tag = 'smem constant byte address 0x4 - core index']
  #allocation1 [shape = 'u32[72,128]{1,0:T(1,128)}', space=vmem, size = 0x9000, scoped, tag = 'internal scratch']
  #allocation2 [shape = 'f32[184,8]{1,0:T(8,128)}', space=vmem, size = 0x17000, scoped, tag = 'scratch operand']
  %s0 = inlined_call_operand.vmem [shape: bf16[2,2,240,8], index: 0, kind: input, shape index: {}]
  %s1 = inlined_call_operand.vmem [shape: bf16[72,8], index: 1, kind: input, shape index: {}]
  %s2 = inlined_call_operand.vmem [shape: f32[1,8], index: 2, kind: input, shape index: {}]
  %s3 = inlined_call_operand.vmem [shape: bf16[2,256,8], index: 3, kind: output, shape index: {0}]
  %s4 = inlined_call_operand.vmem [shape: f32[2,64,8], index: 4, kind: output, shape index: {1}]
  %5 = xla_tuple %s3, %s4
  %s6 = sld [smem:[#allocation0]]
  $region53: #{mtan_down_pallas.5} parent=0
    _
  %s8 = ssub.s32 1, %s6
  %s9 = scalar_select 0, %s8, %s6
  loop: start=0, step=1, limit=6
  $region2: #{mtan_down_pallas.5} parent=0 // loop_pre_header
    _
  $region3: #{mtan_down_pallas.5} parent=0 // loop_header
    %s11 = sphi 0, %s15
    %p12 = scmp.ge.s32.totalorder %s11, 6
    %s18 = sphi 0, %s30
    %s19 = sphi 0, %s26
    %s20 = sphi 0, %s18
    %s21 = sphi 0, %s19
    %s22 = sphi 0, %s20
    %s23 = sphi 0, %s21
    %s35 = sphi 0, %s37
    %s38 = sphi 0, %s35
    %s39 = sphi 0, %s38
    %s55 = sphi 0, %s39
    %s59 = sphi 0, %s59
    %s61 = sphi 0, %s59
    %s62 = sphi 0, %s61
    %s76 = sphi 0, %s62
    %s80 = sphi 0, %s80
    %s82 = sphi 0, %s80
    %s83 = sphi 0, %s82
    %s97 = sphi 0, %s83
    %s105 = sphi 0, %s107
    %s108 = sphi 0, %s105
    %s109 = sphi 0, %s108
    %s125 = sphi 0, %s109
    %s133 = sphi 0, %s135
    %s136 = sphi 0, %s133
    %s137 = sphi 0, %s136
    %s153 = sphi 0, %s137
  $region4: #{mtan_down_pallas.5} parent=0 // loop_header_branch
    %14 = sbr.rel (%p12) target = $region8
  $region5: #{mtan_down_pallas.5} parent=0 // loop_body
    %s16 = ssub.s32 %s11, 1
    %s17 = ssub.s32 %s11, 2
    %s24 = sadd.s32 1, %s19
    %p25 = scmp.ge.s32.totalorder %s24, 2
    %s26 = scalar_select %p25, 0, %s24
    %s27 = sadd.s32 1, %s18
    %s28 = scalar_select %p25, %s27, %s18
    %p29 = scmp.ge.s32.totalorder %s28, 2
    %s30 = scalar_select %p29, 0, %s28
    %s31 = ssub.s32 %s18, %s30
    %s32 = ssub.s32 %s19, %s26
    %s33 = sor.u32 %s31, %s32
    %p34 = scmp.eq.s32.totalorder %s33, 0
    %s36 = sadd.s32 %s35, 1
    %s37 = scalar_select %p34, %s35, %s36
    %p40 = pneg %p34
    %p41 = scmp.eq.s32.totalorder %s11, 3
    %p42 = por %p40, %p41
    %p43 = scmp.ne.s32.totalorder %s35, %s38
    %p44 = scmp.eq.s32.totalorder %s11, 0
    %p45 = por %p43, %p44
    %p46 = scmp.ne.s32.totalorder %s35, %s38
    %p47 = scmp.eq.s32.totalorder %s16, 3
    %p48 = por %p46, %p47
    %p49 = scmp.ne.s32.totalorder %s38, %s39
    %p50 = scmp.eq.s32.totalorder %s16, 0
    %p51 = por %p49, %p50
    %p52 = scmp.ne.s32.totalorder %s38, %s39
    %p53 = scmp.eq.s32.totalorder %s17, 3
    %p54 = por %p52, %p53
    %p56 = scmp.ne.s32.totalorder %s39, %s55
    %p57 = scmp.eq.s32.totalorder %s17, 0
    %p58 = por %p56, %p57
    %s60 = sadd.s32 %s59, 1
    %p63 = scmp.eq.s32.totalorder %s11, 3
    %p64 = scmp.ne.s32.totalorder %s59, %s61
    %p65 = scmp.eq.s32.totalorder %s11, 0
    %p66 = por %p64, %p65
    %p67 = scmp.ne.s32.totalorder %s59, %s61
    %p68 = scmp.eq.s32.totalorder %s16, 3
    %p69 = por %p67, %p68
    %p70 = scmp.ne.s32.totalorder %s61, %s62
    %p71 = scmp.eq.s32.totalorder %s16, 0
    %p72 = por %p70, %p71
    %p73 = scmp.ne.s32.totalorder %s61, %s62
    %p74 = scmp.eq.s32.totalorder %s17, 3
    %p75 = por %p73, %p74
    %p77 = scmp.ne.s32.totalorder %s62, %s76
    %p78 = scmp.eq.s32.totalorder %s17, 0
    %p79 = por %p77, %p78
    %s81 = sadd.s32 %s80, 1
    %p84 = scmp.eq.s32.totalorder %s11, 3
    %p85 = scmp.ne.s32.totalorder %s80, %s82
    %p86 = scmp.eq.s32.totalorder %s11, 0
    %p87 = por %p85, %p86
    %p88 = scmp.ne.s32.totalorder %s80, %s82
    %p89 = scmp.eq.s32.totalorder %s16, 3
    %p90 = por %p88, %p89
    %p91 = scmp.ne.s32.totalorder %s82, %s83
    %p92 = scmp.eq.s32.totalorder %s16, 0
    %p93 = por %p91, %p92
    %p94 = scmp.ne.s32.totalorder %s82, %s83
    %p95 = scmp.eq.s32.totalorder %s17, 3
    %p96 = por %p94, %p95
    %p98 = scmp.ne.s32.totalorder %s83, %s97
    %p99 = scmp.eq.s32.totalorder %s17, 0
    %p100 = por %p98, %p99
    %s101 = ssub.s32 %s18, %s30
    %s102 = ssub.s32 %s19, %s26
    %s103 = sor.u32 %s101, %s102
    %p104 = scmp.eq.s32.totalorder %s103, 0
    %s106 = sadd.s32 %s105, 1
    %s107 = scalar_select %p104, %s105, %s106
    %p110 = pneg %p104
    %p111 = scmp.eq.s32.totalorder %s11, 3
    %p112 = por %p110, %p111
    %p113 = scmp.ne.s32.totalorder %s105, %s108
    %p114 = scmp.eq.s32.totalorder %s11, 0
    %p115 = por %p113, %p114
    %p116 = scmp.ne.s32.totalorder %s105, %s108
    %p117 = scmp.eq.s32.totalorder %s16, 3
    %p118 = por %p116, %p117
    %p119 = scmp.ne.s32.totalorder %s108, %s109
    %p120 = scmp.eq.s32.totalorder %s16, 0
    %p121 = por %p119, %p120
    %p122 = scmp.ne.s32.totalorder %s108, %s109
    %p123 = scmp.eq.s32.totalorder %s17, 3
    %p124 = por %p122, %p123
    %p126 = scmp.ne.s32.totalorder %s109, %s125
    %p127 = scmp.eq.s32.totalorder %s17, 0
    %p128 = por %p126, %p127
    %s129 = ssub.s32 %s18, %s30
    %s130 = ssub.s32 %s19, %s26
    %s131 = sor.u32 %s129, %s130
    %p132 = scmp.eq.s32.totalorder %s131, 0
    %s134 = sadd.s32 %s133, 1
    %s135 = scalar_select %p132, %s133, %s134
    %p138 = pneg %p132
    %p139 = scmp.eq.s32.totalorder %s11, 3
    %p140 = por %p138, %p139
    %p141 = scmp.ne.s32.totalorder %s133, %s136
    %p142 = scmp.eq.s32.totalorder %s11, 0
    %p143 = por %p141, %p142
    %p144 = scmp.ne.s32.totalorder %s133, %s136
    %p145 = scmp.eq.s32.totalorder %s16, 3
    %p146 = por %p144, %p145
    %p147 = scmp.ne.s32.totalorder %s136, %s137
    %p148 = scmp.eq.s32.totalorder %s16, 0
    %p149 = por %p147, %p148
    %p150 = scmp.ne.s32.totalorder %s136, %s137
    %p151 = scmp.eq.s32.totalorder %s17, 3
    %p152 = por %p150, %p151
    %p154 = scmp.ne.s32.totalorder %s137, %s153
    %p155 = scmp.eq.s32.totalorder %s17, 0
    %p156 = por %p154, %p155
    %p157 = scmp.le.s32.totalorder 1, %s11
    %p158 = scmp.lt.s32.totalorder %s11, 5
    %p159 = pnand %p157, %p158
    %p160 = pneg %p159
    // Predicated region
    $region9: #{mtan_down_pallas.5} parent=5 // pred_check
      _
    $region10: #{mtan_down_pallas.5} parent=5 // pred_check_branch
      %162 = sbr.rel (%p159) target = $region12
    $region11: #{mtan_down_pallas.5} parent=5 // pred_region
      %s163 = ssub.s32 %s11, 1
      // Predicated region
      $region13: #{mtan_down_pallas.5} parent=11 // pred_check
        %p164 = pneg %p72
      $region14: #{mtan_down_pallas.5} parent=11 // pred_check_branch
        %166 = sbr.rel (%p164) target = $region16
      $region15: #{mtan_down_pallas.5} parent=11 // pred_region
        _
      $region16: #{mtan_down_pallas.5} parent=11 // pred_fallthru
        _
      // Predicated region
      $region17: #{mtan_down_pallas.5} parent=11 // pred_check
        %p167 = pneg %p93
      $region18: #{mtan_down_pallas.5} parent=11 // pred_check_branch
        %169 = sbr.rel (%p167) target = $region20
      $region19: #{mtan_down_pallas.5} parent=11 // pred_region
        _
      $region20: #{mtan_down_pallas.5} parent=11 // pred_fallthru
        _
    $region12: #{mtan_down_pallas.5} parent=5 // pred_fallthru
      _
    %p170 = scmp.lt.s32.totalorder %s11, 4
    // Predicated region
    $region21: #{mtan_down_pallas.5} parent=5 // pred_check
      %p171 = pneg %p170
    $region22: #{mtan_down_pallas.5} parent=5 // pred_check_branch
      %173 = sbr.rel (%p171) target = $region24
    $region23: #{mtan_down_pallas.5} parent=5 // pred_region
      // Predicated region
      $region25: #{mtan_down_pallas.5} parent=23 // pred_check
        %p174 = pneg %p45
      $region26: #{mtan_down_pallas.5} parent=23 // pred_check_branch
        %176 = sbr.rel (%p174) target = $region28
      $region27: #{mtan_down_pallas.5} parent=23 // pred_region
        %p177 = scmp.lt.s32.totalorder %s18, 1
        %s178 = scalar_select %p177, %s18, 1
        %p179 = scmp.lt.s32.totalorder %s19, 1
        %s180 = scalar_select %p179, %s19, 1
        %s181 = smul.addr %s180, 30
        %s182 = smul.addr %s178, 60
        %s183 = sadd.s32 %s181, %s182
        %s184 = smul.addr %s183, 4
        %s185 = scalar_lea.vmem %s0, %s184
      $region28: #{mtan_down_pallas.5} parent=23 // pred_fallthru
        _
    $region24: #{mtan_down_pallas.5} parent=5 // pred_fallthru
      _
    %p186 = scmp.le.s32.totalorder 1, %s11
    %p187 = scmp.lt.s32.totalorder %s11, 5
    %p188 = pnand %p186, %p187
    %p189 = pneg %p188
    // Predicated region
    $region29: #{mtan_down_pallas.5} parent=5 // pred_check
      _
    $region30: #{mtan_down_pallas.5} parent=5 // pred_check_branch
      %191 = sbr.rel (%p188) target = $region32
    $region31: #{mtan_down_pallas.5} parent=5 // pred_region
      %s192 = ssub.s32 %s11, 1
      %p193 = scmp.lt.s32.totalorder %s20, 1
      %s194 = scalar_select %p193, %s20, 1
      %p195 = scmp.lt.s32.totalorder %s21, 1
      %s196 = scalar_select %p195, %s21, 1
      %s197 = smul.addr %s196, 30
      %s198 = smul.addr %s194, 60
      %s199 = sadd.s32 %s197, %s198
      %s200 = smul.addr %s199, 4
      %s201 = scalar_lea.vmem %s0, %s200
      %p202 = pneg %p51
      %p203 = pneg %p48
      %p204 = pneg %p72
      %p205 = pneg %p69
      %p206 = pneg %p93
      %p207 = pneg %p90
      %p208 = pneg %p121
      %p209 = pneg %p118
      %s210 = smul.u32 16, %s21
      %p211 = scmp.lt.s32.totalorder %s20, 1
      %s212 = scalar_select %p211, %s20, 1
      %p213 = scmp.lt.s32.totalorder %s210, 31
      %s214 = scalar_select %p213, %s210, 31
      %s215 = smul.addr %s212, 32
      %s216 = sadd.s32 %s214, %s215
      %s217 = smul.addr %s216, 4
      %s218 = scalar_lea.vmem %s3, %s217
      %p219 = pneg %p149
      %p220 = pneg %p146
      %s221 = smul.u32 4, %s21
      %p222 = scmp.lt.s32.totalorder %s20, 1
      %s223 = scalar_select %p222, %s20, 1
      %p224 = scmp.lt.s32.totalorder %s221, 7
      %s225 = scalar_select %p224, %s221, 7
      %s226 = smul.addr %s223, 8
      %s227 = sadd.s32 %s225, %s226
      %s228 = smul.addr %s227, 8
      %s229 = scalar_lea.vmem %s4, %s228
      %p230 = scmp.lt.s32.totalorder %s20, 1
      %s231 = scalar_select %p230, %s20, 1
      %p232 = scmp.lt.s32.totalorder %s21, 1
      %s233 = scalar_select %p232, %s21, 1
      %s234 = smul.addr %s233, 30
      %s235 = smul.addr %s231, 60
      %s236 = sadd.s32 %s234, %s235
      %s237 = smul.addr %s236, 4
      %s238 = scalar_lea.vmem %s0, %s237
      %s239 = smul.u32 16, %s21
      %p240 = scmp.lt.s32.totalorder %s20, 1
      %s241 = scalar_select %p240, %s20, 1
      %p242 = scmp.lt.s32.totalorder %s239, 31
      %s243 = scalar_select %p242, %s239, 31
      %s244 = smul.addr %s241, 32
      %s245 = sadd.s32 %s243, %s244
      %s246 = smul.addr %s245, 4
      %s247 = scalar_lea.vmem %s3, %s246
      %s248 = smul.u32 16, %s21
      %s249 = smul.u32 4, %s21
      %p250 = scmp.lt.s32.totalorder %s20, 1
      %s251 = scalar_select %p250, %s20, 1
      %p252 = scmp.lt.s32.totalorder %s249, 7
      %s253 = scalar_select %p252, %s249, 7
      %s254 = smul.addr %s251, 8
      %s255 = sadd.s32 %s253, %s254
      %s256 = smul.addr %s255, 8
      %s257 = scalar_lea.vmem %s4, %s256
      %s258 = smul.u32 4, %s21
      %v260 = vld [vmem:[%s238] sm:$0xf]
      %v261 = vld [vmem:[%s238 + $0x4] sm:$0xf]
      %v262 = vld [vmem:[%s238 + $0x8] sm:$0xf]
      %v263 = vld [vmem:[%s238 + $0xc] sm:$0xf]
      %v264 = vld [vmem:[%s238 + $0x10] sm:$0xf]
      %v265 = vld [vmem:[%s238 + $0x14] sm:$0xf]
      %v266 = vld [vmem:[%s238 + $0x18] sm:$0xf]
      %v267 = vld [vmem:[%s238 + $0x1c] sm:$0xf]
      %v268 = vld [vmem:[%s238 + $0x20] sm:$0xf]
      %v269 = vld [vmem:[%s238 + $0x24] sm:$0xf]
      %v270 = vld [vmem:[%s238 + $0x28] sm:$0xf]
      %v271 = vld [vmem:[%s238 + $0x2c] sm:$0xf]
      %v272 = vld [vmem:[%s238 + $0x30] sm:$0xf]
      %v273 = vld [vmem:[%s238 + $0x34] sm:$0xf]
      %v274 = vld [vmem:[%s238 + $0x38] sm:$0xf]
      %v275 = vld [vmem:[%s238 + $0x3c] sm:$0xf]
      %v276 = vld [vmem:[%s238 + $0x40] sm:$0xf]
      %v277 = vld [vmem:[%s238 + $0x44] sm:$0xf]
      %v278 = vld [vmem:[%s238 + $0x48] sm:$0xf]
      %v279 = vld [vmem:[%s238 + $0x4c] sm:$0xf]
      %v280 = vld [vmem:[%s238 + $0x50] sm:$0xf]
      %v281 = vld [vmem:[%s238 + $0x54] sm:$0xf]
      %v282 = vld [vmem:[%s238 + $0x58] sm:$0xf]
      %v283 = vld [vmem:[%s238 + $0x5c] sm:$0x1]
      %v284 = vld [vmem:[%s238] sm:$0xe]
      %v308 = vunpack.c.l.b16 %v260
      %v309 = vunpack.c.l.b16 %v261
      %v310 = vunpack.c.l.b16 %v262
      %v311 = vunpack.c.l.b16 %v263
      %v312 = vunpack.c.l.b16 %v264
      %v313 = vunpack.c.l.b16 %v265
      %v314 = vunpack.c.l.b16 %v266
      %v315 = vunpack.c.l.b16 %v267
      %v316 = vunpack.c.l.b16 %v268
      %v317 = vunpack.c.l.b16 %v269
      %v318 = vunpack.c.l.b16 %v270
      %v319 = vunpack.c.l.b16 %v271
      %v320 = vunpack.c.l.b16 %v272
      %v321 = vunpack.c.l.b16 %v273
      %v322 = vunpack.c.l.b16 %v274
      %v323 = vunpack.c.l.b16 %v275
      %v324 = vunpack.c.l.b16 %v276
      %v325 = vunpack.c.l.b16 %v277
      %v326 = vunpack.c.l.b16 %v278
      %v327 = vunpack.c.l.b16 %v279
      %v328 = vunpack.c.l.b16 %v280
      %v329 = vunpack.c.l.b16 %v281
      %v330 = vunpack.c.l.b16 %v282
      %v331 = vpack.c.b16 %v309, %v308
      %v332 = vpack.c.b16 %v311, %v310
      %v333 = vpack.c.b16 %v313, %v312
      %v334 = vpack.c.b16 %v315, %v314
      %v335 = vpack.c.b16 %v317, %v316
      %v336 = vpack.c.b16 %v319, %v318
      %v337 = vpack.c.b16 %v321, %v320
      %v338 = vpack.c.b16 %v323, %v322
      %v339 = vpack.c.b16 %v325, %v324
      %v340 = vpack.c.b16 %v327, %v326
      %v341 = vpack.c.b16 %v329, %v328
      %v342 = vpack.c.b16 %v330, %v330
      %v344 = vunpack.c.l.b16 %v283
      %v345 = vpack.c.b16 %v344, %v330
      %vm346 = vsmask.f32 7424
      %v348 = vshrl.u32 %v331, 16
      %v350 = vshll.u32 %v331, 16
      %v352 = vrot.slane %v350, 1
      %v353 = vor.u32 %v348, %v352
      %v355 = vshll.u32 %v332, 16
      %v357 = vrot.slane %v355, 1
      %v358 = vsel %vm346, %v353, %v357
      %v359 = vshrl.u32 %v332, 16
      %v361 = vor.u32 %v359, %v357
      %v363 = vshll.u32 %v333, 16
      %v365 = vrot.slane %v363, 1
      %v366 = vsel %vm346, %v361, %v365
      %v367 = vshrl.u32 %v333, 16
      %v369 = vor.u32 %v367, %v365
      %v371 = vshll.u32 %v334, 16
      %v373 = vrot.slane %v371, 1
      %v374 = vsel %vm346, %v369, %v373
      %v375 = vshrl.u32 %v334, 16
      %v377 = vor.u32 %v375, %v373
      %v379 = vshll.u32 %v335, 16
      %v381 = vrot.slane %v379, 1
      %v382 = vsel %vm346, %v377, %v381
      %v383 = vshrl.u32 %v335, 16
      %v385 = vor.u32 %v383, %v381
      %v387 = vshll.u32 %v336, 16
      %v389 = vrot.slane %v387, 1
      %v390 = vsel %vm346, %v385, %v389
      %v391 = vshrl.u32 %v336, 16
      %v393 = vor.u32 %v391, %v389
      %v395 = vshll.u32 %v337, 16
      %v397 = vrot.slane %v395, 1
      %v398 = vsel %vm346, %v393, %v397
      %v399 = vshrl.u32 %v337, 16
      %v401 = vor.u32 %v399, %v397
      %v403 = vshll.u32 %v338, 16
      %v405 = vrot.slane %v403, 1
      %v406 = vsel %vm346, %v401, %v405
      %v407 = vshrl.u32 %v338, 16
      %v409 = vor.u32 %v407, %v405
      %v411 = vshll.u32 %v339, 16
      %v413 = vrot.slane %v411, 1
      %v414 = vsel %vm346, %v409, %v413
      %v415 = vshrl.u32 %v339, 16
      %v417 = vor.u32 %v415, %v413
      %v419 = vshll.u32 %v340, 16
      %v421 = vrot.slane %v419, 1
      %v422 = vsel %vm346, %v417, %v421
      %v423 = vshrl.u32 %v340, 16
      %v425 = vor.u32 %v423, %v421
      %v427 = vshll.u32 %v341, 16
      %v429 = vrot.slane %v427, 1
      %v430 = vsel %vm346, %v425, %v429
      %v431 = vshrl.u32 %v341, 16
      %v433 = vor.u32 %v431, %v429
      %v435 = vshll.u32 %v345, 16
      %v437 = vrot.slane %v435, 1
      %v438 = vsel %vm346, %v433, %v437
      %v439 = vshrl.u32 %v345, 16
      %v441 = vor.u32 %v439, %v437
      %442 = vrot.lane.b32.xlu0 %v358, 8
      %v443 = vpop.permute.xlu0 %442
      %444 = vrot.lane.b32.xlu0 %v366, 8
      %v445 = vpop.permute.xlu0 %444
      %446 = vrot.lane.b32.xlu0 %v374, 8
      %v447 = vpop.permute.xlu0 %446
      %448 = vrot.lane.b32.xlu0 %v382, 8
      %v449 = vpop.permute.xlu0 %448
      %450 = vrot.lane.b32.xlu0 %v390, 8
      %v451 = vpop.permute.xlu0 %450
      %452 = vrot.lane.b32.xlu0 %v398, 8
      %v453 = vpop.permute.xlu0 %452
      %454 = vrot.lane.b32.xlu0 %v406, 8
      %v455 = vpop.permute.xlu0 %454
      %456 = vrot.lane.b32.xlu0 %v414, 8
      %v457 = vpop.permute.xlu0 %456
      %458 = vrot.lane.b32.xlu0 %v422, 8
      %v459 = vpop.permute.xlu0 %458
      %460 = vrot.lane.b32.xlu0 %v430, 8
      %v461 = vpop.permute.xlu0 %460
      %462 = vrot.lane.b32.xlu0 %v438, 8
      %v463 = vpop.permute.xlu0 %462
      %464 = vrot.lane.b32.xlu0 %v441, 8
      %v465 = vpop.permute.xlu0 %464
      %v467 = vunpack.c.l.b16 %v284
      %v468 = vpack.c.b16 %v309, %v467
      %vm469 = vcmask 1046528
      %v470 = vrot.slane %v468, 1
      %v471 = vrot.slane %v332, 1
      %v472 = vsel %vm469, %v470, %v471
      %v473 = vrot.slane %v333, 1
      %v474 = vsel %vm469, %v471, %v473
      %v475 = vrot.slane %v334, 1
      %v476 = vsel %vm469, %v473, %v475
      %v477 = vrot.slane %v335, 1
      %v478 = vsel %vm469, %v475, %v477
      %v479 = vrot.slane %v336, 1
      %v480 = vsel %vm469, %v477, %v479
      %v481 = vrot.slane %v337, 1
      %v482 = vsel %vm469, %v479, %v481
      %v483 = vrot.slane %v338, 1
      %v484 = vsel %vm469, %v481, %v483
      %v485 = vrot.slane %v339, 1
      %v486 = vsel %vm469, %v483, %v485
      %v487 = vrot.slane %v340, 1
      %v488 = vsel %vm469, %v485, %v487
      %v489 = vrot.slane %v341, 1
      %v490 = vsel %vm469, %v487, %v489
      %v491 = vrot.slane %v345, 1
      %v492 = vsel %vm469, %v489, %v491
      %493 = vrot.lane.b32.xlu0 %v472, 16
      %v494 = vpop.permute.xlu0 %493
      %495 = vrot.lane.b32.xlu0 %v474, 16
      %v496 = vpop.permute.xlu0 %495
      %497 = vrot.lane.b32.xlu0 %v476, 16
      %v498 = vpop.permute.xlu0 %497
      %499 = vrot.lane.b32.xlu0 %v478, 16
      %v500 = vpop.permute.xlu0 %499
      %501 = vrot.lane.b32.xlu0 %v480, 16
      %v502 = vpop.permute.xlu0 %501
      %503 = vrot.lane.b32.xlu0 %v482, 16
      %v504 = vpop.permute.xlu0 %503
      %505 = vrot.lane.b32.xlu0 %v484, 16
      %v506 = vpop.permute.xlu0 %505
      %507 = vrot.lane.b32.xlu0 %v486, 16
      %v508 = vpop.permute.xlu0 %507
      %509 = vrot.lane.b32.xlu0 %v488, 16
      %v510 = vpop.permute.xlu0 %509
      %511 = vrot.lane.b32.xlu0 %v490, 16
      %v512 = vpop.permute.xlu0 %511
      %513 = vrot.lane.b32.xlu0 %v492, 16
      %v514 = vpop.permute.xlu0 %513
      %515 = vrot.lane.b32.xlu0 %v491, 16
      %v516 = vpop.permute.xlu0 %515
      %vm517 = vcmask 64512
      %v519 = vsel %vm517, %v331, %v443
      %v521 = vsel %vm517, %v332, %v445
      %v523 = vsel %vm517, %v333, %v447
      %v525 = vsel %vm517, %v334, %v449
      %v527 = vsel %vm517, %v335, %v451
      %v529 = vsel %vm517, %v336, %v453
      %v531 = vsel %vm517, %v337, %v455
      %v533 = vsel %vm517, %v338, %v457
      %v535 = vsel %vm517, %v339, %v459
      %v537 = vsel %vm517, %v340, %v461
      %v539 = vsel %vm517, %v341, %v463
      %v542 = vsel %vm517, %v342, %v465
      %vm543 = vcmask 130048
      %v545 = vsel %vm543, %v519, %v494
      %v547 = vsel %vm543, %v521, %v496
      %v549 = vsel %vm543, %v523, %v498
      %v551 = vsel %vm543, %v525, %v500
      %v553 = vsel %vm543, %v527, %v502
      %v555 = vsel %vm543, %v529, %v504
      %v557 = vsel %vm543, %v531, %v506
      %v559 = vsel %vm543, %v533, %v508
      %v561 = vsel %vm543, %v535, %v510
      %v563 = vsel %vm543, %v537, %v512
      %v565 = vsel %vm543, %v539, %v514
      %v567 = vsel %vm543, %v542, %v516
      %v568 = vld [vmem:[%s1] sm:$0xf]
      %v569 = vld [vmem:[%s1 + $0x4] sm:$0xf]
      %v570 = vld [vmem:[%s1 + $0x8] sm:$0xf]
      %v571 = vld [vmem:[%s238 + $0x5c] sm:$0xf]
      %v572 = vld [vmem:[%s238 + $0x60] sm:$0xf]
      %v573 = vld [vmem:[%s238 + $0x64] sm:$0xf]
      %v574 = vld [vmem:[%s238 + $0x68] sm:$0x1]
      %v575 = vld [vmem:[%s238 + $0xc] sm:$0xe]
      %v579 = vunpack.c.l.b16 %v571
      %v580 = vunpack.c.l.b16 %v572
      %v581 = vunpack.c.l.b16 %v573
      %v582 = vpack.c.b16 %v312, %v311
      %v583 = vpack.c.b16 %v314, %v313
      %v584 = vpack.c.b16 %v316, %v315
      %v585 = vpack.c.b16 %v318, %v317
      %v586 = vpack.c.b16 %v320, %v319
      %v587 = vpack.c.b16 %v322, %v321
      %v588 = vpack.c.b16 %v324, %v323
      %v589 = vpack.c.b16 %v326, %v325
      %v590 = vpack.c.b16 %v328, %v327
      %v591 = vpack.c.b16 %v330, %v329
      %v592 = vpack.c.b16 %v580, %v579
      %v593 = vpack.c.b16 %v581, %v581
      %v595 = vunpack.c.l.b16 %v574
      %v596 = vpack.c.b16 %v595, %v581
      %v598 = vshrl.u32 %v582, 16
      %v600 = vshll.u32 %v582, 16
      %v602 = vrot.slane %v600, 1
      %v603 = vor.u32 %v598, %v602
      %v605 = vshll.u32 %v583, 16
      %v607 = vrot.slane %v605, 1
      %v608 = vsel %vm346, %v603, %v607
      %v609 = vshrl.u32 %v583, 16
      %v611 = vor.u32 %v609, %v607
      %v613 = vshll.u32 %v584, 16
      %v615 = vrot.slane %v613, 1
      %v616 = vsel %vm346, %v611, %v615
      %v617 = vshrl.u32 %v584, 16
      %v619 = vor.u32 %v617, %v615
      %v621 = vshll.u32 %v585, 16
      %v623 = vrot.slane %v621, 1
      %v624 = vsel %vm346, %v619, %v623
      %v625 = vshrl.u32 %v585, 16
      %v627 = vor.u32 %v625, %v623
      %v629 = vshll.u32 %v586, 16
      %v631 = vrot.slane %v629, 1
      %v632 = vsel %vm346, %v627, %v631
      %v633 = vshrl.u32 %v586, 16
      %v635 = vor.u32 %v633, %v631
      %v637 = vshll.u32 %v587, 16
      %v639 = vrot.slane %v637, 1
      %v640 = vsel %vm346, %v635, %v639
      %v641 = vshrl.u32 %v587, 16
      %v643 = vor.u32 %v641, %v639
      %v645 = vshll.u32 %v588, 16
      %v647 = vrot.slane %v645, 1
      %v648 = vsel %vm346, %v643, %v647
      %v649 = vshrl.u32 %v588, 16
      %v651 = vor.u32 %v649, %v647
      %v653 = vshll.u32 %v589, 16
      %v655 = vrot.slane %v653, 1
      %v656 = vsel %vm346, %v651, %v655
      %v657 = vshrl.u32 %v589, 16
      %v659 = vor.u32 %v657, %v655
      %v661 = vshll.u32 %v590, 16
      %v663 = vrot.slane %v661, 1
      %v664 = vsel %vm346, %v659, %v663
      %v665 = vshrl.u32 %v590, 16
      %v667 = vor.u32 %v665, %v663
      %v669 = vshll.u32 %v591, 16
      %v671 = vrot.slane %v669, 1
      %v672 = vsel %vm346, %v667, %v671
      %v673 = vshrl.u32 %v591, 16
      %v675 = vor.u32 %v673, %v671
      %v677 = vshll.u32 %v592, 16
      %v679 = vrot.slane %v677, 1
      %v680 = vsel %vm346, %v675, %v679
      %v681 = vshrl.u32 %v592, 16
      %v683 = vor.u32 %v681, %v679
      %v685 = vshll.u32 %v596, 16
      %v687 = vrot.slane %v685, 1
      %v688 = vsel %vm346, %v683, %v687
      %v689 = vshrl.u32 %v596, 16
      %v691 = vor.u32 %v689, %v687
      %692 = vrot.lane.b32.xlu0 %v608, 8
      %v693 = vpop.permute.xlu0 %692
      %694 = vrot.lane.b32.xlu0 %v616, 8
      %v695 = vpop.permute.xlu0 %694
      %696 = vrot.lane.b32.xlu0 %v624, 8
      %v697 = vpop.permute.xlu0 %696
      %698 = vrot.lane.b32.xlu0 %v632, 8
      %v699 = vpop.permute.xlu0 %698
      %700 = vrot.lane.b32.xlu0 %v640, 8
      %v701 = vpop.permute.xlu0 %700
      %702 = vrot.lane.b32.xlu0 %v648, 8
      %v703 = vpop.permute.xlu0 %702
      %704 = vrot.lane.b32.xlu0 %v656, 8
      %v705 = vpop.permute.xlu0 %704
      %706 = vrot.lane.b32.xlu0 %v664, 8
      %v707 = vpop.permute.xlu0 %706
      %708 = vrot.lane.b32.xlu0 %v672, 8
      %v709 = vpop.permute.xlu0 %708
      %710 = vrot.lane.b32.xlu0 %v680, 8
      %v711 = vpop.permute.xlu0 %710
      %712 = vrot.lane.b32.xlu0 %v688, 8
      %v713 = vpop.permute.xlu0 %712
      %714 = vrot.lane.b32.xlu0 %v691, 8
      %v715 = vpop.permute.xlu0 %714
      %v717 = vunpack.c.l.b16 %v575
      %v718 = vpack.c.b16 %v312, %v717
      %v719 = vrot.slane %v718, 1
      %v720 = vrot.slane %v583, 1
      %v721 = vsel %vm469, %v719, %v720
      %v722 = vrot.slane %v584, 1
      %v723 = vsel %vm469, %v720, %v722
      %v724 = vrot.slane %v585, 1
      %v725 = vsel %vm469, %v722, %v724
      %v726 = vrot.slane %v586, 1
      %v727 = vsel %vm469, %v724, %v726
      %v728 = vrot.slane %v587, 1
      %v729 = vsel %vm469, %v726, %v728
      %v730 = vrot.slane %v588, 1
      %v731 = vsel %vm469, %v728, %v730
      %v732 = vrot.slane %v589, 1
      %v733 = vsel %vm469, %v730, %v732
      %v734 = vrot.slane %v590, 1
      %v735 = vsel %vm469, %v732, %v734
      %v736 = vrot.slane %v591, 1
      %v737 = vsel %vm469, %v734, %v736
      %v738 = vrot.slane %v592, 1
      %v739 = vsel %vm469, %v736, %v738
      %v740 = vrot.slane %v596, 1
      %v741 = vsel %vm469, %v738, %v740
      %742 = vrot.lane.b32.xlu0 %v721, 16
      %v743 = vpop.permute.xlu0 %742
      %744 = vrot.lane.b32.xlu0 %v723, 16
      %v745 = vpop.permute.xlu0 %744
      %746 = vrot.lane.b32.xlu0 %v725, 16
      %v747 = vpop.permute.xlu0 %746
      %748 = vrot.lane.b32.xlu0 %v727, 16
      %v749 = vpop.permute.xlu0 %748
      %750 = vrot.lane.b32.xlu0 %v729, 16
      %v751 = vpop.permute.xlu0 %750
      %752 = vrot.lane.b32.xlu0 %v731, 16
      %v753 = vpop.permute.xlu0 %752
      %754 = vrot.lane.b32.xlu0 %v733, 16
      %v755 = vpop.permute.xlu0 %754
      %756 = vrot.lane.b32.xlu0 %v735, 16
      %v757 = vpop.permute.xlu0 %756
      %758 = vrot.lane.b32.xlu0 %v737, 16
      %v759 = vpop.permute.xlu0 %758
      %760 = vrot.lane.b32.xlu0 %v739, 16
      %v761 = vpop.permute.xlu0 %760
      %762 = vrot.lane.b32.xlu0 %v741, 16
      %v763 = vpop.permute.xlu0 %762
      %764 = vrot.lane.b32.xlu0 %v740, 16
      %v765 = vpop.permute.xlu0 %764
      %v767 = vsel %vm517, %v582, %v693
      %v769 = vsel %vm517, %v583, %v695
      %v771 = vsel %vm517, %v584, %v697
      %v773 = vsel %vm517, %v585, %v699
      %v775 = vsel %vm517, %v586, %v701
      %v777 = vsel %vm517, %v587, %v703
      %v779 = vsel %vm517, %v588, %v705
      %v781 = vsel %vm517, %v589, %v707
      %v783 = vsel %vm517, %v590, %v709
      %v785 = vsel %vm517, %v591, %v711
      %v787 = vsel %vm517, %v592, %v713
      %v790 = vsel %vm517, %v593, %v715
      %v792 = vsel %vm543, %v767, %v743
      %v794 = vsel %vm543, %v769, %v745
      %v796 = vsel %vm543, %v771, %v747
      %v798 = vsel %vm543, %v773, %v749
      %v800 = vsel %vm543, %v775, %v751
      %v802 = vsel %vm543, %v777, %v753
      %v804 = vsel %vm543, %v779, %v755
      %v806 = vsel %vm543, %v781, %v757
      %v808 = vsel %vm543, %v783, %v759
      %v810 = vsel %vm543, %v785, %v761
      %v812 = vsel %vm543, %v787, %v763
      %v814 = vsel %vm543, %v790, %v765
      %v815 = vld [vmem:[%s1 + $0xc] sm:$0xf]
      %v816 = vld [vmem:[%s1 + $0x10] sm:$0xf]
      %v817 = vld [vmem:[%s1 + $0x14] sm:$0xf]
      %v821 = vunpack.c.l.b16 %v815
      %v822 = vunpack.c.l.b16 %v816
      %v823 = vunpack.c.l.b16 %v817
      %v824 = vpack.c.b16 %v822, %v821
      %v825 = vpack.c.b16 %v823, %v823
      %vm827 = vcmask 195584
      %v828 = vsel %vm827, %v792, 0
      %v830 = vsel %vm827, %v794, 0
      %v832 = vsel %vm827, %v796, 0
      %v834 = vsel %vm827, %v798, 0
      %v836 = vsel %vm827, %v800, 0
      %v838 = vsel %vm827, %v802, 0
      %v840 = vsel %vm827, %v804, 0
      %v842 = vsel %vm827, %v806, 0
      %v844 = vsel %vm827, %v808, 0
      %v846 = vsel %vm827, %v810, 0
      %v848 = vsel %vm827, %v812, 0
      %v850 = vsel %vm827, %v814, 0
      %vm852 = vcmask 1043456
      %v854 = vsel %vm852, %v825, 0
      %856 = vmatpush.bf16.msra.mxu0 0
      %857 = vmatpush.bf16.msra.mxu0 0
      %858 = vmatpush.bf16.msra.mxu0 0
      %859 = vmatpush.bf16.msra.mxu0 0
      %860 = vmatpush.bf16.msra.mxu0 0
      %861 = vmatpush.bf16.msra.mxu0 0
      %862 = vmatpush.bf16.msra.mxu0 %v854
      %863 = vmatpush.bf16.msra.mxu0 %v824
      %864 = vmatmul.bf16.gmra.mxu0 %v828
      %v865 = vpop.f32.mrf.mxu0
      %v866 = vadd.f32 0.0, %v865
      %v867 = vpop.f32.mrf.mxu0
      %v868 = vadd.f32 0.0, %v867
      %869 = vmatmul.bf16.gmra.mxu0 %v830
      %v870 = vpop.f32.mrf.mxu0
      %v871 = vadd.f32 0.0, %v870
      %v872 = vpop.f32.mrf.mxu0
      %v873 = vadd.f32 0.0, %v872
      %874 = vmatmul.bf16.gmra.mxu0 %v832
      %v875 = vpop.f32.mrf.mxu0
      %v876 = vadd.f32 0.0, %v875
      %v877 = vpop.f32.mrf.mxu0
      %v878 = vadd.f32 0.0, %v877
      %879 = vmatmul.bf16.gmra.mxu0 %v834
      %v880 = vpop.f32.mrf.mxu0
      %v881 = vadd.f32 0.0, %v880
      %v882 = vpop.f32.mrf.mxu0
      %v883 = vadd.f32 0.0, %v882
      %884 = vmatmul.bf16.gmra.mxu0 %v836
      %v885 = vpop.f32.mrf.mxu0
      %v886 = vadd.f32 0.0, %v885
      %v887 = vpop.f32.mrf.mxu0
      %v888 = vadd.f32 0.0, %v887
      %889 = vmatmul.bf16.gmra.mxu0 %v838
      %v890 = vpop.f32.mrf.mxu0
      %v891 = vadd.f32 0.0, %v890
      %v892 = vpop.f32.mrf.mxu0
      %v893 = vadd.f32 0.0, %v892
      %894 = vmatmul.bf16.gmra.mxu0 %v840
      %v895 = vpop.f32.mrf.mxu0
      %v896 = vadd.f32 0.0, %v895
      %v897 = vpop.f32.mrf.mxu0
      %v898 = vadd.f32 0.0, %v897
      %899 = vmatmul.bf16.gmra.mxu0 %v842
      %v900 = vpop.f32.mrf.mxu0
      %v901 = vadd.f32 0.0, %v900
      %v902 = vpop.f32.mrf.mxu0
      %v903 = vadd.f32 0.0, %v902
      %904 = vmatmul.bf16.gmra.mxu0 %v844
      %v905 = vpop.f32.mrf.mxu0
      %v906 = vadd.f32 0.0, %v905
      %v907 = vpop.f32.mrf.mxu0
      %v908 = vadd.f32 0.0, %v907
      %909 = vmatmul.bf16.gmra.mxu0 %v846
      %v910 = vpop.f32.mrf.mxu0
      %v911 = vadd.f32 0.0, %v910
      %v912 = vpop.f32.mrf.mxu0
      %v913 = vadd.f32 0.0, %v912
      %914 = vmatmul.bf16.gmra.mxu0 %v848
      %v915 = vpop.f32.mrf.mxu0
      %v916 = vadd.f32 0.0, %v915
      %v917 = vpop.f32.mrf.mxu0
      %v918 = vadd.f32 0.0, %v917
      %919 = vmatmul.bf16.gmra.mxu0 %v850
      %v920 = vpop.f32.mrf.mxu0
      %v921 = vadd.f32 0.0, %v920
      %v922 = vpop.f32.mrf.mxu0
      %923 = vdwg.mxu0
      %v927 = vunpack.c.l.b16 %v568
      %v928 = vunpack.c.l.b16 %v569
      %v929 = vunpack.c.l.b16 %v570
      %v930 = vpack.c.b16 %v928, %v927
      %v931 = vpack.c.b16 %v929, %v929
      %v933 = vsel %vm827, %v545, 0
      %v935 = vsel %vm827, %v547, 0
      %v937 = vsel %vm827, %v549, 0
      %v939 = vsel %vm827, %v551, 0
      %v941 = vsel %vm827, %v553, 0
      %v943 = vsel %vm827, %v555, 0
      %v945 = vsel %vm827, %v557, 0
      %v947 = vsel %vm827, %v559, 0
      %v949 = vsel %vm827, %v561, 0
      %v951 = vsel %vm827, %v563, 0
      %v953 = vsel %vm827, %v565, 0
      %v955 = vsel %vm827, %v567, 0
      %v958 = vsel %vm852, %v931, 0
      %960 = vmatpush.bf16.msra.mxu0 0
      %961 = vmatpush.bf16.msra.mxu0 0
      %962 = vmatpush.bf16.msra.mxu0 0
      %963 = vmatpush.bf16.msra.mxu0 0
      %964 = vmatpush.bf16.msra.mxu0 0
      %965 = vmatpush.bf16.msra.mxu0 0
      %966 = vmatpush.bf16.msra.mxu0 %v958
      %967 = vmatpush.bf16.msra.mxu0 %v930
      %968 = vmatmul.bf16.gmra.mxu0 %v933
      %v969 = vpop.f32.mrf.mxu0
      %v970 = vadd.f32 %v866, %v969
      %v971 = vpop.f32.mrf.mxu0
      %v972 = vadd.f32 %v868, %v971
      %973 = vmatmul.bf16.gmra.mxu0 %v935
      %v974 = vpop.f32.mrf.mxu0
      %v975 = vadd.f32 %v871, %v974
      %v976 = vpop.f32.mrf.mxu0
      %v977 = vadd.f32 %v873, %v976
      %978 = vmatmul.bf16.gmra.mxu0 %v937
      %v979 = vpop.f32.mrf.mxu0
      %v980 = vadd.f32 %v876, %v979
      %v981 = vpop.f32.mrf.mxu0
      %v982 = vadd.f32 %v878, %v981
      %983 = vmatmul.bf16.gmra.mxu0 %v939
      %v984 = vpop.f32.mrf.mxu0
      %v985 = vadd.f32 %v881, %v984
      %v986 = vpop.f32.mrf.mxu0
      %v987 = vadd.f32 %v883, %v986
      %988 = vmatmul.bf16.gmra.mxu0 %v941
      %v989 = vpop.f32.mrf.mxu0
      %v990 = vadd.f32 %v886, %v989
      %v991 = vpop.f32.mrf.mxu0
      %v992 = vadd.f32 %v888, %v991
      %993 = vmatmul.bf16.gmra.mxu0 %v943
      %v994 = vpop.f32.mrf.mxu0
      %v995 = vadd.f32 %v891, %v994
      %v996 = vpop.f32.mrf.mxu0
      %v997 = vadd.f32 %v893, %v996
      %998 = vmatmul.bf16.gmra.mxu0 %v945
      %v999 = vpop.f32.mrf.mxu0
      %v1000 = vadd.f32 %v896, %v999
      %v1001 = vpop.f32.mrf.mxu0
      %v1002 = vadd.f32 %v898, %v1001
      %1003 = vmatmul.bf16.gmra.mxu0 %v947
      %v1004 = vpop.f32.mrf.mxu0
      %v1005 = vadd.f32 %v901, %v1004
      %v1006 = vpop.f32.mrf.mxu0
      %v1007 = vadd.f32 %v903, %v1006
      %1008 = vmatmul.bf16.gmra.mxu0 %v949
      %v1009 = vpop.f32.mrf.mxu0
      %v1010 = vadd.f32 %v906, %v1009
      %v1011 = vpop.f32.mrf.mxu0
      %v1012 = vadd.f32 %v908, %v1011
      %1013 = vmatmul.bf16.gmra.mxu0 %v951
      %v1014 = vpop.f32.mrf.mxu0
      %v1015 = vadd.f32 %v911, %v1014
      %v1016 = vpop.f32.mrf.mxu0
      %v1017 = vadd.f32 %v913, %v1016
      %1018 = vmatmul.bf16.gmra.mxu0 %v953
      %v1019 = vpop.f32.mrf.mxu0
      %v1020 = vadd.f32 %v916, %v1019
      %v1021 = vpop.f32.mrf.mxu0
      %v1022 = vadd.f32 %v918, %v1021
      %1023 = vmatmul.bf16.gmra.mxu0 %v955
      %v1024 = vpop.f32.mrf.mxu0
      %v1025 = vadd.f32 %v921, %v1024
      %v1026 = vpop.f32.mrf.mxu0
      %1027 = vdwg.mxu0
      %v1028 = vld [vmem:[%s238 + $0x18] sm:$0xf]
      %v1029 = vld [vmem:[%s238 + $0x1c] sm:$0xf]
      %v1030 = vld [vmem:[%s238 + $0x20] sm:$0xf]
      %v1031 = vld [vmem:[%s238 + $0x24] sm:$0xf]
      %v1032 = vld [vmem:[%s238 + $0x28] sm:$0xf]
      %v1033 = vld [vmem:[%s238 + $0x2c] sm:$0xf]
      %v1034 = vld [vmem:[%s238 + $0x30] sm:$0xf]
      %v1035 = vld [vmem:[%s238 + $0x34] sm:$0xf]
      %v1036 = vld [vmem:[%s238 + $0x38] sm:$0xf]
      %v1037 = vld [vmem:[%s238 + $0x3c] sm:$0xf]
      %v1038 = vld [vmem:[%s238 + $0x40] sm:$0xf]
      %v1039 = vld [vmem:[%s238 + $0x44] sm:$0xf]
      %v1040 = vld [vmem:[%s238 + $0x48] sm:$0xf]
      %v1041 = vld [vmem:[%s238 + $0x4c] sm:$0xf]
      %v1042 = vld [vmem:[%s238 + $0x50] sm:$0xf]
      %v1043 = vld [vmem:[%s238 + $0x54] sm:$0xf]
      %v1044 = vld [vmem:[%s238 + $0x58] sm:$0xf]
      %v1045 = vld [vmem:[%s238 + $0x5c] sm:$0xf]
      %v1046 = vld [vmem:[%s238 + $0x60] sm:$0xf]
      %v1047 = vld [vmem:[%s238 + $0x64] sm:$0xf]
      %v1048 = vld [vmem:[%s238 + $0x68] sm:$0xf]
      %v1049 = vld [vmem:[%s238 + $0x6c] sm:$0xf]
      %v1050 = vld [vmem:[%s238 + $0x70] sm:$0xf]
      %v1051 = vld [vmem:[%s238 + $0x74] sm:$0x1]
      %v1052 = vld [vmem:[%s238 + $0x18] sm:$0xe]
      %v1076 = vunpack.c.l.b16 %v1028
      %v1077 = vunpack.c.l.b16 %v1029
      %v1078 = vunpack.c.l.b16 %v1030
      %v1079 = vunpack.c.l.b16 %v1031
      %v1080 = vunpack.c.l.b16 %v1032
      %v1081 = vunpack.c.l.b16 %v1033
      %v1082 = vunpack.c.l.b16 %v1034
      %v1083 = vunpack.c.l.b16 %v1035
      %v1084 = vunpack.c.l.b16 %v1036
      %v1085 = vunpack.c.l.b16 %v1037
      %v1086 = vunpack.c.l.b16 %v1038
      %v1087 = vunpack.c.l.b16 %v1039
      %v1088 = vunpack.c.l.b16 %v1040
      %v1089 = vunpack.c.l.b16 %v1041
      %v1090 = vunpack.c.l.b16 %v1042
      %v1091 = vunpack.c.l.b16 %v1043
      %v1092 = vunpack.c.l.b16 %v1044
      %v1093 = vunpack.c.l.b16 %v1045
      %v1094 = vunpack.c.l.b16 %v1046
      %v1095 = vunpack.c.l.b16 %v1047
      %v1096 = vunpack.c.l.b16 %v1048
      %v1097 = vunpack.c.l.b16 %v1049
      %v1098 = vunpack.c.l.b16 %v1050
      %v1099 = vpack.c.b16 %v1077, %v1076
      %v1100 = vpack.c.b16 %v1079, %v1078
      %v1101 = vpack.c.b16 %v1081, %v1080
      %v1102 = vpack.c.b16 %v1083, %v1082
      %v1103 = vpack.c.b16 %v1085, %v1084
      %v1104 = vpack.c.b16 %v1087, %v1086
      %v1105 = vpack.c.b16 %v1089, %v1088
      %v1106 = vpack.c.b16 %v1091, %v1090
      %v1107 = vpack.c.b16 %v1093, %v1092
      %v1108 = vpack.c.b16 %v1095, %v1094
      %v1109 = vpack.c.b16 %v1097, %v1096
      %v1110 = vpack.c.b16 %v1098, %v1098
      %v1112 = vunpack.c.l.b16 %v1051
      %v1113 = vpack.c.b16 %v1112, %v1098
      %v1115 = vshrl.u32 %v1099, 16
      %v1117 = vshll.u32 %v1099, 16
      %v1119 = vrot.slane %v1117, 1
      %v1120 = vor.u32 %v1115, %v1119
      %v1122 = vshll.u32 %v1100, 16
      %v1124 = vrot.slane %v1122, 1
      %v1125 = vsel %vm346, %v1120, %v1124
      %v1126 = vshrl.u32 %v1100, 16
      %v1128 = vor.u32 %v1126, %v1124
      %v1130 = vshll.u32 %v1101, 16
      %v1132 = vrot.slane %v1130, 1
      %v1133 = vsel %vm346, %v1128, %v1132
      %v1134 = vshrl.u32 %v1101, 16
      %v1136 = vor.u32 %v1134, %v1132
      %v1138 = vshll.u32 %v1102, 16
      %v1140 = vrot.slane %v1138, 1
      %v1141 = vsel %vm346, %v1136, %v1140
      %v1142 = vshrl.u32 %v1102, 16
      %v1144 = vor.u32 %v1142, %v1140
      %v1146 = vshll.u32 %v1103, 16
      %v1148 = vrot.slane %v1146, 1
      %v1149 = vsel %vm346, %v1144, %v1148
      %v1150 = vshrl.u32 %v1103, 16
      %v1152 = vor.u32 %v1150, %v1148
      %v1154 = vshll.u32 %v1104, 16
      %v1156 = vrot.slane %v1154, 1
      %v1157 = vsel %vm346, %v1152, %v1156
      %v1158 = vshrl.u32 %v1104, 16
      %v1160 = vor.u32 %v1158, %v1156
      %v1162 = vshll.u32 %v1105, 16
      %v1164 = vrot.slane %v1162, 1
      %v1165 = vsel %vm346, %v1160, %v1164
      %v1166 = vshrl.u32 %v1105, 16
      %v1168 = vor.u32 %v1166, %v1164
      %v1170 = vshll.u32 %v1106, 16
      %v1172 = vrot.slane %v1170, 1
      %v1173 = vsel %vm346, %v1168, %v1172
      %v1174 = vshrl.u32 %v1106, 16
      %v1176 = vor.u32 %v1174, %v1172
      %v1178 = vshll.u32 %v1107, 16
      %v1180 = vrot.slane %v1178, 1
      %v1181 = vsel %vm346, %v1176, %v1180
      %v1182 = vshrl.u32 %v1107, 16
      %v1184 = vor.u32 %v1182, %v1180
      %v1186 = vshll.u32 %v1108, 16
      %v1188 = vrot.slane %v1186, 1
      %v1189 = vsel %vm346, %v1184, %v1188
      %v1190 = vshrl.u32 %v1108, 16
      %v1192 = vor.u32 %v1190, %v1188
      %v1194 = vshll.u32 %v1109, 16
      %v1196 = vrot.slane %v1194, 1
      %v1197 = vsel %vm346, %v1192, %v1196
      %v1198 = vshrl.u32 %v1109, 16
      %v1200 = vor.u32 %v1198, %v1196
      %v1202 = vshll.u32 %v1113, 16
      %v1204 = vrot.slane %v1202, 1
      %v1205 = vsel %vm346, %v1200, %v1204
      %v1206 = vshrl.u32 %v1113, 16
      %v1208 = vor.u32 %v1206, %v1204
      %1209 = vrot.lane.b32.xlu0 %v1125, 8
      %v1210 = vpop.permute.xlu0 %1209
      %1211 = vrot.lane.b32.xlu0 %v1133, 8
      %v1212 = vpop.permute.xlu0 %1211
      %1213 = vrot.lane.b32.xlu0 %v1141, 8
      %v1214 = vpop.permute.xlu0 %1213
      %1215 = vrot.lane.b32.xlu0 %v1149, 8
      %v1216 = vpop.permute.xlu0 %1215
      %1217 = vrot.lane.b32.xlu0 %v1157, 8
      %v1218 = vpop.permute.xlu0 %1217
      %1219 = vrot.lane.b32.xlu0 %v1165, 8
      %v1220 = vpop.permute.xlu0 %1219
      %1221 = vrot.lane.b32.xlu0 %v1173, 8
      %v1222 = vpop.permute.xlu0 %1221
      %1223 = vrot.lane.b32.xlu0 %v1181, 8
      %v1224 = vpop.permute.xlu0 %1223
      %1225 = vrot.lane.b32.xlu0 %v1189, 8
      %v1226 = vpop.permute.xlu0 %1225
      %1227 = vrot.lane.b32.xlu0 %v1197, 8
      %v1228 = vpop.permute.xlu0 %1227
      %1229 = vrot.lane.b32.xlu0 %v1205, 8
      %v1230 = vpop.permute.xlu0 %1229
      %1231 = vrot.lane.b32.xlu0 %v1208, 8
      %v1232 = vpop.permute.xlu0 %1231
      %v1234 = vunpack.c.l.b16 %v1052
      %v1235 = vpack.c.b16 %v1077, %v1234
      %v1236 = vrot.slane %v1235, 1
      %v1237 = vrot.slane %v1100, 1
      %v1238 = vsel %vm469, %v1236, %v1237
      %v1239 = vrot.slane %v1101, 1
      %v1240 = vsel %vm469, %v1237, %v1239
      %v1241 = vrot.slane %v1102, 1
      %v1242 = vsel %vm469, %v1239, %v1241
      %v1243 = vrot.slane %v1103, 1
      %v1244 = vsel %vm469, %v1241, %v1243
      %v1245 = vrot.slane %v1104, 1
      %v1246 = vsel %vm469, %v1243, %v1245
      %v1247 = vrot.slane %v1105, 1
      %v1248 = vsel %vm469, %v1245, %v1247
      %v1249 = vrot.slane %v1106, 1
      %v1250 = vsel %vm469, %v1247, %v1249
      %v1251 = vrot.slane %v1107, 1
      %v1252 = vsel %vm469, %v1249, %v1251
      %v1253 = vrot.slane %v1108, 1
      %v1254 = vsel %vm469, %v1251, %v1253
      %v1255 = vrot.slane %v1109, 1
      %v1256 = vsel %vm469, %v1253, %v1255
      %v1257 = vrot.slane %v1113, 1
      %v1258 = vsel %vm469, %v1255, %v1257
      %1259 = vrot.lane.b32.xlu0 %v1238, 16
      %v1260 = vpop.permute.xlu0 %1259
      %1261 = vrot.lane.b32.xlu0 %v1240, 16
      %v1262 = vpop.permute.xlu0 %1261
      %1263 = vrot.lane.b32.xlu0 %v1242, 16
      %v1264 = vpop.permute.xlu0 %1263
      %1265 = vrot.lane.b32.xlu0 %v1244, 16
      %v1266 = vpop.permute.xlu0 %1265
      %1267 = vrot.lane.b32.xlu0 %v1246, 16
      %v1268 = vpop.permute.xlu0 %1267
      %1269 = vrot.lane.b32.xlu0 %v1248, 16
      %v1270 = vpop.permute.xlu0 %1269
      %1271 = vrot.lane.b32.xlu0 %v1250, 16
      %v1272 = vpop.permute.xlu0 %1271
      %1273 = vrot.lane.b32.xlu0 %v1252, 16
      %v1274 = vpop.permute.xlu0 %1273
      %1275 = vrot.lane.b32.xlu0 %v1254, 16
      %v1276 = vpop.permute.xlu0 %1275
      %1277 = vrot.lane.b32.xlu0 %v1256, 16
      %v1278 = vpop.permute.xlu0 %1277
      %1279 = vrot.lane.b32.xlu0 %v1258, 16
      %v1280 = vpop.permute.xlu0 %1279
      %1281 = vrot.lane.b32.xlu0 %v1257, 16
      %v1282 = vpop.permute.xlu0 %1281
      %v1284 = vsel %vm517, %v1099, %v1210
      %v1286 = vsel %vm517, %v1100, %v1212
      %v1288 = vsel %vm517, %v1101, %v1214
      %v1290 = vsel %vm517, %v1102, %v1216
      %v1292 = vsel %vm517, %v1103, %v1218
      %v1294 = vsel %vm517, %v1104, %v1220
      %v1296 = vsel %vm517, %v1105, %v1222
      %v1298 = vsel %vm517, %v1106, %v1224
      %v1300 = vsel %vm517, %v1107, %v1226
      %v1302 = vsel %vm517, %v1108, %v1228
      %v1304 = vsel %vm517, %v1109, %v1230
      %v1307 = vsel %vm517, %v1110, %v1232
      %v1309 = vsel %vm543, %v1284, %v1260
      %v1311 = vsel %vm543, %v1286, %v1262
      %v1313 = vsel %vm543, %v1288, %v1264
      %v1315 = vsel %vm543, %v1290, %v1266
      %v1317 = vsel %vm543, %v1292, %v1268
      %v1319 = vsel %vm543, %v1294, %v1270
      %v1321 = vsel %vm543, %v1296, %v1272
      %v1323 = vsel %vm543, %v1298, %v1274
      %v1325 = vsel %vm543, %v1300, %v1276
      %v1327 = vsel %vm543, %v1302, %v1278
      %v1329 = vsel %vm543, %v1304, %v1280
      %v1331 = vsel %vm543, %v1307, %v1282
      %v1332 = vld [vmem:[%s1 + $0x18] sm:$0xf]
      %v1333 = vld [vmem:[%s1 + $0x1c] sm:$0xf]
      %v1334 = vld [vmem:[%s1 + $0x20] sm:$0xf]
      %v1338 = vunpack.c.l.b16 %v1332
      %v1339 = vunpack.c.l.b16 %v1333
      %v1340 = vunpack.c.l.b16 %v1334
      %v1341 = vpack.c.b16 %v1339, %v1338
      %v1342 = vpack.c.b16 %v1340, %v1340
      %v1344 = vsel %vm827, %v1309, 0
      %v1346 = vsel %vm827, %v1311, 0
      %v1348 = vsel %vm827, %v1313, 0
      %v1350 = vsel %vm827, %v1315, 0
      %v1352 = vsel %vm827, %v1317, 0
      %v1354 = vsel %vm827, %v1319, 0
      %v1356 = vsel %vm827, %v1321, 0
      %v1358 = vsel %vm827, %v1323, 0
      %v1360 = vsel %vm827, %v1325, 0
      %v1362 = vsel %vm827, %v1327, 0
      %v1364 = vsel %vm827, %v1329, 0
      %v1366 = vsel %vm827, %v1331, 0
      %v1369 = vsel %vm852, %v1342, 0
      %1371 = vmatpush.bf16.msra.mxu0 0
      %1372 = vmatpush.bf16.msra.mxu0 0
      %1373 = vmatpush.bf16.msra.mxu0 0
      %1374 = vmatpush.bf16.msra.mxu0 0
      %1375 = vmatpush.bf16.msra.mxu0 0
      %1376 = vmatpush.bf16.msra.mxu0 0
      %1377 = vmatpush.bf16.msra.mxu0 %v1369
      %1378 = vmatpush.bf16.msra.mxu0 %v1341
      %1379 = vmatmul.bf16.gmra.mxu0 %v1344
      %v1380 = vpop.f32.mrf.mxu0
      %v1381 = vadd.f32 0.0, %v1380
      %v1382 = vpop.f32.mrf.mxu0
      %v1383 = vadd.f32 0.0, %v1382
      %1384 = vmatmul.bf16.gmra.mxu0 %v1346
      %v1385 = vpop.f32.mrf.mxu0
      %v1386 = vadd.f32 0.0, %v1385
      %v1387 = vpop.f32.mrf.mxu0
      %v1388 = vadd.f32 0.0, %v1387
      %1389 = vmatmul.bf16.gmra.mxu0 %v1348
      %v1390 = vpop.f32.mrf.mxu0
      %v1391 = vadd.f32 0.0, %v1390
      %v1392 = vpop.f32.mrf.mxu0
      %v1393 = vadd.f32 0.0, %v1392
      %1394 = vmatmul.bf16.gmra.mxu0 %v1350
      %v1395 = vpop.f32.mrf.mxu0
      %v1396 = vadd.f32 0.0, %v1395
      %v1397 = vpop.f32.mrf.mxu0
      %v1398 = vadd.f32 0.0, %v1397
      %1399 = vmatmul.bf16.gmra.mxu0 %v1352
      %v1400 = vpop.f32.mrf.mxu0
      %v1401 = vadd.f32 0.0, %v1400
      %v1402 = vpop.f32.mrf.mxu0
      %v1403 = vadd.f32 0.0, %v1402
      %1404 = vmatmul.bf16.gmra.mxu0 %v1354
      %v1405 = vpop.f32.mrf.mxu0
      %v1406 = vadd.f32 0.0, %v1405
      %v1407 = vpop.f32.mrf.mxu0
      %v1408 = vadd.f32 0.0, %v1407
      %1409 = vmatmul.bf16.gmra.mxu0 %v1356
      %v1410 = vpop.f32.mrf.mxu0
      %v1411 = vadd.f32 0.0, %v1410
      %v1412 = vpop.f32.mrf.mxu0
      %v1413 = vadd.f32 0.0, %v1412
      %1414 = vmatmul.bf16.gmra.mxu0 %v1358
      %v1415 = vpop.f32.mrf.mxu0
      %v1416 = vadd.f32 0.0, %v1415
      %v1417 = vpop.f32.mrf.mxu0
      %v1418 = vadd.f32 0.0, %v1417
      %1419 = vmatmul.bf16.gmra.mxu0 %v1360
      %v1420 = vpop.f32.mrf.mxu0
      %v1421 = vadd.f32 0.0, %v1420
      %v1422 = vpop.f32.mrf.mxu0
      %v1423 = vadd.f32 0.0, %v1422
      %1424 = vmatmul.bf16.gmra.mxu0 %v1362
      %v1425 = vpop.f32.mrf.mxu0
      %v1426 = vadd.f32 0.0, %v1425
      %v1427 = vpop.f32.mrf.mxu0
      %v1428 = vadd.f32 0.0, %v1427
      %1429 = vmatmul.bf16.gmra.mxu0 %v1364
      %v1430 = vpop.f32.mrf.mxu0
      %v1431 = vadd.f32 0.0, %v1430
      %v1432 = vpop.f32.mrf.mxu0
      %v1433 = vadd.f32 0.0, %v1432
      %1434 = vmatmul.bf16.gmra.mxu0 %v1366
      %v1435 = vpop.f32.mrf.mxu0
      %v1436 = vadd.f32 0.0, %v1435
      %v1437 = vpop.f32.mrf.mxu0
      %1438 = vdwg.mxu0
      %v1439 = vadd.f32 %v970, %v1381
      %v1440 = vadd.f32 %v972, %v1383
      %v1441 = vadd.f32 %v975, %v1386
      %v1442 = vadd.f32 %v977, %v1388
      %v1443 = vadd.f32 %v980, %v1391
      %v1444 = vadd.f32 %v982, %v1393
      %v1445 = vadd.f32 %v985, %v1396
      %v1446 = vadd.f32 %v987, %v1398
      %v1447 = vadd.f32 %v990, %v1401
      %v1448 = vadd.f32 %v992, %v1403
      %v1449 = vadd.f32 %v995, %v1406
      %v1450 = vadd.f32 %v997, %v1408
      %v1451 = vadd.f32 %v1000, %v1411
      %v1452 = vadd.f32 %v1002, %v1413
      %v1453 = vadd.f32 %v1005, %v1416
      %v1454 = vadd.f32 %v1007, %v1418
      %v1455 = vadd.f32 %v1010, %v1421
      %v1456 = vadd.f32 %v1012, %v1423
      %v1457 = vadd.f32 %v1015, %v1426
      %v1458 = vadd.f32 %v1017, %v1428
      %v1459 = vadd.f32 %v1020, %v1431
      %v1460 = vadd.f32 %v1022, %v1433
      %v1461 = vadd.f32 %v1025, %v1436
      %v1462 = vld [vmem:[%s2] sm:$0x1]
      %v1464 = vperm.slane %v1462, 0
      %v1466 = vadd.f32 %v1439, %v1464
      %v1467 = vadd.f32 %v1440, %v1464
      %v1468 = vadd.f32 %v1441, %v1464
      %v1469 = vadd.f32 %v1442, %v1464
      %v1470 = vadd.f32 %v1443, %v1464
      %v1471 = vadd.f32 %v1444, %v1464
      %v1472 = vadd.f32 %v1445, %v1464
      %v1473 = vadd.f32 %v1446, %v1464
      %v1474 = vadd.f32 %v1447, %v1464
      %v1475 = vadd.f32 %v1448, %v1464
      %v1476 = vadd.f32 %v1449, %v1464
      %v1477 = vadd.f32 %v1450, %v1464
      %v1478 = vadd.f32 %v1451, %v1464
      %v1479 = vadd.f32 %v1452, %v1464
      %v1480 = vadd.f32 %v1453, %v1464
      %v1481 = vadd.f32 %v1454, %v1464
      %v1482 = vadd.f32 %v1455, %v1464
      %v1483 = vadd.f32 %v1456, %v1464
      %v1484 = vadd.f32 %v1457, %v1464
      %v1485 = vadd.f32 %v1458, %v1464
      %v1486 = vadd.f32 %v1459, %v1464
      %v1487 = vadd.f32 %v1460, %v1464
      %v1488 = vadd.f32 %v1461, %v1464
      %v1489 = vmax.f32 %v1466, 0.0
      %v1490 = vmax.f32 %v1467, 0.0
      %v1491 = vmax.f32 %v1468, 0.0
      %v1492 = vmax.f32 %v1469, 0.0
      %v1493 = vmax.f32 %v1470, 0.0
      %v1494 = vmax.f32 %v1471, 0.0
      %v1495 = vmax.f32 %v1472, 0.0
      %v1496 = vmax.f32 %v1473, 0.0
      %v1497 = vmax.f32 %v1474, 0.0
      %v1498 = vmax.f32 %v1475, 0.0
      %v1499 = vmax.f32 %v1476, 0.0
      %v1500 = vmax.f32 %v1477, 0.0
      %v1501 = vmax.f32 %v1478, 0.0
      %v1502 = vmax.f32 %v1479, 0.0
      %v1503 = vmax.f32 %v1480, 0.0
      %v1504 = vmax.f32 %v1481, 0.0
      %v1505 = vmax.f32 %v1482, 0.0
      %v1506 = vmax.f32 %v1483, 0.0
      %v1507 = vmax.f32 %v1484, 0.0
      %v1508 = vmax.f32 %v1485, 0.0
      %v1509 = vmax.f32 %v1486, 0.0
      %v1510 = vmax.f32 %v1487, 0.0
      %v1511 = vmax.f32 %v1488, 0.0
      %1512 = vst.msk [vmem:[#allocation2] sm:$0xff] %vm517, %v1489
      %1513 = vst.msk [vmem:[#allocation2 + $0x8] sm:$0xff] %vm517, %v1490
      %1514 = vst.msk [vmem:[#allocation2 + $0x10] sm:$0xff] %vm517, %v1491
      %1515 = vst.msk [vmem:[#allocation2 + $0x18] sm:$0xff] %vm517, %v1492
      %1516 = vst.msk [vmem:[#allocation2 + $0x20] sm:$0xff] %vm517, %v1493
      %1517 = vst.msk [vmem:[#allocation2 + $0x28] sm:$0xff] %vm517, %v1494
      %1518 = vst.msk [vmem:[#allocation2 + $0x30] sm:$0xff] %vm517, %v1495
      %1519 = vst.msk [vmem:[#allocation2 + $0x38] sm:$0xff] %vm517, %v1496
      %1520 = vst.msk [vmem:[#allocation2 + $0x40] sm:$0xff] %vm517, %v1497
      %1521 = vst.msk [vmem:[#allocation2 + $0x48] sm:$0xff] %vm517, %v1498
      %1522 = vst.msk [vmem:[#allocation2 + $0x50] sm:$0xff] %vm517, %v1499
      %1523 = vst.msk [vmem:[#allocation2 + $0x58] sm:$0xff] %vm517, %v1500
      %1524 = vst.msk [vmem:[#allocation2 + $0x60] sm:$0xff] %vm517, %v1501
      %1525 = vst.msk [vmem:[#allocation2 + $0x68] sm:$0xff] %vm517, %v1502
      %1526 = vst.msk [vmem:[#allocation2 + $0x70] sm:$0xff] %vm517, %v1503
      %1527 = vst.msk [vmem:[#allocation2 + $0x78] sm:$0xff] %vm517, %v1504
      %1528 = vst.msk [vmem:[#allocation2 + $0x80] sm:$0xff] %vm517, %v1505
      %1529 = vst.msk [vmem:[#allocation2 + $0x88] sm:$0xff] %vm517, %v1506
      %1530 = vst.msk [vmem:[#allocation2 + $0x90] sm:$0xff] %vm517, %v1507
      %1531 = vst.msk [vmem:[#allocation2 + $0x98] sm:$0xff] %vm517, %v1508
      %1532 = vst.msk [vmem:[#allocation2 + $0xa0] sm:$0xff] %vm517, %v1509
      %1533 = vst.msk [vmem:[#allocation2 + $0xa8] sm:$0xff] %vm517, %v1510
      %1534 = vst.msk [vmem:[#allocation2 + $0xb0] sm:$0xff] %vm517, %v1511
      %v1535 = vld [vmem:[#allocation2] sm:$0xff]
      %v1536 = vld [vmem:[#allocation2 + $0x8] sm:$0xff]
      %v1537 = vpack.c.bf16 %v1535, %v1535
      %v1538 = vpack.c.bf16 %v1536, %v1536
      %vm1539 = vcmask 60416
      %1540 = vst.msk [vmem:[%s247] sm:$0xf] %vm1539, %v1537
      %1541 = vst.msk [vmem:[%s247 + $0x4] sm:$0xf] %vm1539, %v1538
      %v1542 = vld [vmem:[#allocation2 + $0x18] sm:$0xff]
      %v1543 = vld [vmem:[#allocation2 + $0x20] sm:$0xff]
      %v1544 = vpack.c.bf16 %v1542, %v1542
      %v1545 = vpack.c.bf16 %v1543, %v1543
      %1546 = vst.msk [vmem:[%s247 + $0x8] sm:$0xf] %vm1539, %v1544
      %1547 = vst.msk [vmem:[%s247 + $0xc] sm:$0xf] %vm1539, %v1545
      %v1548 = vld [vmem:[#allocation2 + $0x30] sm:$0xff]
      %v1549 = vld [vmem:[#allocation2 + $0x38] sm:$0xff]
      %v1550 = vpack.c.bf16 %v1548, %v1548
      %v1551 = vpack.c.bf16 %v1549, %v1549
      %1552 = vst.msk [vmem:[%s247 + $0x10] sm:$0xf] %vm1539, %v1550
      %1553 = vst.msk [vmem:[%s247 + $0x14] sm:$0xf] %vm1539, %v1551
      %v1554 = vld [vmem:[#allocation2 + $0x48] sm:$0xff]
      %v1555 = vld [vmem:[#allocation2 + $0x50] sm:$0xff]
      %v1556 = vpack.c.bf16 %v1554, %v1554
      %v1557 = vpack.c.bf16 %v1555, %v1555
      %1558 = vst.msk [vmem:[%s247 + $0x18] sm:$0xf] %vm1539, %v1556
      %1559 = vst.msk [vmem:[%s247 + $0x1c] sm:$0xf] %vm1539, %v1557
      %v1560 = vld [vmem:[#allocation2 + $0x60] sm:$0xff]
      %v1561 = vld [vmem:[#allocation2 + $0x68] sm:$0xff]
      %v1562 = vpack.c.bf16 %v1560, %v1560
      %v1563 = vpack.c.bf16 %v1561, %v1561
      %1564 = vst.msk [vmem:[%s247 + $0x20] sm:$0xf] %vm1539, %v1562
      %1565 = vst.msk [vmem:[%s247 + $0x24] sm:$0xf] %vm1539, %v1563
      %v1566 = vld [vmem:[#allocation2 + $0x78] sm:$0xff]
      %v1567 = vld [vmem:[#allocation2 + $0x80] sm:$0xff]
      %v1568 = vpack.c.bf16 %v1566, %v1566
      %v1569 = vpack.c.bf16 %v1567, %v1567
      %1570 = vst.msk [vmem:[%s247 + $0x28] sm:$0xf] %vm1539, %v1568
      %1571 = vst.msk [vmem:[%s247 + $0x2c] sm:$0xf] %vm1539, %v1569
      %v1572 = vld [vmem:[#allocation2 + $0x90] sm:$0xff]
      %v1573 = vld [vmem:[#allocation2 + $0x98] sm:$0xff]
      %v1574 = vpack.c.bf16 %v1572, %v1572
      %v1575 = vpack.c.bf16 %v1573, %v1573
      %1576 = vst.msk [vmem:[%s247 + $0x30] sm:$0xf] %vm1539, %v1574
      %1577 = vst.msk [vmem:[%s247 + $0x34] sm:$0xf] %vm1539, %v1575
      %v1578 = vld [vmem:[#allocation2 + $0xa8] sm:$0xff]
      %v1579 = vld [vmem:[#allocation2 + $0xb0] sm:$0xff]
      %v1580 = vpack.c.bf16 %v1578, %v1578
      %v1581 = vpack.c.bf16 %v1579, %v1579
      %1582 = vst.msk [vmem:[%s247 + $0x38] sm:$0xf] %vm1539, %v1580
      %1583 = vst.msk [vmem:[%s247 + $0x3c] sm:$0xf] %vm1539, %v1581
      %v1584 = vld [vmem:[#allocation2] sm:$0xff]
      %v1585 = vld [vmem:[#allocation2 + $0x8] sm:$0xff]
      %v1586 = vld [vmem:[#allocation2 + $0x18] sm:$0xff]
      %v1587 = vld [vmem:[#allocation2 + $0x20] sm:$0xff]
      %v1588 = vmax.f32 %v1584, %v1586
      %v1589 = vmax.f32 %v1585, %v1587
      %1590 = vst.msk [vmem:[#allocation2 + $0x18] sm:$0xff] %vm517, %v1588
      %1591 = vst.msk [vmem:[#allocation2 + $0x20] sm:$0xff] %vm517, %v1589
      %s1592 = scalar_lea.vmem [#allocation2], 24
      %v1593 = vld [vmem:[%s1592] ss:$2 sm:$0xff]
      %s1594 = scalar_lea.vmem [#allocation2], 25
      %v1595 = vld [vmem:[%s1594] ss:$2 sm:$0xff]
      %v1596 = vmax.f32 %v1593, %v1595
      %1597 = vst.msk [vmem:[%s257] sm:$0xff] %vm517, %v1596
      %v1598 = vld [vmem:[#allocation2 + $0x30] sm:$0xff]
      %v1599 = vld [vmem:[#allocation2 + $0x38] sm:$0xff]
      %v1600 = vld [vmem:[#allocation2 + $0x48] sm:$0xff]
      %v1601 = vld [vmem:[#allocation2 + $0x50] sm:$0xff]
      %v1602 = vmax.f32 %v1598, %v1600
      %v1603 = vmax.f32 %v1599, %v1601
      %1604 = vst.msk [vmem:[#allocation2 + $0x48] sm:$0xff] %vm517, %v1602
      %1605 = vst.msk [vmem:[#allocation2 + $0x50] sm:$0xff] %vm517, %v1603
      %s1606 = scalar_lea.vmem [#allocation2], 72
      %v1607 = vld [vmem:[%s1606] ss:$2 sm:$0xff]
      %s1608 = scalar_lea.vmem [#allocation2], 73
      %v1609 = vld [vmem:[%s1608] ss:$2 sm:$0xff]
      %v1610 = vmax.f32 %v1607, %v1609
      %1611 = vst.msk [vmem:[%s257 + $0x8] sm:$0xff] %vm517, %v1610
      %v1612 = vld [vmem:[#allocation2 + $0x60] sm:$0xff]
      %v1613 = vld [vmem:[#allocation2 + $0x68] sm:$0xff]
      %v1614 = vld [vmem:[#allocation2 + $0x78] sm:$0xff]
      %v1615 = vld [vmem:[#allocation2 + $0x80] sm:$0xff]
      %v1616 = vmax.f32 %v1612, %v1614
      %v1617 = vmax.f32 %v1613, %v1615
      %1618 = vst.msk [vmem:[#allocation2 + $0x78] sm:$0xff] %vm517, %v1616
      %1619 = vst.msk [vmem:[#allocation2 + $0x80] sm:$0xff] %vm517, %v1617
      %s1620 = scalar_lea.vmem [#allocation2], 120
      %v1621 = vld [vmem:[%s1620] ss:$2 sm:$0xff]
      %s1622 = scalar_lea.vmem [#allocation2], 121
      %v1623 = vld [vmem:[%s1622] ss:$2 sm:$0xff]
      %v1624 = vmax.f32 %v1621, %v1623
      %1625 = vst.msk [vmem:[%s257 + $0x10] sm:$0xff] %vm517, %v1624
      %v1626 = vld [vmem:[#allocation2 + $0x90] sm:$0xff]
      %v1627 = vld [vmem:[#allocation2 + $0x98] sm:$0xff]
      %v1628 = vld [vmem:[#allocation2 + $0xa8] sm:$0xff]
      %v1629 = vld [vmem:[#allocation2 + $0xb0] sm:$0xff]
      %v1630 = vmax.f32 %v1626, %v1628
      %v1631 = vmax.f32 %v1627, %v1629
      %1632 = vst.msk [vmem:[#allocation2 + $0xa8] sm:$0xff] %vm517, %v1630
      %1633 = vst.msk [vmem:[#allocation2 + $0xb0] sm:$0xff] %vm517, %v1631
      %s1634 = scalar_lea.vmem [#allocation2], 168
      %v1635 = vld [vmem:[%s1634] ss:$2 sm:$0xff]
      %s1636 = scalar_lea.vmem [#allocation2], 169
      %v1637 = vld [vmem:[%s1636] ss:$2 sm:$0xff]
      %v1638 = vmax.f32 %v1635, %v1637
      %1639 = vst.msk [vmem:[%s257 + $0x18] sm:$0xff] %vm517, %v1638
      %s1640 = smul.u32 16, %s21
      %p1641 = scmp.lt.s32.totalorder %s20, 1
      %s1642 = scalar_select %p1641, %s20, 1
      %p1643 = scmp.lt.s32.totalorder %s1640, 31
      %s1644 = scalar_select %p1643, %s1640, 31
      %s1645 = smul.addr %s1642, 32
      %s1646 = sadd.s32 %s1644, %s1645
      %s1647 = smul.addr %s1646, 4
      %s1648 = scalar_lea.vmem %s3, %s1647
      %s1649 = smul.u32 4, %s21
      %p1650 = scmp.lt.s32.totalorder %s20, 1
      %s1651 = scalar_select %p1650, %s20, 1
      %p1652 = scmp.lt.s32.totalorder %s1649, 7
      %s1653 = scalar_select %p1652, %s1649, 7
      %s1654 = smul.addr %s1651, 8
      %s1655 = sadd.s32 %s1653, %s1654
      %s1656 = smul.addr %s1655, 8
      %s1657 = scalar_lea.vmem %s4, %s1656
      // Predicated region
      $region33: #{mtan_down_pallas.5} parent=31 // pred_check
        %p1658 = pneg %p118
      $region34: #{mtan_down_pallas.5} parent=31 // pred_check_branch
        %1660 = sbr.rel (%p1658) target = $region36
      $region35: #{mtan_down_pallas.5} parent=31 // pred_region
        %s1661 = smul.u32 16, %s21
      $region36: #{mtan_down_pallas.5} parent=31 // pred_fallthru
        _
      // Predicated region
      $region37: #{mtan_down_pallas.5} parent=31 // pred_check
        %p1662 = pneg %p146
      $region38: #{mtan_down_pallas.5} parent=31 // pred_check_branch
        %1664 = sbr.rel (%p1662) target = $region40
      $region39: #{mtan_down_pallas.5} parent=31 // pred_region
        %s1665 = smul.u32 4, %s21
      $region40: #{mtan_down_pallas.5} parent=31 // pred_fallthru
        _
    $region32: #{mtan_down_pallas.5} parent=5 // pred_fallthru
      _
    %p1666 = scmp.le.s32.totalorder 2, %s11
    // Predicated region
    $region41: #{mtan_down_pallas.5} parent=5 // pred_check
      %p1667 = pneg %p1666
    $region42: #{mtan_down_pallas.5} parent=5 // pred_check_branch
      %1669 = sbr.rel (%p1667) target = $region44
    $region43: #{mtan_down_pallas.5} parent=5 // pred_region
      %s1670 = ssub.s32 %s11, 2
      // Predicated region
      $region45: #{mtan_down_pallas.5} parent=43 // pred_check
        %p1671 = pneg %p124
      $region46: #{mtan_down_pallas.5} parent=43 // pred_check_branch
        %1673 = sbr.rel (%p1671) target = $region48
      $region47: #{mtan_down_pallas.5} parent=43 // pred_region
        %s1674 = smul.u32 16, %s23
        %p1675 = scmp.lt.s32.totalorder %s22, 1
        %s1676 = scalar_select %p1675, %s22, 1
        %p1677 = scmp.lt.s32.totalorder %s1674, 31
        %s1678 = scalar_select %p1677, %s1674, 31
        %s1679 = smul.addr %s1676, 32
        %s1680 = sadd.s32 %s1678, %s1679
        %s1681 = smul.addr %s1680, 4
        %s1682 = scalar_lea.vmem %s3, %s1681
      $region48: #{mtan_down_pallas.5} parent=43 // pred_fallthru
        _
      // Predicated region
      $region49: #{mtan_down_pallas.5} parent=43 // pred_check
        %p1683 = pneg %p152
      $region50: #{mtan_down_pallas.5} parent=43 // pred_check_branch
        %1685 = sbr.rel (%p1683) target = $region52
      $region51: #{mtan_down_pallas.5} parent=43 // pred_region
        %s1686 = smul.u32 4, %s23
        %p1687 = scmp.lt.s32.totalorder %s22, 1
        %s1688 = scalar_select %p1687, %s22, 1
        %p1689 = scmp.lt.s32.totalorder %s1686, 7
        %s1690 = scalar_select %p1689, %s1686, 7
        %s1691 = smul.addr %s1688, 8
        %s1692 = sadd.s32 %s1690, %s1691
        %s1693 = smul.addr %s1692, 8
        %s1694 = scalar_lea.vmem %s4, %s1693
      $region52: #{mtan_down_pallas.5} parent=43 // pred_fallthru
        _
    $region44: #{mtan_down_pallas.5} parent=5 // pred_fallthru
      _
  $region6: #{mtan_down_pallas.5} parent=0 // loop_footer
    %s15 = sadd.s32 1, %s11
  $region7: #{mtan_down_pallas.5} parent=0 // loop_footer_branch
    %10 = sbr.rel target = $region3
  $region8: #{mtan_down_pallas.5} parent=0 // loop_exit
    _

// kernel: mtan_down_pallas.7
$region0: #{mtan_down_pallas.7}
  #allocation0 [shape = 'u32[]', space=smem, size = 0x4, offset = 0x4, fixed_abs, tag = 'smem constant byte address 0x4 - core index']
  #allocation1 [shape = 'u32[72,128]{1,0:T(1,128)}', space=vmem, size = 0x9000, scoped, tag = 'internal scratch']
  #allocation2 [shape = 'f32[184,16]{1,0:T(8,128)}', space=vmem, size = 0x17000, scoped, tag = 'scratch operand']
  %s0 = inlined_call_operand.vmem [shape: bf16[2,2,240,16], index: 0, kind: input, shape index: {}]
  %s1 = inlined_call_operand.vmem [shape: bf16[144,16], index: 1, kind: input, shape index: {}]
  %s2 = inlined_call_operand.vmem [shape: f32[1,16], index: 2, kind: input, shape index: {}]
  %s3 = inlined_call_operand.vmem [shape: f32[2,64,16], index: 3, kind: output, shape index: {}]
  %s4 = sld [smem:[#allocation0]]
  $region45: #{mtan_down_pallas.7} parent=0
    _
  %s6 = ssub.s32 1, %s4
  %s7 = scalar_select 0, %s6, %s4
  loop: start=0, step=1, limit=6
  $region2: #{mtan_down_pallas.7} parent=0 // loop_pre_header
    _
  $region3: #{mtan_down_pallas.7} parent=0 // loop_header
    %s9 = sphi 0, %s13
    %p10 = scmp.ge.s32.totalorder %s9, 6
    %s16 = sphi 0, %s28
    %s17 = sphi 0, %s24
    %s18 = sphi 0, %s16
    %s19 = sphi 0, %s17
    %s20 = sphi 0, %s18
    %s21 = sphi 0, %s19
    %s33 = sphi 0, %s35
    %s36 = sphi 0, %s33
    %s37 = sphi 0, %s36
    %s53 = sphi 0, %s37
    %s57 = sphi 0, %s57
    %s59 = sphi 0, %s57
    %s60 = sphi 0, %s59
    %s74 = sphi 0, %s60
    %s78 = sphi 0, %s78
    %s80 = sphi 0, %s78
    %s81 = sphi 0, %s80
    %s95 = sphi 0, %s81
    %s103 = sphi 0, %s105
    %s106 = sphi 0, %s103
    %s107 = sphi 0, %s106
    %s123 = sphi 0, %s107
  $region4: #{mtan_down_pallas.7} parent=0 // loop_header_branch
    %12 = sbr.rel (%p10) target = $region8
  $region5: #{mtan_down_pallas.7} parent=0 // loop_body
    %s14 = ssub.s32 %s9, 1
    %s15 = ssub.s32 %s9, 2
    %s22 = sadd.s32 1, %s17
    %p23 = scmp.ge.s32.totalorder %s22, 2
    %s24 = scalar_select %p23, 0, %s22
    %s25 = sadd.s32 1, %s16
    %s26 = scalar_select %p23, %s25, %s16
    %p27 = scmp.ge.s32.totalorder %s26, 2
    %s28 = scalar_select %p27, 0, %s26
    %s29 = ssub.s32 %s16, %s28
    %s30 = ssub.s32 %s17, %s24
    %s31 = sor.u32 %s29, %s30
    %p32 = scmp.eq.s32.totalorder %s31, 0
    %s34 = sadd.s32 %s33, 1
    %s35 = scalar_select %p32, %s33, %s34
    %p38 = pneg %p32
    %p39 = scmp.eq.s32.totalorder %s9, 3
    %p40 = por %p38, %p39
    %p41 = scmp.ne.s32.totalorder %s33, %s36
    %p42 = scmp.eq.s32.totalorder %s9, 0
    %p43 = por %p41, %p42
    %p44 = scmp.ne.s32.totalorder %s33, %s36
    %p45 = scmp.eq.s32.totalorder %s14, 3
    %p46 = por %p44, %p45
    %p47 = scmp.ne.s32.totalorder %s36, %s37
    %p48 = scmp.eq.s32.totalorder %s14, 0
    %p49 = por %p47, %p48
    %p50 = scmp.ne.s32.totalorder %s36, %s37
    %p51 = scmp.eq.s32.totalorder %s15, 3
    %p52 = por %p50, %p51
    %p54 = scmp.ne.s32.totalorder %s37, %s53
    %p55 = scmp.eq.s32.totalorder %s15, 0
    %p56 = por %p54, %p55
    %s58 = sadd.s32 %s57, 1
    %p61 = scmp.eq.s32.totalorder %s9, 3
    %p62 = scmp.ne.s32.totalorder %s57, %s59
    %p63 = scmp.eq.s32.totalorder %s9, 0
    %p64 = por %p62, %p63
    %p65 = scmp.ne.s32.totalorder %s57, %s59
    %p66 = scmp.eq.s32.totalorder %s14, 3
    %p67 = por %p65, %p66
    %p68 = scmp.ne.s32.totalorder %s59, %s60
    %p69 = scmp.eq.s32.totalorder %s14, 0
    %p70 = por %p68, %p69
    %p71 = scmp.ne.s32.totalorder %s59, %s60
    %p72 = scmp.eq.s32.totalorder %s15, 3
    %p73 = por %p71, %p72
    %p75 = scmp.ne.s32.totalorder %s60, %s74
    %p76 = scmp.eq.s32.totalorder %s15, 0
    %p77 = por %p75, %p76
    %s79 = sadd.s32 %s78, 1
    %p82 = scmp.eq.s32.totalorder %s9, 3
    %p83 = scmp.ne.s32.totalorder %s78, %s80
    %p84 = scmp.eq.s32.totalorder %s9, 0
    %p85 = por %p83, %p84
    %p86 = scmp.ne.s32.totalorder %s78, %s80
    %p87 = scmp.eq.s32.totalorder %s14, 3
    %p88 = por %p86, %p87
    %p89 = scmp.ne.s32.totalorder %s80, %s81
    %p90 = scmp.eq.s32.totalorder %s14, 0
    %p91 = por %p89, %p90
    %p92 = scmp.ne.s32.totalorder %s80, %s81
    %p93 = scmp.eq.s32.totalorder %s15, 3
    %p94 = por %p92, %p93
    %p96 = scmp.ne.s32.totalorder %s81, %s95
    %p97 = scmp.eq.s32.totalorder %s15, 0
    %p98 = por %p96, %p97
    %s99 = ssub.s32 %s16, %s28
    %s100 = ssub.s32 %s17, %s24
    %s101 = sor.u32 %s99, %s100
    %p102 = scmp.eq.s32.totalorder %s101, 0
    %s104 = sadd.s32 %s103, 1
    %s105 = scalar_select %p102, %s103, %s104
    %p108 = pneg %p102
    %p109 = scmp.eq.s32.totalorder %s9, 3
    %p110 = por %p108, %p109
    %p111 = scmp.ne.s32.totalorder %s103, %s106
    %p112 = scmp.eq.s32.totalorder %s9, 0
    %p113 = por %p111, %p112
    %p114 = scmp.ne.s32.totalorder %s103, %s106
    %p115 = scmp.eq.s32.totalorder %s14, 3
    %p116 = por %p114, %p115
    %p117 = scmp.ne.s32.totalorder %s106, %s107
    %p118 = scmp.eq.s32.totalorder %s14, 0
    %p119 = por %p117, %p118
    %p120 = scmp.ne.s32.totalorder %s106, %s107
    %p121 = scmp.eq.s32.totalorder %s15, 3
    %p122 = por %p120, %p121
    %p124 = scmp.ne.s32.totalorder %s107, %s123
    %p125 = scmp.eq.s32.totalorder %s15, 0
    %p126 = por %p124, %p125
    %p127 = scmp.le.s32.totalorder 1, %s9
    %p128 = scmp.lt.s32.totalorder %s9, 5
    %p129 = pnand %p127, %p128
    %p130 = pneg %p129
    // Predicated region
    $region9: #{mtan_down_pallas.7} parent=5 // pred_check
      _
    $region10: #{mtan_down_pallas.7} parent=5 // pred_check_branch
      %132 = sbr.rel (%p129) target = $region12
    $region11: #{mtan_down_pallas.7} parent=5 // pred_region
      %s133 = ssub.s32 %s9, 1
      // Predicated region
      $region13: #{mtan_down_pallas.7} parent=11 // pred_check
        %p134 = pneg %p70
      $region14: #{mtan_down_pallas.7} parent=11 // pred_check_branch
        %136 = sbr.rel (%p134) target = $region16
      $region15: #{mtan_down_pallas.7} parent=11 // pred_region
        _
      $region16: #{mtan_down_pallas.7} parent=11 // pred_fallthru
        _
      // Predicated region
      $region17: #{mtan_down_pallas.7} parent=11 // pred_check
        %p137 = pneg %p91
      $region18: #{mtan_down_pallas.7} parent=11 // pred_check_branch
        %139 = sbr.rel (%p137) target = $region20
      $region19: #{mtan_down_pallas.7} parent=11 // pred_region
        _
      $region20: #{mtan_down_pallas.7} parent=11 // pred_fallthru
        _
    $region12: #{mtan_down_pallas.7} parent=5 // pred_fallthru
      _
    %p140 = scmp.lt.s32.totalorder %s9, 4
    // Predicated region
    $region21: #{mtan_down_pallas.7} parent=5 // pred_check
      %p141 = pneg %p140
    $region22: #{mtan_down_pallas.7} parent=5 // pred_check_branch
      %143 = sbr.rel (%p141) target = $region24
    $region23: #{mtan_down_pallas.7} parent=5 // pred_region
      // Predicated region
      $region25: #{mtan_down_pallas.7} parent=23 // pred_check
        %p144 = pneg %p43
      $region26: #{mtan_down_pallas.7} parent=23 // pred_check_branch
        %146 = sbr.rel (%p144) target = $region28
      $region27: #{mtan_down_pallas.7} parent=23 // pred_region
        %p147 = scmp.lt.s32.totalorder %s16, 1
        %s148 = scalar_select %p147, %s16, 1
        %p149 = scmp.lt.s32.totalorder %s17, 1
        %s150 = scalar_select %p149, %s17, 1
        %s151 = smul.addr %s150, 30
        %s152 = smul.addr %s148, 60
        %s153 = sadd.s32 %s151, %s152
        %s154 = smul.addr %s153, 4
        %s155 = scalar_lea.vmem %s0, %s154
      $region28: #{mtan_down_pallas.7} parent=23 // pred_fallthru
        _
    $region24: #{mtan_down_pallas.7} parent=5 // pred_fallthru
      _
    %p156 = scmp.le.s32.totalorder 1, %s9
    %p157 = scmp.lt.s32.totalorder %s9, 5
    %p158 = pnand %p156, %p157
    %p159 = pneg %p158
    // Predicated region
    $region29: #{mtan_down_pallas.7} parent=5 // pred_check
      _
    $region30: #{mtan_down_pallas.7} parent=5 // pred_check_branch
      %161 = sbr.rel (%p158) target = $region32
    $region31: #{mtan_down_pallas.7} parent=5 // pred_region
      %s162 = ssub.s32 %s9, 1
      %p163 = scmp.lt.s32.totalorder %s18, 1
      %s164 = scalar_select %p163, %s18, 1
      %p165 = scmp.lt.s32.totalorder %s19, 1
      %s166 = scalar_select %p165, %s19, 1
      %s167 = smul.addr %s166, 30
      %s168 = smul.addr %s164, 60
      %s169 = sadd.s32 %s167, %s168
      %s170 = smul.addr %s169, 4
      %s171 = scalar_lea.vmem %s0, %s170
      %p172 = pneg %p49
      %p173 = pneg %p46
      %p174 = pneg %p70
      %p175 = pneg %p67
      %p176 = pneg %p91
      %p177 = pneg %p88
      %p178 = pneg %p119
      %p179 = pneg %p116
      %s180 = smul.u32 4, %s19
      %p181 = scmp.lt.s32.totalorder %s18, 1
      %s182 = scalar_select %p181, %s18, 1
      %p183 = scmp.lt.s32.totalorder %s180, 7
      %s184 = scalar_select %p183, %s180, 7
      %s185 = smul.addr %s182, 8
      %s186 = sadd.s32 %s184, %s185
      %s187 = smul.addr %s186, 8
      %s188 = scalar_lea.vmem %s3, %s187
      %p189 = scmp.lt.s32.totalorder %s18, 1
      %s190 = scalar_select %p189, %s18, 1
      %p191 = scmp.lt.s32.totalorder %s19, 1
      %s192 = scalar_select %p191, %s19, 1
      %s193 = smul.addr %s192, 30
      %s194 = smul.addr %s190, 60
      %s195 = sadd.s32 %s193, %s194
      %s196 = smul.addr %s195, 4
      %s197 = scalar_lea.vmem %s0, %s196
      %s198 = smul.u32 4, %s19
      %p199 = scmp.lt.s32.totalorder %s18, 1
      %s200 = scalar_select %p199, %s18, 1
      %p201 = scmp.lt.s32.totalorder %s198, 7
      %s202 = scalar_select %p201, %s198, 7
      %s203 = smul.addr %s200, 8
      %s204 = sadd.s32 %s202, %s203
      %s205 = smul.addr %s204, 8
      %s206 = scalar_lea.vmem %s3, %s205
      %s207 = smul.u32 4, %s19
      %v209 = vld [vmem:[%s197] sm:$0xf]
      %v210 = vld [vmem:[%s197 + $0x4] sm:$0xf]
      %v211 = vld [vmem:[%s197 + $0x8] sm:$0xf]
      %v212 = vld [vmem:[%s197 + $0xc] sm:$0xf]
      %v213 = vld [vmem:[%s197 + $0x10] sm:$0xf]
      %v214 = vld [vmem:[%s197 + $0x14] sm:$0xf]
      %v215 = vld [vmem:[%s197 + $0x18] sm:$0xf]
      %v216 = vld [vmem:[%s197 + $0x1c] sm:$0xf]
      %v217 = vld [vmem:[%s197 + $0x20] sm:$0xf]
      %v218 = vld [vmem:[%s197 + $0x24] sm:$0xf]
      %v219 = vld [vmem:[%s197 + $0x28] sm:$0xf]
      %v220 = vld [vmem:[%s197 + $0x2c] sm:$0xf]
      %v221 = vld [vmem:[%s197 + $0x30] sm:$0xf]
      %v222 = vld [vmem:[%s197 + $0x34] sm:$0xf]
      %v223 = vld [vmem:[%s197 + $0x38] sm:$0xf]
      %v224 = vld [vmem:[%s197 + $0x3c] sm:$0xf]
      %v225 = vld [vmem:[%s197 + $0x40] sm:$0xf]
      %v226 = vld [vmem:[%s197 + $0x44] sm:$0xf]
      %v227 = vld [vmem:[%s197 + $0x48] sm:$0xf]
      %v228 = vld [vmem:[%s197 + $0x4c] sm:$0xf]
      %v229 = vld [vmem:[%s197 + $0x50] sm:$0xf]
      %v230 = vld [vmem:[%s197 + $0x54] sm:$0xf]
      %v231 = vld [vmem:[%s197 + $0x58] sm:$0xf]
      %v232 = vld [vmem:[%s197 + $0x5c] sm:$0x1]
      %v233 = vld [vmem:[%s197] sm:$0xe]
      %v257 = vunpack.c.l.b16 %v209
      %v258 = vunpack.c.l.b16 %v210
      %v259 = vunpack.c.l.b16 %v211
      %v260 = vunpack.c.l.b16 %v212
      %v261 = vunpack.c.l.b16 %v213
      %v262 = vunpack.c.l.b16 %v214
      %v263 = vunpack.c.l.b16 %v215
      %v264 = vunpack.c.l.b16 %v216
      %v265 = vunpack.c.l.b16 %v217
      %v266 = vunpack.c.l.b16 %v218
      %v267 = vunpack.c.l.b16 %v219
      %v268 = vunpack.c.l.b16 %v220
      %v269 = vunpack.c.l.b16 %v221
      %v270 = vunpack.c.l.b16 %v222
      %v271 = vunpack.c.l.b16 %v223
      %v272 = vunpack.c.l.b16 %v224
      %v273 = vunpack.c.l.b16 %v225
      %v274 = vunpack.c.l.b16 %v226
      %v275 = vunpack.c.l.b16 %v227
      %v276 = vunpack.c.l.b16 %v228
      %v277 = vunpack.c.l.b16 %v229
      %v278 = vunpack.c.l.b16 %v230
      %v279 = vunpack.c.l.b16 %v231
      %v280 = vpack.c.b16 %v258, %v257
      %v281 = vpack.c.b16 %v260, %v259
      %v282 = vpack.c.b16 %v262, %v261
      %v283 = vpack.c.b16 %v264, %v263
      %v284 = vpack.c.b16 %v266, %v265
      %v285 = vpack.c.b16 %v268, %v267
      %v286 = vpack.c.b16 %v270, %v269
      %v287 = vpack.c.b16 %v272, %v271
      %v288 = vpack.c.b16 %v274, %v273
      %v289 = vpack.c.b16 %v276, %v275
      %v290 = vpack.c.b16 %v278, %v277
      %v291 = vpack.c.b16 %v279, %v279
      %v293 = vunpack.c.l.b16 %v232
      %v294 = vpack.c.b16 %v293, %v279
      %vm295 = vsmask.f32 7424
      %v297 = vshrl.u32 %v280, 16
      %v299 = vshll.u32 %v280, 16
      %v301 = vrot.slane %v299, 1
      %v302 = vor.u32 %v297, %v301
      %v304 = vshll.u32 %v281, 16
      %v306 = vrot.slane %v304, 1
      %v307 = vsel %vm295, %v302, %v306
      %v308 = vshrl.u32 %v281, 16
      %v310 = vor.u32 %v308, %v306
      %v312 = vshll.u32 %v282, 16
      %v314 = vrot.slane %v312, 1
      %v315 = vsel %vm295, %v310, %v314
      %v316 = vshrl.u32 %v282, 16
      %v318 = vor.u32 %v316, %v314
      %v320 = vshll.u32 %v283, 16
      %v322 = vrot.slane %v320, 1
      %v323 = vsel %vm295, %v318, %v322
      %v324 = vshrl.u32 %v283, 16
      %v326 = vor.u32 %v324, %v322
      %v328 = vshll.u32 %v284, 16
      %v330 = vrot.slane %v328, 1
      %v331 = vsel %vm295, %v326, %v330
      %v332 = vshrl.u32 %v284, 16
      %v334 = vor.u32 %v332, %v330
      %v336 = vshll.u32 %v285, 16
      %v338 = vrot.slane %v336, 1
      %v339 = vsel %vm295, %v334, %v338
      %v340 = vshrl.u32 %v285, 16
      %v342 = vor.u32 %v340, %v338
      %v344 = vshll.u32 %v286, 16
      %v346 = vrot.slane %v344, 1
      %v347 = vsel %vm295, %v342, %v346
      %v348 = vshrl.u32 %v286, 16
      %v350 = vor.u32 %v348, %v346
      %v352 = vshll.u32 %v287, 16
      %v354 = vrot.slane %v352, 1
      %v355 = vsel %vm295, %v350, %v354
      %v356 = vshrl.u32 %v287, 16
      %v358 = vor.u32 %v356, %v354
      %v360 = vshll.u32 %v288, 16
      %v362 = vrot.slane %v360, 1
      %v363 = vsel %vm295, %v358, %v362
      %v364 = vshrl.u32 %v288, 16
      %v366 = vor.u32 %v364, %v362
      %v368 = vshll.u32 %v289, 16
      %v370 = vrot.slane %v368, 1
      %v371 = vsel %vm295, %v366, %v370
      %v372 = vshrl.u32 %v289, 16
      %v374 = vor.u32 %v372, %v370
      %v376 = vshll.u32 %v290, 16
      %v378 = vrot.slane %v376, 1
      %v379 = vsel %vm295, %v374, %v378
      %v380 = vshrl.u32 %v290, 16
      %v382 = vor.u32 %v380, %v378
      %v384 = vshll.u32 %v294, 16
      %v386 = vrot.slane %v384, 1
      %v387 = vsel %vm295, %v382, %v386
      %v388 = vshrl.u32 %v294, 16
      %v390 = vor.u32 %v388, %v386
      %391 = vrot.lane.b32.xlu0 %v307, 16
      %v392 = vpop.permute.xlu0 %391
      %393 = vrot.lane.b32.xlu0 %v315, 16
      %v394 = vpop.permute.xlu0 %393
      %395 = vrot.lane.b32.xlu0 %v323, 16
      %v396 = vpop.permute.xlu0 %395
      %397 = vrot.lane.b32.xlu0 %v331, 16
      %v398 = vpop.permute.xlu0 %397
      %399 = vrot.lane.b32.xlu0 %v339, 16
      %v400 = vpop.permute.xlu0 %399
      %401 = vrot.lane.b32.xlu0 %v347, 16
      %v402 = vpop.permute.xlu0 %401
      %403 = vrot.lane.b32.xlu0 %v355, 16
      %v404 = vpop.permute.xlu0 %403
      %405 = vrot.lane.b32.xlu0 %v363, 16
      %v406 = vpop.permute.xlu0 %405
      %407 = vrot.lane.b32.xlu0 %v371, 16
      %v408 = vpop.permute.xlu0 %407
      %409 = vrot.lane.b32.xlu0 %v379, 16
      %v410 = vpop.permute.xlu0 %409
      %411 = vrot.lane.b32.xlu0 %v387, 16
      %v412 = vpop.permute.xlu0 %411
      %413 = vrot.lane.b32.xlu0 %v390, 16
      %v414 = vpop.permute.xlu0 %413
      %v416 = vunpack.c.l.b16 %v233
      %v417 = vpack.c.b16 %v258, %v416
      %vm418 = vcmask 1046528
      %v419 = vrot.slane %v417, 1
      %v420 = vrot.slane %v281, 1
      %v421 = vsel %vm418, %v419, %v420
      %v422 = vrot.slane %v282, 1
      %v423 = vsel %vm418, %v420, %v422
      %v424 = vrot.slane %v283, 1
      %v425 = vsel %vm418, %v422, %v424
      %v426 = vrot.slane %v284, 1
      %v427 = vsel %vm418, %v424, %v426
      %v428 = vrot.slane %v285, 1
      %v429 = vsel %vm418, %v426, %v428
      %v430 = vrot.slane %v286, 1
      %v431 = vsel %vm418, %v428, %v430
      %v432 = vrot.slane %v287, 1
      %v433 = vsel %vm418, %v430, %v432
      %v434 = vrot.slane %v288, 1
      %v435 = vsel %vm418, %v432, %v434
      %v436 = vrot.slane %v289, 1
      %v437 = vsel %vm418, %v434, %v436
      %v438 = vrot.slane %v290, 1
      %v439 = vsel %vm418, %v436, %v438
      %v440 = vrot.slane %v294, 1
      %v441 = vsel %vm418, %v438, %v440
      %442 = vrot.lane.b32.xlu0 %v421, 32
      %v443 = vpop.permute.xlu0 %442
      %444 = vrot.lane.b32.xlu0 %v423, 32
      %v445 = vpop.permute.xlu0 %444
      %446 = vrot.lane.b32.xlu0 %v425, 32
      %v447 = vpop.permute.xlu0 %446
      %448 = vrot.lane.b32.xlu0 %v427, 32
      %v449 = vpop.permute.xlu0 %448
      %450 = vrot.lane.b32.xlu0 %v429, 32
      %v451 = vpop.permute.xlu0 %450
      %452 = vrot.lane.b32.xlu0 %v431, 32
      %v453 = vpop.permute.xlu0 %452
      %454 = vrot.lane.b32.xlu0 %v433, 32
      %v455 = vpop.permute.xlu0 %454
      %456 = vrot.lane.b32.xlu0 %v435, 32
      %v457 = vpop.permute.xlu0 %456
      %458 = vrot.lane.b32.xlu0 %v437, 32
      %v459 = vpop.permute.xlu0 %458
      %460 = vrot.lane.b32.xlu0 %v439, 32
      %v461 = vpop.permute.xlu0 %460
      %462 = vrot.lane.b32.xlu0 %v441, 32
      %v463 = vpop.permute.xlu0 %462
      %464 = vrot.lane.b32.xlu0 %v440, 32
      %v465 = vpop.permute.xlu0 %464
      %vm466 = vcmask 130048
      %v468 = vsel %vm466, %v280, %v392
      %v470 = vsel %vm466, %v281, %v394
      %v472 = vsel %vm466, %v282, %v396
      %v474 = vsel %vm466, %v283, %v398
      %v476 = vsel %vm466, %v284, %v400
      %v478 = vsel %vm466, %v285, %v402
      %v480 = vsel %vm466, %v286, %v404
      %v482 = vsel %vm466, %v287, %v406
      %v484 = vsel %vm466, %v288, %v408
      %v486 = vsel %vm466, %v289, %v410
      %v488 = vsel %vm466, %v290, %v412
      %v491 = vsel %vm466, %v291, %v414
      %vm492 = vcmask 261120
      %v494 = vsel %vm492, %v468, %v443
      %v496 = vsel %vm492, %v470, %v445
      %v498 = vsel %vm492, %v472, %v447
      %v500 = vsel %vm492, %v474, %v449
      %v502 = vsel %vm492, %v476, %v451
      %v504 = vsel %vm492, %v478, %v453
      %v506 = vsel %vm492, %v480, %v455
      %v508 = vsel %vm492, %v482, %v457
      %v510 = vsel %vm492, %v484, %v459
      %v512 = vsel %vm492, %v486, %v461
      %v514 = vsel %vm492, %v488, %v463
      %v516 = vsel %vm492, %v491, %v465
      %v517 = vld [vmem:[%s1] sm:$0xf]
      %v518 = vld [vmem:[%s1 + $0x4] sm:$0xf]
      %v519 = vld [vmem:[%s1 + $0x8] sm:$0xf]
      %v520 = vld [vmem:[%s1 + $0xc] sm:$0xf]
      %v521 = vld [vmem:[%s1 + $0x10] sm:$0xf]
      %v522 = vld [vmem:[%s1 + $0x14] sm:$0xf]
      %v523 = vld [vmem:[%s197 + $0x5c] sm:$0xf]
      %v524 = vld [vmem:[%s197 + $0x60] sm:$0xf]
      %v525 = vld [vmem:[%s197 + $0x64] sm:$0xf]
      %v526 = vld [vmem:[%s197 + $0x68] sm:$0x1]
      %v527 = vld [vmem:[%s197 + $0xc] sm:$0xe]
      %v531 = vunpack.c.l.b16 %v523
      %v532 = vunpack.c.l.b16 %v524
      %v533 = vunpack.c.l.b16 %v525
      %v534 = vpack.c.b16 %v261, %v260
      %v535 = vpack.c.b16 %v263, %v262
      %v536 = vpack.c.b16 %v265, %v264
      %v537 = vpack.c.b16 %v267, %v266
      %v538 = vpack.c.b16 %v269, %v268
      %v539 = vpack.c.b16 %v271, %v270
      %v540 = vpack.c.b16 %v273, %v272
      %v541 = vpack.c.b16 %v275, %v274
      %v542 = vpack.c.b16 %v277, %v276
      %v543 = vpack.c.b16 %v279, %v278
      %v544 = vpack.c.b16 %v532, %v531
      %v545 = vpack.c.b16 %v533, %v533
      %v547 = vunpack.c.l.b16 %v526
      %v548 = vpack.c.b16 %v547, %v533
      %v550 = vshrl.u32 %v534, 16
      %v552 = vshll.u32 %v534, 16
      %v554 = vrot.slane %v552, 1
      %v555 = vor.u32 %v550, %v554
      %v557 = vshll.u32 %v535, 16
      %v559 = vrot.slane %v557, 1
      %v560 = vsel %vm295, %v555, %v559
      %v561 = vshrl.u32 %v535, 16
      %v563 = vor.u32 %v561, %v559
      %v565 = vshll.u32 %v536, 16
      %v567 = vrot.slane %v565, 1
      %v568 = vsel %vm295, %v563, %v567
      %v569 = vshrl.u32 %v536, 16
      %v571 = vor.u32 %v569, %v567
      %v573 = vshll.u32 %v537, 16
      %v575 = vrot.slane %v573, 1
      %v576 = vsel %vm295, %v571, %v575
      %v577 = vshrl.u32 %v537, 16
      %v579 = vor.u32 %v577, %v575
      %v581 = vshll.u32 %v538, 16
      %v583 = vrot.slane %v581, 1
      %v584 = vsel %vm295, %v579, %v583
      %v585 = vshrl.u32 %v538, 16
      %v587 = vor.u32 %v585, %v583
      %v589 = vshll.u32 %v539, 16
      %v591 = vrot.slane %v589, 1
      %v592 = vsel %vm295, %v587, %v591
      %v593 = vshrl.u32 %v539, 16
      %v595 = vor.u32 %v593, %v591
      %v597 = vshll.u32 %v540, 16
      %v599 = vrot.slane %v597, 1
      %v600 = vsel %vm295, %v595, %v599
      %v601 = vshrl.u32 %v540, 16
      %v603 = vor.u32 %v601, %v599
      %v605 = vshll.u32 %v541, 16
      %v607 = vrot.slane %v605, 1
      %v608 = vsel %vm295, %v603, %v607
      %v609 = vshrl.u32 %v541, 16
      %v611 = vor.u32 %v609, %v607
      %v613 = vshll.u32 %v542, 16
      %v615 = vrot.slane %v613, 1
      %v616 = vsel %vm295, %v611, %v615
      %v617 = vshrl.u32 %v542, 16
      %v619 = vor.u32 %v617, %v615
      %v621 = vshll.u32 %v543, 16
      %v623 = vrot.slane %v621, 1
      %v624 = vsel %vm295, %v619, %v623
      %v625 = vshrl.u32 %v543, 16
      %v627 = vor.u32 %v625, %v623
      %v629 = vshll.u32 %v544, 16
      %v631 = vrot.slane %v629, 1
      %v632 = vsel %vm295, %v627, %v631
      %v633 = vshrl.u32 %v544, 16
      %v635 = vor.u32 %v633, %v631
      %v637 = vshll.u32 %v548, 16
      %v639 = vrot.slane %v637, 1
      %v640 = vsel %vm295, %v635, %v639
      %v641 = vshrl.u32 %v548, 16
      %v643 = vor.u32 %v641, %v639
      %644 = vrot.lane.b32.xlu0 %v560, 16
      %v645 = vpop.permute.xlu0 %644
      %646 = vrot.lane.b32.xlu0 %v568, 16
      %v647 = vpop.permute.xlu0 %646
      %648 = vrot.lane.b32.xlu0 %v576, 16
      %v649 = vpop.permute.xlu0 %648
      %650 = vrot.lane.b32.xlu0 %v584, 16
      %v651 = vpop.permute.xlu0 %650
      %652 = vrot.lane.b32.xlu0 %v592, 16
      %v653 = vpop.permute.xlu0 %652
      %654 = vrot.lane.b32.xlu0 %v600, 16
      %v655 = vpop.permute.xlu0 %654
      %656 = vrot.lane.b32.xlu0 %v608, 16
      %v657 = vpop.permute.xlu0 %656
      %658 = vrot.lane.b32.xlu0 %v616, 16
      %v659 = vpop.permute.xlu0 %658
      %660 = vrot.lane.b32.xlu0 %v624, 16
      %v661 = vpop.permute.xlu0 %660
      %662 = vrot.lane.b32.xlu0 %v632, 16
      %v663 = vpop.permute.xlu0 %662
      %664 = vrot.lane.b32.xlu0 %v640, 16
      %v665 = vpop.permute.xlu0 %664
      %666 = vrot.lane.b32.xlu0 %v643, 16
      %v667 = vpop.permute.xlu0 %666
      %v669 = vunpack.c.l.b16 %v527
      %v670 = vpack.c.b16 %v261, %v669
      %v671 = vrot.slane %v670, 1
      %v672 = vrot.slane %v535, 1
      %v673 = vsel %vm418, %v671, %v672
      %v674 = vrot.slane %v536, 1
      %v675 = vsel %vm418, %v672, %v674
      %v676 = vrot.slane %v537, 1
      %v677 = vsel %vm418, %v674, %v676
      %v678 = vrot.slane %v538, 1
      %v679 = vsel %vm418, %v676, %v678
      %v680 = vrot.slane %v539, 1
      %v681 = vsel %vm418, %v678, %v680
      %v682 = vrot.slane %v540, 1
      %v683 = vsel %vm418, %v680, %v682
      %v684 = vrot.slane %v541, 1
      %v685 = vsel %vm418, %v682, %v684
      %v686 = vrot.slane %v542, 1
      %v687 = vsel %vm418, %v684, %v686
      %v688 = vrot.slane %v543, 1
      %v689 = vsel %vm418, %v686, %v688
      %v690 = vrot.slane %v544, 1
      %v691 = vsel %vm418, %v688, %v690
      %v692 = vrot.slane %v548, 1
      %v693 = vsel %vm418, %v690, %v692
      %694 = vrot.lane.b32.xlu0 %v673, 32
      %v695 = vpop.permute.xlu0 %694
      %696 = vrot.lane.b32.xlu0 %v675, 32
      %v697 = vpop.permute.xlu0 %696
      %698 = vrot.lane.b32.xlu0 %v677, 32
      %v699 = vpop.permute.xlu0 %698
      %700 = vrot.lane.b32.xlu0 %v679, 32
      %v701 = vpop.permute.xlu0 %700
      %702 = vrot.lane.b32.xlu0 %v681, 32
      %v703 = vpop.permute.xlu0 %702
      %704 = vrot.lane.b32.xlu0 %v683, 32
      %v705 = vpop.permute.xlu0 %704
      %706 = vrot.lane.b32.xlu0 %v685, 32
      %v707 = vpop.permute.xlu0 %706
      %708 = vrot.lane.b32.xlu0 %v687, 32
      %v709 = vpop.permute.xlu0 %708
      %710 = vrot.lane.b32.xlu0 %v689, 32
      %v711 = vpop.permute.xlu0 %710
      %712 = vrot.lane.b32.xlu0 %v691, 32
      %v713 = vpop.permute.xlu0 %712
      %714 = vrot.lane.b32.xlu0 %v693, 32
      %v715 = vpop.permute.xlu0 %714
      %716 = vrot.lane.b32.xlu0 %v692, 32
      %v717 = vpop.permute.xlu0 %716
      %v719 = vsel %vm466, %v534, %v645
      %v721 = vsel %vm466, %v535, %v647
      %v723 = vsel %vm466, %v536, %v649
      %v725 = vsel %vm466, %v537, %v651
      %v727 = vsel %vm466, %v538, %v653
      %v729 = vsel %vm466, %v539, %v655
      %v731 = vsel %vm466, %v540, %v657
      %v733 = vsel %vm466, %v541, %v659
      %v735 = vsel %vm466, %v542, %v661
      %v737 = vsel %vm466, %v543, %v663
      %v739 = vsel %vm466, %v544, %v665
      %v742 = vsel %vm466, %v545, %v667
      %v744 = vsel %vm492, %v719, %v695
      %v746 = vsel %vm492, %v721, %v697
      %v748 = vsel %vm492, %v723, %v699
      %v750 = vsel %vm492, %v725, %v701
      %v752 = vsel %vm492, %v727, %v703
      %v754 = vsel %vm492, %v729, %v705
      %v756 = vsel %vm492, %v731, %v707
      %v758 = vsel %vm492, %v733, %v709
      %v760 = vsel %vm492, %v735, %v711
      %v762 = vsel %vm492, %v737, %v713
      %v764 = vsel %vm492, %v739, %v715
      %v766 = vsel %vm492, %v742, %v717
      %v767 = vld [vmem:[%s1 + $0x18] sm:$0xf]
      %v768 = vld [vmem:[%s1 + $0x1c] sm:$0xf]
      %v769 = vld [vmem:[%s1 + $0x20] sm:$0xf]
      %v770 = vld [vmem:[%s1 + $0x24] sm:$0xf]
      %v771 = vld [vmem:[%s1 + $0x28] sm:$0xf]
      %v772 = vld [vmem:[%s1 + $0x2c] sm:$0xf]
      %v779 = vunpack.c.l.b16 %v767
      %v780 = vunpack.c.l.b16 %v768
      %v781 = vunpack.c.l.b16 %v769
      %v782 = vunpack.c.l.b16 %v770
      %v783 = vunpack.c.l.b16 %v771
      %v784 = vunpack.c.l.b16 %v772
      %v785 = vpack.c.b16 %v780, %v779
      %v786 = vpack.c.b16 %v782, %v781
      %v787 = vpack.c.b16 %v784, %v783
      %vm791 = vcmask 392192
      %v792 = vsel %vm791, %v744, 0
      %v794 = vsel %vm791, %v746, 0
      %v796 = vsel %vm791, %v748, 0
      %v798 = vsel %vm791, %v750, 0
      %v800 = vsel %vm791, %v752, 0
      %v802 = vsel %vm791, %v754, 0
      %v804 = vsel %vm791, %v756, 0
      %v806 = vsel %vm791, %v758, 0
      %v808 = vsel %vm791, %v760, 0
      %v810 = vsel %vm791, %v762, 0
      %v812 = vsel %vm791, %v764, 0
      %v814 = vsel %vm791, %v766, 0
      %816 = vmatpush.bf16.msra.mxu0 0
      %817 = vmatpush.bf16.msra.mxu0 0
      %818 = vmatpush.bf16.msra.mxu0 0
      %819 = vmatpush.bf16.msra.mxu0 0
      %820 = vmatpush.bf16.msra.mxu0 0
      %821 = vmatpush.bf16.msra.mxu0 %v787
      %822 = vmatpush.bf16.msra.mxu0 %v786
      %823 = vmatpush.bf16.msra.mxu0 %v785
      %824 = vmatmul.bf16.gmra.mxu0 %v792
      %v825 = vpop.f32.mrf.mxu0
      %v826 = vadd.f32 0.0, %v825
      %v827 = vpop.f32.mrf.mxu0
      %v828 = vadd.f32 0.0, %v827
      %829 = vmatmul.bf16.gmra.mxu0 %v794
      %v830 = vpop.f32.mrf.mxu0
      %v831 = vadd.f32 0.0, %v830
      %v832 = vpop.f32.mrf.mxu0
      %v833 = vadd.f32 0.0, %v832
      %834 = vmatmul.bf16.gmra.mxu0 %v796
      %v835 = vpop.f32.mrf.mxu0
      %v836 = vadd.f32 0.0, %v835
      %v837 = vpop.f32.mrf.mxu0
      %v838 = vadd.f32 0.0, %v837
      %839 = vmatmul.bf16.gmra.mxu0 %v798
      %v840 = vpop.f32.mrf.mxu0
      %v841 = vadd.f32 0.0, %v840
      %v842 = vpop.f32.mrf.mxu0
      %v843 = vadd.f32 0.0, %v842
      %844 = vmatmul.bf16.gmra.mxu0 %v800
      %v845 = vpop.f32.mrf.mxu0
      %v846 = vadd.f32 0.0, %v845
      %v847 = vpop.f32.mrf.mxu0
      %v848 = vadd.f32 0.0, %v847
      %849 = vmatmul.bf16.gmra.mxu0 %v802
      %v850 = vpop.f32.mrf.mxu0
      %v851 = vadd.f32 0.0, %v850
      %v852 = vpop.f32.mrf.mxu0
      %v853 = vadd.f32 0.0, %v852
      %854 = vmatmul.bf16.gmra.mxu0 %v804
      %v855 = vpop.f32.mrf.mxu0
      %v856 = vadd.f32 0.0, %v855
      %v857 = vpop.f32.mrf.mxu0
      %v858 = vadd.f32 0.0, %v857
      %859 = vmatmul.bf16.gmra.mxu0 %v806
      %v860 = vpop.f32.mrf.mxu0
      %v861 = vadd.f32 0.0, %v860
      %v862 = vpop.f32.mrf.mxu0
      %v863 = vadd.f32 0.0, %v862
      %864 = vmatmul.bf16.gmra.mxu0 %v808
      %v865 = vpop.f32.mrf.mxu0
      %v866 = vadd.f32 0.0, %v865
      %v867 = vpop.f32.mrf.mxu0
      %v868 = vadd.f32 0.0, %v867
      %869 = vmatmul.bf16.gmra.mxu0 %v810
      %v870 = vpop.f32.mrf.mxu0
      %v871 = vadd.f32 0.0, %v870
      %v872 = vpop.f32.mrf.mxu0
      %v873 = vadd.f32 0.0, %v872
      %874 = vmatmul.bf16.gmra.mxu0 %v812
      %v875 = vpop.f32.mrf.mxu0
      %v876 = vadd.f32 0.0, %v875
      %v877 = vpop.f32.mrf.mxu0
      %v878 = vadd.f32 0.0, %v877
      %879 = vmatmul.bf16.gmra.mxu0 %v814
      %v880 = vpop.f32.mrf.mxu0
      %v881 = vadd.f32 0.0, %v880
      %v882 = vpop.f32.mrf.mxu0
      %883 = vdwg.mxu0
      %v890 = vunpack.c.l.b16 %v517
      %v891 = vunpack.c.l.b16 %v518
      %v892 = vunpack.c.l.b16 %v519
      %v893 = vunpack.c.l.b16 %v520
      %v894 = vunpack.c.l.b16 %v521
      %v895 = vunpack.c.l.b16 %v522
      %v896 = vpack.c.b16 %v891, %v890
      %v897 = vpack.c.b16 %v893, %v892
      %v898 = vpack.c.b16 %v895, %v894
      %v902 = vsel %vm791, %v494, 0
      %v904 = vsel %vm791, %v496, 0
      %v906 = vsel %vm791, %v498, 0
      %v908 = vsel %vm791, %v500, 0
      %v910 = vsel %vm791, %v502, 0
      %v912 = vsel %vm791, %v504, 0
      %v914 = vsel %vm791, %v506, 0
      %v916 = vsel %vm791, %v508, 0
      %v918 = vsel %vm791, %v510, 0
      %v920 = vsel %vm791, %v512, 0
      %v922 = vsel %vm791, %v514, 0
      %v924 = vsel %vm791, %v516, 0
      %926 = vmatpush.bf16.msra.mxu0 0
      %927 = vmatpush.bf16.msra.mxu0 0
      %928 = vmatpush.bf16.msra.mxu0 0
      %929 = vmatpush.bf16.msra.mxu0 0
      %930 = vmatpush.bf16.msra.mxu0 0
      %931 = vmatpush.bf16.msra.mxu0 %v898
      %932 = vmatpush.bf16.msra.mxu0 %v897
      %933 = vmatpush.bf16.msra.mxu0 %v896
      %934 = vmatmul.bf16.gmra.mxu0 %v902
      %v935 = vpop.f32.mrf.mxu0
      %v936 = vadd.f32 %v826, %v935
      %v937 = vpop.f32.mrf.mxu0
      %v938 = vadd.f32 %v828, %v937
      %939 = vmatmul.bf16.gmra.mxu0 %v904
      %v940 = vpop.f32.mrf.mxu0
      %v941 = vadd.f32 %v831, %v940
      %v942 = vpop.f32.mrf.mxu0
      %v943 = vadd.f32 %v833, %v942
      %944 = vmatmul.bf16.gmra.mxu0 %v906
      %v945 = vpop.f32.mrf.mxu0
      %v946 = vadd.f32 %v836, %v945
      %v947 = vpop.f32.mrf.mxu0
      %v948 = vadd.f32 %v838, %v947
      %949 = vmatmul.bf16.gmra.mxu0 %v908
      %v950 = vpop.f32.mrf.mxu0
      %v951 = vadd.f32 %v841, %v950
      %v952 = vpop.f32.mrf.mxu0
      %v953 = vadd.f32 %v843, %v952
      %954 = vmatmul.bf16.gmra.mxu0 %v910
      %v955 = vpop.f32.mrf.mxu0
      %v956 = vadd.f32 %v846, %v955
      %v957 = vpop.f32.mrf.mxu0
      %v958 = vadd.f32 %v848, %v957
      %959 = vmatmul.bf16.gmra.mxu0 %v912
      %v960 = vpop.f32.mrf.mxu0
      %v961 = vadd.f32 %v851, %v960
      %v962 = vpop.f32.mrf.mxu0
      %v963 = vadd.f32 %v853, %v962
      %964 = vmatmul.bf16.gmra.mxu0 %v914
      %v965 = vpop.f32.mrf.mxu0
      %v966 = vadd.f32 %v856, %v965
      %v967 = vpop.f32.mrf.mxu0
      %v968 = vadd.f32 %v858, %v967
      %969 = vmatmul.bf16.gmra.mxu0 %v916
      %v970 = vpop.f32.mrf.mxu0
      %v971 = vadd.f32 %v861, %v970
      %v972 = vpop.f32.mrf.mxu0
      %v973 = vadd.f32 %v863, %v972
      %974 = vmatmul.bf16.gmra.mxu0 %v918
      %v975 = vpop.f32.mrf.mxu0
      %v976 = vadd.f32 %v866, %v975
      %v977 = vpop.f32.mrf.mxu0
      %v978 = vadd.f32 %v868, %v977
      %979 = vmatmul.bf16.gmra.mxu0 %v920
      %v980 = vpop.f32.mrf.mxu0
      %v981 = vadd.f32 %v871, %v980
      %v982 = vpop.f32.mrf.mxu0
      %v983 = vadd.f32 %v873, %v982
      %984 = vmatmul.bf16.gmra.mxu0 %v922
      %v985 = vpop.f32.mrf.mxu0
      %v986 = vadd.f32 %v876, %v985
      %v987 = vpop.f32.mrf.mxu0
      %v988 = vadd.f32 %v878, %v987
      %989 = vmatmul.bf16.gmra.mxu0 %v924
      %v990 = vpop.f32.mrf.mxu0
      %v991 = vadd.f32 %v881, %v990
      %v992 = vpop.f32.mrf.mxu0
      %993 = vdwg.mxu0
      %v994 = vld [vmem:[%s197 + $0x18] sm:$0xf]
      %v995 = vld [vmem:[%s197 + $0x1c] sm:$0xf]
      %v996 = vld [vmem:[%s197 + $0x20] sm:$0xf]
      %v997 = vld [vmem:[%s197 + $0x24] sm:$0xf]
      %v998 = vld [vmem:[%s197 + $0x28] sm:$0xf]
      %v999 = vld [vmem:[%s197 + $0x2c] sm:$0xf]
      %v1000 = vld [vmem:[%s197 + $0x30] sm:$0xf]
      %v1001 = vld [vmem:[%s197 + $0x34] sm:$0xf]
      %v1002 = vld [vmem:[%s197 + $0x38] sm:$0xf]
      %v1003 = vld [vmem:[%s197 + $0x3c] sm:$0xf]
      %v1004 = vld [vmem:[%s197 + $0x40] sm:$0xf]
      %v1005 = vld [vmem:[%s197 + $0x44] sm:$0xf]
      %v1006 = vld [vmem:[%s197 + $0x48] sm:$0xf]
      %v1007 = vld [vmem:[%s197 + $0x4c] sm:$0xf]
      %v1008 = vld [vmem:[%s197 + $0x50] sm:$0xf]
      %v1009 = vld [vmem:[%s197 + $0x54] sm:$0xf]
      %v1010 = vld [vmem:[%s197 + $0x58] sm:$0xf]
      %v1011 = vld [vmem:[%s197 + $0x5c] sm:$0xf]
      %v1012 = vld [vmem:[%s197 + $0x60] sm:$0xf]
      %v1013 = vld [vmem:[%s197 + $0x64] sm:$0xf]
      %v1014 = vld [vmem:[%s197 + $0x68] sm:$0xf]
      %v1015 = vld [vmem:[%s197 + $0x6c] sm:$0xf]
      %v1016 = vld [vmem:[%s197 + $0x70] sm:$0xf]
      %v1017 = vld [vmem:[%s197 + $0x74] sm:$0x1]
      %v1018 = vld [vmem:[%s197 + $0x18] sm:$0xe]
      %v1042 = vunpack.c.l.b16 %v994
      %v1043 = vunpack.c.l.b16 %v995
      %v1044 = vunpack.c.l.b16 %v996
      %v1045 = vunpack.c.l.b16 %v997
      %v1046 = vunpack.c.l.b16 %v998
      %v1047 = vunpack.c.l.b16 %v999
      %v1048 = vunpack.c.l.b16 %v1000
      %v1049 = vunpack.c.l.b16 %v1001
      %v1050 = vunpack.c.l.b16 %v1002
      %v1051 = vunpack.c.l.b16 %v1003
      %v1052 = vunpack.c.l.b16 %v1004
      %v1053 = vunpack.c.l.b16 %v1005
      %v1054 = vunpack.c.l.b16 %v1006
      %v1055 = vunpack.c.l.b16 %v1007
      %v1056 = vunpack.c.l.b16 %v1008
      %v1057 = vunpack.c.l.b16 %v1009
      %v1058 = vunpack.c.l.b16 %v1010
      %v1059 = vunpack.c.l.b16 %v1011
      %v1060 = vunpack.c.l.b16 %v1012
      %v1061 = vunpack.c.l.b16 %v1013
      %v1062 = vunpack.c.l.b16 %v1014
      %v1063 = vunpack.c.l.b16 %v1015
      %v1064 = vunpack.c.l.b16 %v1016
      %v1065 = vpack.c.b16 %v1043, %v1042
      %v1066 = vpack.c.b16 %v1045, %v1044
      %v1067 = vpack.c.b16 %v1047, %v1046
      %v1068 = vpack.c.b16 %v1049, %v1048
      %v1069 = vpack.c.b16 %v1051, %v1050
      %v1070 = vpack.c.b16 %v1053, %v1052
      %v1071 = vpack.c.b16 %v1055, %v1054
      %v1072 = vpack.c.b16 %v1057, %v1056
      %v1073 = vpack.c.b16 %v1059, %v1058
      %v1074 = vpack.c.b16 %v1061, %v1060
      %v1075 = vpack.c.b16 %v1063, %v1062
      %v1076 = vpack.c.b16 %v1064, %v1064
      %v1078 = vunpack.c.l.b16 %v1017
      %v1079 = vpack.c.b16 %v1078, %v1064
      %v1081 = vshrl.u32 %v1065, 16
      %v1083 = vshll.u32 %v1065, 16
      %v1085 = vrot.slane %v1083, 1
      %v1086 = vor.u32 %v1081, %v1085
      %v1088 = vshll.u32 %v1066, 16
      %v1090 = vrot.slane %v1088, 1
      %v1091 = vsel %vm295, %v1086, %v1090
      %v1092 = vshrl.u32 %v1066, 16
      %v1094 = vor.u32 %v1092, %v1090
      %v1096 = vshll.u32 %v1067, 16
      %v1098 = vrot.slane %v1096, 1
      %v1099 = vsel %vm295, %v1094, %v1098
      %v1100 = vshrl.u32 %v1067, 16
      %v1102 = vor.u32 %v1100, %v1098
      %v1104 = vshll.u32 %v1068, 16
      %v1106 = vrot.slane %v1104, 1
      %v1107 = vsel %vm295, %v1102, %v1106
      %v1108 = vshrl.u32 %v1068, 16
      %v1110 = vor.u32 %v1108, %v1106
      %v1112 = vshll.u32 %v1069, 16
      %v1114 = vrot.slane %v1112, 1
      %v1115 = vsel %vm295, %v1110, %v1114
      %v1116 = vshrl.u32 %v1069, 16
      %v1118 = vor.u32 %v1116, %v1114
      %v1120 = vshll.u32 %v1070, 16
      %v1122 = vrot.slane %v1120, 1
      %v1123 = vsel %vm295, %v1118, %v1122
      %v1124 = vshrl.u32 %v1070, 16
      %v1126 = vor.u32 %v1124, %v1122
      %v1128 = vshll.u32 %v1071, 16
      %v1130 = vrot.slane %v1128, 1
      %v1131 = vsel %vm295, %v1126, %v1130
      %v1132 = vshrl.u32 %v1071, 16
      %v1134 = vor.u32 %v1132, %v1130
      %v1136 = vshll.u32 %v1072, 16
      %v1138 = vrot.slane %v1136, 1
      %v1139 = vsel %vm295, %v1134, %v1138
      %v1140 = vshrl.u32 %v1072, 16
      %v1142 = vor.u32 %v1140, %v1138
      %v1144 = vshll.u32 %v1073, 16
      %v1146 = vrot.slane %v1144, 1
      %v1147 = vsel %vm295, %v1142, %v1146
      %v1148 = vshrl.u32 %v1073, 16
      %v1150 = vor.u32 %v1148, %v1146
      %v1152 = vshll.u32 %v1074, 16
      %v1154 = vrot.slane %v1152, 1
      %v1155 = vsel %vm295, %v1150, %v1154
      %v1156 = vshrl.u32 %v1074, 16
      %v1158 = vor.u32 %v1156, %v1154
      %v1160 = vshll.u32 %v1075, 16
      %v1162 = vrot.slane %v1160, 1
      %v1163 = vsel %vm295, %v1158, %v1162
      %v1164 = vshrl.u32 %v1075, 16
      %v1166 = vor.u32 %v1164, %v1162
      %v1168 = vshll.u32 %v1079, 16
      %v1170 = vrot.slane %v1168, 1
      %v1171 = vsel %vm295, %v1166, %v1170
      %v1172 = vshrl.u32 %v1079, 16
      %v1174 = vor.u32 %v1172, %v1170
      %1175 = vrot.lane.b32.xlu0 %v1091, 16
      %v1176 = vpop.permute.xlu0 %1175
      %1177 = vrot.lane.b32.xlu0 %v1099, 16
      %v1178 = vpop.permute.xlu0 %1177
      %1179 = vrot.lane.b32.xlu0 %v1107, 16
      %v1180 = vpop.permute.xlu0 %1179
      %1181 = vrot.lane.b32.xlu0 %v1115, 16
      %v1182 = vpop.permute.xlu0 %1181
      %1183 = vrot.lane.b32.xlu0 %v1123, 16
      %v1184 = vpop.permute.xlu0 %1183
      %1185 = vrot.lane.b32.xlu0 %v1131, 16
      %v1186 = vpop.permute.xlu0 %1185
      %1187 = vrot.lane.b32.xlu0 %v1139, 16
      %v1188 = vpop.permute.xlu0 %1187
      %1189 = vrot.lane.b32.xlu0 %v1147, 16
      %v1190 = vpop.permute.xlu0 %1189
      %1191 = vrot.lane.b32.xlu0 %v1155, 16
      %v1192 = vpop.permute.xlu0 %1191
      %1193 = vrot.lane.b32.xlu0 %v1163, 16
      %v1194 = vpop.permute.xlu0 %1193
      %1195 = vrot.lane.b32.xlu0 %v1171, 16
      %v1196 = vpop.permute.xlu0 %1195
      %1197 = vrot.lane.b32.xlu0 %v1174, 16
      %v1198 = vpop.permute.xlu0 %1197
      %v1200 = vunpack.c.l.b16 %v1018
      %v1201 = vpack.c.b16 %v1043, %v1200
      %v1202 = vrot.slane %v1201, 1
      %v1203 = vrot.slane %v1066, 1
      %v1204 = vsel %vm418, %v1202, %v1203
      %v1205 = vrot.slane %v1067, 1
      %v1206 = vsel %vm418, %v1203, %v1205
      %v1207 = vrot.slane %v1068, 1
      %v1208 = vsel %vm418, %v1205, %v1207
      %v1209 = vrot.slane %v1069, 1
      %v1210 = vsel %vm418, %v1207, %v1209
      %v1211 = vrot.slane %v1070, 1
      %v1212 = vsel %vm418, %v1209, %v1211
      %v1213 = vrot.slane %v1071, 1
      %v1214 = vsel %vm418, %v1211, %v1213
      %v1215 = vrot.slane %v1072, 1
      %v1216 = vsel %vm418, %v1213, %v1215
      %v1217 = vrot.slane %v1073, 1
      %v1218 = vsel %vm418, %v1215, %v1217
      %v1219 = vrot.slane %v1074, 1
      %v1220 = vsel %vm418, %v1217, %v1219
      %v1221 = vrot.slane %v1075, 1
      %v1222 = vsel %vm418, %v1219, %v1221
      %v1223 = vrot.slane %v1079, 1
      %v1224 = vsel %vm418, %v1221, %v1223
      %1225 = vrot.lane.b32.xlu0 %v1204, 32
      %v1226 = vpop.permute.xlu0 %1225
      %1227 = vrot.lane.b32.xlu0 %v1206, 32
      %v1228 = vpop.permute.xlu0 %1227
      %1229 = vrot.lane.b32.xlu0 %v1208, 32
      %v1230 = vpop.permute.xlu0 %1229
      %1231 = vrot.lane.b32.xlu0 %v1210, 32
      %v1232 = vpop.permute.xlu0 %1231
      %1233 = vrot.lane.b32.xlu0 %v1212, 32
      %v1234 = vpop.permute.xlu0 %1233
      %1235 = vrot.lane.b32.xlu0 %v1214, 32
      %v1236 = vpop.permute.xlu0 %1235
      %1237 = vrot.lane.b32.xlu0 %v1216, 32
      %v1238 = vpop.permute.xlu0 %1237
      %1239 = vrot.lane.b32.xlu0 %v1218, 32
      %v1240 = vpop.permute.xlu0 %1239
      %1241 = vrot.lane.b32.xlu0 %v1220, 32
      %v1242 = vpop.permute.xlu0 %1241
      %1243 = vrot.lane.b32.xlu0 %v1222, 32
      %v1244 = vpop.permute.xlu0 %1243
      %1245 = vrot.lane.b32.xlu0 %v1224, 32
      %v1246 = vpop.permute.xlu0 %1245
      %1247 = vrot.lane.b32.xlu0 %v1223, 32
      %v1248 = vpop.permute.xlu0 %1247
      %v1250 = vsel %vm466, %v1065, %v1176
      %v1252 = vsel %vm466, %v1066, %v1178
      %v1254 = vsel %vm466, %v1067, %v1180
      %v1256 = vsel %vm466, %v1068, %v1182
      %v1258 = vsel %vm466, %v1069, %v1184
      %v1260 = vsel %vm466, %v1070, %v1186
      %v1262 = vsel %vm466, %v1071, %v1188
      %v1264 = vsel %vm466, %v1072, %v1190
      %v1266 = vsel %vm466, %v1073, %v1192
      %v1268 = vsel %vm466, %v1074, %v1194
      %v1270 = vsel %vm466, %v1075, %v1196
      %v1273 = vsel %vm466, %v1076, %v1198
      %v1275 = vsel %vm492, %v1250, %v1226
      %v1277 = vsel %vm492, %v1252, %v1228
      %v1279 = vsel %vm492, %v1254, %v1230
      %v1281 = vsel %vm492, %v1256, %v1232
      %v1283 = vsel %vm492, %v1258, %v1234
      %v1285 = vsel %vm492, %v1260, %v1236
      %v1287 = vsel %vm492, %v1262, %v1238
      %v1289 = vsel %vm492, %v1264, %v1240
      %v1291 = vsel %vm492, %v1266, %v1242
      %v1293 = vsel %vm492, %v1268, %v1244
      %v1295 = vsel %vm492, %v1270, %v1246
      %v1297 = vsel %vm492, %v1273, %v1248
      %v1298 = vld [vmem:[%s1 + $0x30] sm:$0xf]
      %v1299 = vld [vmem:[%s1 + $0x34] sm:$0xf]
      %v1300 = vld [vmem:[%s1 + $0x38] sm:$0xf]
      %v1301 = vld [vmem:[%s1 + $0x3c] sm:$0xf]
      %v1302 = vld [vmem:[%s1 + $0x40] sm:$0xf]
      %v1303 = vld [vmem:[%s1 + $0x44] sm:$0xf]
      %v1310 = vunpack.c.l.b16 %v1298
      %v1311 = vunpack.c.l.b16 %v1299
      %v1312 = vunpack.c.l.b16 %v1300
      %v1313 = vunpack.c.l.b16 %v1301
      %v1314 = vunpack.c.l.b16 %v1302
      %v1315 = vunpack.c.l.b16 %v1303
      %v1316 = vpack.c.b16 %v1311, %v1310
      %v1317 = vpack.c.b16 %v1313, %v1312
      %v1318 = vpack.c.b16 %v1315, %v1314
      %v1322 = vsel %vm791, %v1275, 0
      %v1324 = vsel %vm791, %v1277, 0
      %v1326 = vsel %vm791, %v1279, 0
      %v1328 = vsel %vm791, %v1281, 0
      %v1330 = vsel %vm791, %v1283, 0
      %v1332 = vsel %vm791, %v1285, 0
      %v1334 = vsel %vm791, %v1287, 0
      %v1336 = vsel %vm791, %v1289, 0
      %v1338 = vsel %vm791, %v1291, 0
      %v1340 = vsel %vm791, %v1293, 0
      %v1342 = vsel %vm791, %v1295, 0
      %v1344 = vsel %vm791, %v1297, 0
      %1346 = vmatpush.bf16.msra.mxu0 0
      %1347 = vmatpush.bf16.msra.mxu0 0
      %1348 = vmatpush.bf16.msra.mxu0 0
      %1349 = vmatpush.bf16.msra.mxu0 0
      %1350 = vmatpush.bf16.msra.mxu0 0
      %1351 = vmatpush.bf16.msra.mxu0 %v1318
      %1352 = vmatpush.bf16.msra.mxu0 %v1317
      %1353 = vmatpush.bf16.msra.mxu0 %v1316
      %1354 = vmatmul.bf16.gmra.mxu0 %v1322
      %v1355 = vpop.f32.mrf.mxu0
      %v1356 = vadd.f32 0.0, %v1355
      %v1357 = vpop.f32.mrf.mxu0
      %v1358 = vadd.f32 0.0, %v1357
      %1359 = vmatmul.bf16.gmra.mxu0 %v1324
      %v1360 = vpop.f32.mrf.mxu0
      %v1361 = vadd.f32 0.0, %v1360
      %v1362 = vpop.f32.mrf.mxu0
      %v1363 = vadd.f32 0.0, %v1362
      %1364 = vmatmul.bf16.gmra.mxu0 %v1326
      %v1365 = vpop.f32.mrf.mxu0
      %v1366 = vadd.f32 0.0, %v1365
      %v1367 = vpop.f32.mrf.mxu0
      %v1368 = vadd.f32 0.0, %v1367
      %1369 = vmatmul.bf16.gmra.mxu0 %v1328
      %v1370 = vpop.f32.mrf.mxu0
      %v1371 = vadd.f32 0.0, %v1370
      %v1372 = vpop.f32.mrf.mxu0
      %v1373 = vadd.f32 0.0, %v1372
      %1374 = vmatmul.bf16.gmra.mxu0 %v1330
      %v1375 = vpop.f32.mrf.mxu0
      %v1376 = vadd.f32 0.0, %v1375
      %v1377 = vpop.f32.mrf.mxu0
      %v1378 = vadd.f32 0.0, %v1377
      %1379 = vmatmul.bf16.gmra.mxu0 %v1332
      %v1380 = vpop.f32.mrf.mxu0
      %v1381 = vadd.f32 0.0, %v1380
      %v1382 = vpop.f32.mrf.mxu0
      %v1383 = vadd.f32 0.0, %v1382
      %1384 = vmatmul.bf16.gmra.mxu0 %v1334
      %v1385 = vpop.f32.mrf.mxu0
      %v1386 = vadd.f32 0.0, %v1385
      %v1387 = vpop.f32.mrf.mxu0
      %v1388 = vadd.f32 0.0, %v1387
      %1389 = vmatmul.bf16.gmra.mxu0 %v1336
      %v1390 = vpop.f32.mrf.mxu0
      %v1391 = vadd.f32 0.0, %v1390
      %v1392 = vpop.f32.mrf.mxu0
      %v1393 = vadd.f32 0.0, %v1392
      %1394 = vmatmul.bf16.gmra.mxu0 %v1338
      %v1395 = vpop.f32.mrf.mxu0
      %v1396 = vadd.f32 0.0, %v1395
      %v1397 = vpop.f32.mrf.mxu0
      %v1398 = vadd.f32 0.0, %v1397
      %1399 = vmatmul.bf16.gmra.mxu0 %v1340
      %v1400 = vpop.f32.mrf.mxu0
      %v1401 = vadd.f32 0.0, %v1400
      %v1402 = vpop.f32.mrf.mxu0
      %v1403 = vadd.f32 0.0, %v1402
      %1404 = vmatmul.bf16.gmra.mxu0 %v1342
      %v1405 = vpop.f32.mrf.mxu0
      %v1406 = vadd.f32 0.0, %v1405
      %v1407 = vpop.f32.mrf.mxu0
      %v1408 = vadd.f32 0.0, %v1407
      %1409 = vmatmul.bf16.gmra.mxu0 %v1344
      %v1410 = vpop.f32.mrf.mxu0
      %v1411 = vadd.f32 0.0, %v1410
      %v1412 = vpop.f32.mrf.mxu0
      %1413 = vdwg.mxu0
      %v1414 = vadd.f32 %v936, %v1356
      %v1415 = vadd.f32 %v938, %v1358
      %v1416 = vadd.f32 %v941, %v1361
      %v1417 = vadd.f32 %v943, %v1363
      %v1418 = vadd.f32 %v946, %v1366
      %v1419 = vadd.f32 %v948, %v1368
      %v1420 = vadd.f32 %v951, %v1371
      %v1421 = vadd.f32 %v953, %v1373
      %v1422 = vadd.f32 %v956, %v1376
      %v1423 = vadd.f32 %v958, %v1378
      %v1424 = vadd.f32 %v961, %v1381
      %v1425 = vadd.f32 %v963, %v1383
      %v1426 = vadd.f32 %v966, %v1386
      %v1427 = vadd.f32 %v968, %v1388
      %v1428 = vadd.f32 %v971, %v1391
      %v1429 = vadd.f32 %v973, %v1393
      %v1430 = vadd.f32 %v976, %v1396
      %v1431 = vadd.f32 %v978, %v1398
      %v1432 = vadd.f32 %v981, %v1401
      %v1433 = vadd.f32 %v983, %v1403
      %v1434 = vadd.f32 %v986, %v1406
      %v1435 = vadd.f32 %v988, %v1408
      %v1436 = vadd.f32 %v991, %v1411
      %v1437 = vld [vmem:[%s2] sm:$0x1]
      %v1439 = vperm.slane %v1437, 0
      %v1441 = vadd.f32 %v1414, %v1439
      %v1442 = vadd.f32 %v1415, %v1439
      %v1443 = vadd.f32 %v1416, %v1439
      %v1444 = vadd.f32 %v1417, %v1439
      %v1445 = vadd.f32 %v1418, %v1439
      %v1446 = vadd.f32 %v1419, %v1439
      %v1447 = vadd.f32 %v1420, %v1439
      %v1448 = vadd.f32 %v1421, %v1439
      %v1449 = vadd.f32 %v1422, %v1439
      %v1450 = vadd.f32 %v1423, %v1439
      %v1451 = vadd.f32 %v1424, %v1439
      %v1452 = vadd.f32 %v1425, %v1439
      %v1453 = vadd.f32 %v1426, %v1439
      %v1454 = vadd.f32 %v1427, %v1439
      %v1455 = vadd.f32 %v1428, %v1439
      %v1456 = vadd.f32 %v1429, %v1439
      %v1457 = vadd.f32 %v1430, %v1439
      %v1458 = vadd.f32 %v1431, %v1439
      %v1459 = vadd.f32 %v1432, %v1439
      %v1460 = vadd.f32 %v1433, %v1439
      %v1461 = vadd.f32 %v1434, %v1439
      %v1462 = vadd.f32 %v1435, %v1439
      %v1463 = vadd.f32 %v1436, %v1439
      %v1464 = vmax.f32 %v1441, 0.0
      %v1465 = vmax.f32 %v1442, 0.0
      %v1466 = vmax.f32 %v1443, 0.0
      %v1467 = vmax.f32 %v1444, 0.0
      %v1468 = vmax.f32 %v1445, 0.0
      %v1469 = vmax.f32 %v1446, 0.0
      %v1470 = vmax.f32 %v1447, 0.0
      %v1471 = vmax.f32 %v1448, 0.0
      %v1472 = vmax.f32 %v1449, 0.0
      %v1473 = vmax.f32 %v1450, 0.0
      %v1474 = vmax.f32 %v1451, 0.0
      %v1475 = vmax.f32 %v1452, 0.0
      %v1476 = vmax.f32 %v1453, 0.0
      %v1477 = vmax.f32 %v1454, 0.0
      %v1478 = vmax.f32 %v1455, 0.0
      %v1479 = vmax.f32 %v1456, 0.0
      %v1480 = vmax.f32 %v1457, 0.0
      %v1481 = vmax.f32 %v1458, 0.0
      %v1482 = vmax.f32 %v1459, 0.0
      %v1483 = vmax.f32 %v1460, 0.0
      %v1484 = vmax.f32 %v1461, 0.0
      %v1485 = vmax.f32 %v1462, 0.0
      %v1486 = vmax.f32 %v1463, 0.0
      %1487 = vst.msk [vmem:[#allocation2] sm:$0xff] %vm466, %v1464
      %1488 = vst.msk [vmem:[#allocation2 + $0x8] sm:$0xff] %vm466, %v1465
      %1489 = vst.msk [vmem:[#allocation2 + $0x10] sm:$0xff] %vm466, %v1466
      %1490 = vst.msk [vmem:[#allocation2 + $0x18] sm:$0xff] %vm466, %v1467
      %1491 = vst.msk [vmem:[#allocation2 + $0x20] sm:$0xff] %vm466, %v1468
      %1492 = vst.msk [vmem:[#allocation2 + $0x28] sm:$0xff] %vm466, %v1469
      %1493 = vst.msk [vmem:[#allocation2 + $0x30] sm:$0xff] %vm466, %v1470
      %1494 = vst.msk [vmem:[#allocation2 + $0x38] sm:$0xff] %vm466, %v1471
      %1495 = vst.msk [vmem:[#allocation2 + $0x40] sm:$0xff] %vm466, %v1472
      %1496 = vst.msk [vmem:[#allocation2 + $0x48] sm:$0xff] %vm466, %v1473
      %1497 = vst.msk [vmem:[#allocation2 + $0x50] sm:$0xff] %vm466, %v1474
      %1498 = vst.msk [vmem:[#allocation2 + $0x58] sm:$0xff] %vm466, %v1475
      %1499 = vst.msk [vmem:[#allocation2 + $0x60] sm:$0xff] %vm466, %v1476
      %1500 = vst.msk [vmem:[#allocation2 + $0x68] sm:$0xff] %vm466, %v1477
      %1501 = vst.msk [vmem:[#allocation2 + $0x70] sm:$0xff] %vm466, %v1478
      %1502 = vst.msk [vmem:[#allocation2 + $0x78] sm:$0xff] %vm466, %v1479
      %1503 = vst.msk [vmem:[#allocation2 + $0x80] sm:$0xff] %vm466, %v1480
      %1504 = vst.msk [vmem:[#allocation2 + $0x88] sm:$0xff] %vm466, %v1481
      %1505 = vst.msk [vmem:[#allocation2 + $0x90] sm:$0xff] %vm466, %v1482
      %1506 = vst.msk [vmem:[#allocation2 + $0x98] sm:$0xff] %vm466, %v1483
      %1507 = vst.msk [vmem:[#allocation2 + $0xa0] sm:$0xff] %vm466, %v1484
      %1508 = vst.msk [vmem:[#allocation2 + $0xa8] sm:$0xff] %vm466, %v1485
      %1509 = vst.msk [vmem:[#allocation2 + $0xb0] sm:$0xff] %vm466, %v1486
      %v1510 = vld [vmem:[#allocation2] sm:$0xff]
      %v1511 = vld [vmem:[#allocation2 + $0x8] sm:$0xff]
      %v1512 = vld [vmem:[#allocation2 + $0x18] sm:$0xff]
      %v1513 = vld [vmem:[#allocation2 + $0x20] sm:$0xff]
      %v1514 = vmax.f32 %v1510, %v1512
      %v1515 = vmax.f32 %v1511, %v1513
      %1516 = vst.msk [vmem:[#allocation2 + $0x18] sm:$0xff] %vm466, %v1514
      %1517 = vst.msk [vmem:[#allocation2 + $0x20] sm:$0xff] %vm466, %v1515
      %s1518 = scalar_lea.vmem [#allocation2], 24
      %v1519 = vld [vmem:[%s1518] ss:$2 sm:$0xff]
      %s1520 = scalar_lea.vmem [#allocation2], 25
      %v1521 = vld [vmem:[%s1520] ss:$2 sm:$0xff]
      %v1522 = vmax.f32 %v1519, %v1521
      %1523 = vst.msk [vmem:[%s206] sm:$0xff] %vm466, %v1522
      %v1524 = vld [vmem:[#allocation2 + $0x30] sm:$0xff]
      %v1525 = vld [vmem:[#allocation2 + $0x38] sm:$0xff]
      %v1526 = vld [vmem:[#allocation2 + $0x48] sm:$0xff]
      %v1527 = vld [vmem:[#allocation2 + $0x50] sm:$0xff]
      %v1528 = vmax.f32 %v1524, %v1526
      %v1529 = vmax.f32 %v1525, %v1527
      %1530 = vst.msk [vmem:[#allocation2 + $0x48] sm:$0xff] %vm466, %v1528
      %1531 = vst.msk [vmem:[#allocation2 + $0x50] sm:$0xff] %vm466, %v1529
      %s1532 = scalar_lea.vmem [#allocation2], 72
      %v1533 = vld [vmem:[%s1532] ss:$2 sm:$0xff]
      %s1534 = scalar_lea.vmem [#allocation2], 73
      %v1535 = vld [vmem:[%s1534] ss:$2 sm:$0xff]
      %v1536 = vmax.f32 %v1533, %v1535
      %1537 = vst.msk [vmem:[%s206 + $0x8] sm:$0xff] %vm466, %v1536
      %v1538 = vld [vmem:[#allocation2 + $0x60] sm:$0xff]
      %v1539 = vld [vmem:[#allocation2 + $0x68] sm:$0xff]
      %v1540 = vld [vmem:[#allocation2 + $0x78] sm:$0xff]
      %v1541 = vld [vmem:[#allocation2 + $0x80] sm:$0xff]
      %v1542 = vmax.f32 %v1538, %v1540
      %v1543 = vmax.f32 %v1539, %v1541
      %1544 = vst.msk [vmem:[#allocation2 + $0x78] sm:$0xff] %vm466, %v1542
      %1545 = vst.msk [vmem:[#allocation2 + $0x80] sm:$0xff] %vm466, %v1543
      %s1546 = scalar_lea.vmem [#allocation2], 120
      %v1547 = vld [vmem:[%s1546] ss:$2 sm:$0xff]
      %s1548 = scalar_lea.vmem [#allocation2], 121
      %v1549 = vld [vmem:[%s1548] ss:$2 sm:$0xff]
      %v1550 = vmax.f32 %v1547, %v1549
      %1551 = vst.msk [vmem:[%s206 + $0x10] sm:$0xff] %vm466, %v1550
      %v1552 = vld [vmem:[#allocation2 + $0x90] sm:$0xff]
      %v1553 = vld [vmem:[#allocation2 + $0x98] sm:$0xff]
      %v1554 = vld [vmem:[#allocation2 + $0xa8] sm:$0xff]
      %v1555 = vld [vmem:[#allocation2 + $0xb0] sm:$0xff]
      %v1556 = vmax.f32 %v1552, %v1554
      %v1557 = vmax.f32 %v1553, %v1555
      %1558 = vst.msk [vmem:[#allocation2 + $0xa8] sm:$0xff] %vm466, %v1556
      %1559 = vst.msk [vmem:[#allocation2 + $0xb0] sm:$0xff] %vm466, %v1557
      %s1560 = scalar_lea.vmem [#allocation2], 168
      %v1561 = vld [vmem:[%s1560] ss:$2 sm:$0xff]
      %s1562 = scalar_lea.vmem [#allocation2], 169
      %v1563 = vld [vmem:[%s1562] ss:$2 sm:$0xff]
      %v1564 = vmax.f32 %v1561, %v1563
      %1565 = vst.msk [vmem:[%s206 + $0x18] sm:$0xff] %vm466, %v1564
      %s1566 = smul.u32 4, %s19
      %p1567 = scmp.lt.s32.totalorder %s18, 1
      %s1568 = scalar_select %p1567, %s18, 1
      %p1569 = scmp.lt.s32.totalorder %s1566, 7
      %s1570 = scalar_select %p1569, %s1566, 7
      %s1571 = smul.addr %s1568, 8
      %s1572 = sadd.s32 %s1570, %s1571
      %s1573 = smul.addr %s1572, 8
      %s1574 = scalar_lea.vmem %s3, %s1573
      // Predicated region
      $region33: #{mtan_down_pallas.7} parent=31 // pred_check
        %p1575 = pneg %p116
      $region34: #{mtan_down_pallas.7} parent=31 // pred_check_branch
        %1577 = sbr.rel (%p1575) target = $region36
      $region35: #{mtan_down_pallas.7} parent=31 // pred_region
        %s1578 = smul.u32 4, %s19
      $region36: #{mtan_down_pallas.7} parent=31 // pred_fallthru
        _
    $region32: #{mtan_down_pallas.7} parent=5 // pred_fallthru
      _
    %p1579 = scmp.le.s32.totalorder 2, %s9
    // Predicated region
    $region37: #{mtan_down_pallas.7} parent=5 // pred_check
      %p1580 = pneg %p1579
    $region38: #{mtan_down_pallas.7} parent=5 // pred_check_branch
      %1582 = sbr.rel (%p1580) target = $region40
    $region39: #{mtan_down_pallas.7} parent=5 // pred_region
      %s1583 = ssub.s32 %s9, 2
      // Predicated region
      $region41: #{mtan_down_pallas.7} parent=39 // pred_check
        %p1584 = pneg %p122
      $region42: #{mtan_down_pallas.7} parent=39 // pred_check_branch
        %1586 = sbr.rel (%p1584) target = $region44
      $region43: #{mtan_down_pallas.7} parent=39 // pred_region
        %s1587 = smul.u32 4, %s21
        %p1588 = scmp.lt.s32.totalorder %s20, 1
        %s1589 = scalar_select %p1588, %s20, 1
        %p1590 = scmp.lt.s32.totalorder %s1587, 7
        %s1591 = scalar_select %p1590, %s1587, 7
        %s1592 = smul.addr %s1589, 8
        %s1593 = sadd.s32 %s1591, %s1592
        %s1594 = smul.addr %s1593, 8
        %s1595 = scalar_lea.vmem %s3, %s1594
      $region44: #{mtan_down_pallas.7} parent=39 // pred_fallthru
        _
    $region40: #{mtan_down_pallas.7} parent=5 // pred_fallthru
      _
  $region6: #{mtan_down_pallas.7} parent=0 // loop_footer
    %s13 = sadd.s32 1, %s9
  $region7: #{mtan_down_pallas.7} parent=0 // loop_footer_branch
    %8 = sbr.rel target = $region3
  $region8: #{mtan_down_pallas.7} parent=0 // loop_exit
    _

</llo_original>
